<compile_context>
chip_gen: v7x
topology: tpu7x:2x2x1
jax: 0.10.0
libtpu: 0.0.40
codegen_flags: <defaults>
</compile_context>

<pallas_src>
import jax
import jax.numpy as jnp
from jax import lax
from jax.experimental import pallas as pl
from jax.experimental.pallas import tpu as pltpu

_LANE = 128
_SUBLANE = 8
_BN_EPS = 1e-5


def _round_up(x, m):
    return ((x + m - 1) // m) * m


def _largest_divisor_leq(n, cap, multiple=1):
    cap = min(n, cap)
    for c in range(cap, 0, -1):
        if n % c == 0 and (c % multiple == 0 or c == n):
            return c
    return n


# ----------------------------------------------------------------------------------
# Kernel 1: one bidirectional RNN layer, both directions interleaved per grid step.
#   Grid = (time_chunk,).  At grid step c the kernel:
#     - projects the fwd chunk c and the bwd chunk (n-1-c) in two tall MXU matmuls
#       (bias folded in),
#     - runs the fused serial recurrence H = tanh(P[i] + H @ blockdiag(Whh_f, Whh_b))
#       where H = [h_fwd | h_bwd] (Bp, 2Hp); fwd walks local time 0..tt-1 of chunk c,
#       bwd walks local time tt-1..0 of chunk n-1-c,
#     - writes the fwd hidden states into out_f[chunk c] and the bwd hidden states
#       into out_b[chunk n-1-c] (both lane-dense, natural global-time order).
# ----------------------------------------------------------------------------------
def _make_bidir_kernel(dual_input):
    def kernel(*refs):
        if dual_input:
            xf_c, xb_c, xf_r, xb_r = refs[:4]
            k = 4
        else:
            x_c, x_r = refs[:2]
            k = 2
        wih_ref, whh_ref, b_ref, of_ref, ob_ref, h_scr, pf_scr, pb_scr = refs[k:k + 8]

        c = pl.program_id(0)
        tt, bp, hp = of_ref.shape

        # Reset the combined carried hidden state at the first chunk.
        @pl.when(c == 0)
        def _():
            h_scr[...] = jnp.zeros_like(h_scr)

        # Hoisted input projections (bias folded): one tall matmul per direction.
        if dual_input:
            xin_f = jnp.concatenate([xf_c[...], xb_c[...]], axis=-1)
            xin_b = jnp.concatenate([xf_r[...], xb_r[...]], axis=-1)
        else:
            xin_f = x_c[...]
            xin_b = x_r[...]
        din = xin_f.shape[-1]
        xin_f = xin_f.astype(jnp.float32).reshape(tt * bp, din)
        xin_b = xin_b.astype(jnp.float32).reshape(tt * bp, din)

        pf_scr[...] = (jnp.dot(xin_f, wih_ref[0], preferred_element_type=jnp.float32)
                       + b_ref[0]).reshape(tt, bp, hp)
        pb_scr[...] = (jnp.dot(xin_b, wih_ref[1], preferred_element_type=jnp.float32)
                       + b_ref[1]).reshape(tt, bp, hp)

        whh = whh_ref[...]  # (2Hp, 2Hp) block-diagonal [[Whh_f, 0], [0, Whh_b]]

        def step(i, carry):
            # fwd consumes local time i of chunk c; bwd consumes local time tt-1-i
            # of chunk n-1-c (chunk selection done by the index_maps).
            pre = jnp.concatenate([pf_scr[i], pb_scr[tt - 1 - i]], axis=-1)
            h = jnp.tanh(pre + jnp.dot(h_scr[...], whh,
                                       preferred_element_type=jnp.float32))
            h_scr[...] = h
            of_ref[i] = h[:, :hp].astype(of_ref.dtype)
            ob_ref[tt - 1 - i] = h[:, hp:].astype(ob_ref.dtype)
            return carry

        lax.fori_loop(0, tt, step, 0, unroll=min(8, tt))

    return kernel


def bidir_rnn_layer(inputs, w_ih, w_hh_bd, b, *, out_dtype=None, time_chunk=None):
    """inputs: (x,) for layer 0 with x (T, Bp, Dp), or (prev_f, prev_b) each (T, Bp, Hp).
    w_ih: (2, Din_p, Hp) stacked [fwd, bwd]; w_hh_bd: (2Hp, 2Hp) block-diagonal;
    b: (2, 1, Hp).  Returns (out_f, out_b), each (T, Bp, Hp)."""
    dual = len(inputs) == 2
    T, Bp = inputs[0].shape[:2]
    Hp = w_hh_bd.shape[-1] // 2
    out_dtype = inputs[0].dtype if out_dtype is None else out_dtype
    tt = _largest_divisor_leq(T, 128) if time_chunk is None else time_chunk
    n = T // tt

    fwd_map = lambda c: (c, 0, 0)
    bwd_map = lambda c: (n - 1 - c, 0, 0)

    if dual:
        data = [inputs[0], inputs[1], inputs[0], inputs[1]]
        dspec = [pl.BlockSpec((tt, Bp, Hp), fwd_map),
                 pl.BlockSpec((tt, Bp, Hp), fwd_map),
                 pl.BlockSpec((tt, Bp, Hp), bwd_map),
                 pl.BlockSpec((tt, Bp, Hp), bwd_map)]
    else:
        Dp = inputs[0].shape[-1]
        data = [inputs[0], inputs[0]]
        dspec = [pl.BlockSpec((tt, Bp, Dp), fwd_map),
                 pl.BlockSpec((tt, Bp, Dp), bwd_map)]

    out_f, out_b = pl.pallas_call(
        _make_bidir_kernel(dual),
        out_shape=(jax.ShapeDtypeStruct((T, Bp, Hp), out_dtype),
                   jax.ShapeDtypeStruct((T, Bp, Hp), out_dtype)),
        grid=(n,),
        in_specs=dspec + [
            pl.BlockSpec(w_ih.shape, lambda c: (0, 0, 0)),
            pl.BlockSpec(w_hh_bd.shape, lambda c: (0, 0)),
            pl.BlockSpec(b.shape, lambda c: (0, 0, 0)),
        ],
        out_specs=(pl.BlockSpec((tt, Bp, Hp), fwd_map),
                   pl.BlockSpec((tt, Bp, Hp), bwd_map)),
        scratch_shapes=[
            pltpu.VMEM((Bp, 2 * Hp), jnp.float32),     # combined hidden carry [h_f | h_b]
            pltpu.VMEM((tt, Bp, Hp), jnp.float32),     # fwd chunk projection
            pltpu.VMEM((tt, Bp, Hp), jnp.float32),     # bwd chunk projection
        ],
        compiler_params=pltpu.CompilerParams(dimension_semantics=("arbitrary",)),
    )(*data, w_ih, w_hh_bd, b)
    return out_f, out_b


# ----------------------------------------------------------------------------------
# Kernel 2: row-tiled (BatchNorm-folded) Linear on the two direction slabs:
#   out = [h_f | h_b] @ W' + b'   (no HBM concatenate — lane concat happens in vregs).
# ----------------------------------------------------------------------------------
def _fc_kernel(hf_ref, hb_ref, w_ref, b_ref, out_ref):
    y = jnp.concatenate([hf_ref[...], hb_ref[...]], axis=-1).astype(jnp.float32)
    out = jnp.dot(y, w_ref[...], preferred_element_type=jnp.float32) + b_ref[...]
    out_ref[...] = out.astype(out_ref.dtype)


def fused_fc(hf2d, hb2d, w, b, *, out_dtype=jnp.float32, row_tile=512):
    N, Hp = hf2d.shape
    Op = w.shape[1]
    tn = _largest_divisor_leq(N, row_tile, multiple=_SUBLANE)
    return pl.pallas_call(
        _fc_kernel,
        out_shape=jax.ShapeDtypeStruct((N, Op), out_dtype),
        grid=(N // tn,),
        in_specs=[
            pl.BlockSpec((tn, Hp), lambda i: (i, 0)),
            pl.BlockSpec((tn, Hp), lambda i: (i, 0)),
            pl.BlockSpec(w.shape, lambda i: (0, 0)),
            pl.BlockSpec(b.shape, lambda i: (0, 0)),
        ],
        out_specs=pl.BlockSpec((tn, Op), lambda i: (i, 0)),
        compiler_params=pltpu.CompilerParams(dimension_semantics=("parallel",)),
    )(hf2d, hb2d, w, b)


# ----------------------------------------------------------------------------------
# Parameters: logical (PyTorch-shaped) init, then packing into padded kernel layout.
# ----------------------------------------------------------------------------------
def init_params(key, input_size, hidden_size, output_size, num_layers=2,
                bidirectional=True):
    assert bidirectional, "kernel packing assumes the bidirectional module"
    dirs = 2
    std = 1.0 / (hidden_size ** 0.5)
    params = {"rnn": []}
    k = key
    layer_in = input_size
    for _ in range(num_layers):
        layer_p = []
        for _ in range(dirs):
            k, k1, k2, k3, k4 = jax.random.split(k, 5)
            w_ih = jax.random.uniform(k1, (layer_in, hidden_size), jnp.float32, -std, std)
            w_hh = jax.random.uniform(k2, (hidden_size, hidden_size), jnp.float32, -std, std)
            b_ih = jax.random.uniform(k3, (hidden_size,), jnp.float32, -std, std)
            b_hh = jax.random.uniform(k4, (hidden_size,), jnp.float32, -std, std)
            layer_p.append({"w_ih": w_ih, "w_hh": w_hh, "b": b_ih + b_hh})
        params["rnn"].append(layer_p)
        layer_in = hidden_size * dirs

    feat = hidden_size * dirs
    params["bn_gamma"] = jnp.ones((feat,), jnp.float32)
    params["bn_beta"] = jnp.zeros((feat,), jnp.float32)
    params["bn_mean"] = jnp.zeros((feat,), jnp.float32)
    params["bn_var"] = jnp.ones((feat,), jnp.float32)

    fstd = 1.0 / (feat ** 0.5)
    k, kf1, kf2 = jax.random.split(k, 3)
    params["fc_w"] = jax.random.uniform(kf1, (feat, output_size), jnp.float32, -fstd, fstd)
    params["fc_b"] = jax.random.uniform(kf2, (output_size,), jnp.float32, -fstd, fstd)
    return params


def pack_params(params, input_size, hidden_size, output_size):
    """Pad feature dims to lane multiples, stack directions, build block-diagonal
    recurrent weights, and fold eval-mode BatchNorm into the FC weights.
    Zero padding is exact (padded feature lanes stay identically zero)."""
    H = hidden_size
    Hp = _round_up(max(H, 1), _LANE)
    Dp0 = _round_up(max(input_size, 1), _LANE)
    Op = _round_up(max(output_size, 1), _LANE)

    def pad2d(m, rows, cols):
        out = jnp.zeros((rows, cols), jnp.float32)
        return out.at[: m.shape[0], : m.shape[1]].set(m)

    def pad_dual_rows(m, cols_p):
        # m: (2H, C), rows laid out [fwd H | bwd H].  Map fwd -> [0:H), bwd -> [Hp:Hp+H).
        out = jnp.zeros((2 * Hp, cols_p), jnp.float32)
        out = out.at[:H, : m.shape[1]].set(m[:H])
        out = out.at[Hp: Hp + H, : m.shape[1]].set(m[H:])
        return out

    packed = {"layers": []}
    for li, layer_p in enumerate(params["rnn"]):
        wih_list, b_list = [], []
        for dp in layer_p:
            if li == 0:
                wih = pad2d(dp["w_ih"], Dp0, Hp)
            else:
                wih = pad_dual_rows(dp["w_ih"], Hp)
            wih_list.append(wih)
            b_list.append(jnp.zeros((1, Hp), jnp.float32).at[0, :H].set(dp["b"]))
        # Block-diagonal recurrent weight so both directions share one MXU matmul.
        whh_bd = jnp.zeros((2 * Hp, 2 * Hp), jnp.float32)
        whh_bd = whh_bd.at[:H, :H].set(layer_p[0]["w_hh"])
        whh_bd = whh_bd.at[Hp: Hp + H, Hp: Hp + H].set(layer_p[1]["w_hh"])
        packed["layers"].append({
            "w_ih": jnp.stack(wih_list),   # (2, Din_p, Hp)
            "w_hh": whh_bd,                # (2Hp, 2Hp)
            "b": jnp.stack(b_list),        # (2, 1, Hp)
        })

    # Fold eval-mode BatchNorm1d into the Linear layer:
    #   BN(y) @ W + b == y @ (scale[:,None]*W) + ((beta - mean*scale) @ W + b)
    scale = params["bn_gamma"] * lax.rsqrt(params["bn_var"] + _BN_EPS)
    w_fold = params["fc_w"] * scale[:, None]
    b_fold = params["fc_b"] + (params["bn_beta"] - params["bn_mean"] * scale) @ params["fc_w"]

    packed["fc_w"] = pad_dual_rows(w_fold, Op)
    packed["fc_b"] = jnp.zeros((1, Op), jnp.float32).at[0, :output_size].set(b_fold)
    packed["dims"] = dict(H=H, Hp=Hp, Dp0=Dp0, Op=Op,
                          input_size=input_size, output_size=output_size)
    return packed


# ----------------------------------------------------------------------------------
# Full forward pass.
# ----------------------------------------------------------------------------------
def rnn_model_forward(packed, x, *, activation_dtype=None):
    # x: (T, B, input_size)  ->  (T, B, output_size)
    T, B, Din = x.shape
    dims = packed["dims"]
    Hp, Dp0, Op, O = dims["Hp"], dims["Dp0"], dims["Op"], dims["output_size"]
    act_dtype = x.dtype if activation_dtype is None else activation_dtype
    Bp = _round_up(max(B, 1), _SUBLANE)

    # Pad batch to a sublane multiple and features to a lane multiple (zeros are exact).
    xin = jnp.zeros((T, Bp, Dp0), act_dtype).at[:, :B, :Din].set(x.astype(act_dtype))

    feats = (xin,)
    for lp in packed["layers"]:
        feats = bidir_rnn_layer(feats, lp["w_ih"], lp["w_hh"], lp["b"],
                                out_dtype=act_dtype)

    # TODO(synk): inter-layer RNN dropout and post-BN dropout are identity in eval
    # mode; BatchNorm uses running statistics (folded into the FC weights above).
    hf2d = feats[0].reshape(T * Bp, Hp)
    hb2d = feats[1].reshape(T * Bp, Hp)
    out2d = fused_fc(hf2d, hb2d, packed["fc_w"], packed["fc_b"], out_dtype=jnp.float32)
    return out2d.reshape(T, Bp, Op)[:, :B, :O]


# ----------------------------------------------------------------------------------
# Pure-JAX reference (un-padded) for validation.
# ----------------------------------------------------------------------------------
def _reference_forward(params, x):
    prec = jax.lax.Precision.HIGHEST
    T, B, _ = x.shape
    h = x.astype(jnp.float32)
    for layer_p in params["rnn"]:
        outs = []
        for d, dp in enumerate(layer_p):
            xs = h if d == 0 else h[::-1]
            w_ih, w_hh, bias = dp["w_ih"], dp["w_hh"], dp["b"]

            def step(hprev, xt, w_ih=w_ih, w_hh=w_hh, bias=bias):
                hn = jnp.tanh(jnp.dot(xt, w_ih, precision=prec)
                              + jnp.dot(hprev, w_hh, precision=prec) + bias)
                return hn, hn

            h0 = jnp.zeros((B, w_hh.shape[0]), jnp.float32)
            _, ys = lax.scan(step, h0, xs)
            if d == 1:
                ys = ys[::-1]
            outs.append(ys)
        h = jnp.concatenate(outs, axis=-1)
    y = h.reshape(T * B, h.shape[-1])
    scale = params["bn_gamma"] * lax.rsqrt(params["bn_var"] + _BN_EPS)
    y = (y - params["bn_mean"]) * scale + params["bn_beta"]
    out = jnp.dot(y, params["fc_w"], precision=prec) + params["fc_b"]
    return out.reshape(T, B, -1)


if __name__ == "__main__":
    T, B, INPUT, HIDDEN, OUTPUT = 8, 4, 16, 32, 10
    key = jax.random.PRNGKey(0)
    kx, kp = jax.random.split(key)
    x = jax.random.normal(kx, (T, B, INPUT), jnp.float32)

    params = init_params(kp, INPUT, HIDDEN, OUTPUT, num_layers=2, bidirectional=True)
    packed = pack_params(params, INPUT, HIDDEN, OUTPUT)

    fwd = jax.jit(lambda xx: rnn_model_forward(packed, xx))
    out = jax.block_until_ready(fwd(x))

    assert out.shape == (T, B, OUTPUT), out.shape
    assert bool(jnp.all(jnp.isfinite(out)))

    ref = _reference_forward(params, x)
    err = float(jnp.max(jnp.abs(out - ref)))
    assert err < 5e-2, f"mismatch vs reference: {err}"

    print("KERNEL_OK")
</pallas_src>

<mosaic_0001>
module attributes {stable_mosaic.version = 11 : i64} {
  func.func @kernel(%arg0: i32, %arg1: memref<8x8x128xf32, #tpu.memory_space<vmem>>, %arg2: memref<8x8x128xf32, #tpu.memory_space<vmem>>, %arg3: memref<2x128x128xf32, #tpu.memory_space<vmem>>, %arg4: memref<256x256xf32, #tpu.memory_space<vmem>>, %arg5: memref<2x1x128xf32, #tpu.memory_space<vmem>>, %arg6: memref<8x8x128xf32, #tpu.memory_space<vmem>>, %arg7: memref<8x8x128xf32, #tpu.memory_space<vmem>>, %arg8: memref<8x256xf32, #tpu.memory_space<vmem>>, %arg9: memref<8x8x128xf32, #tpu.memory_space<vmem>>, %arg10: memref<8x8x128xf32, #tpu.memory_space<vmem>>) attributes {dimension_semantics = [#tpu.dimension_semantics<arbitrary>], iteration_bounds = array<i64: 1>, scalar_prefetch = 0 : i64, scratch_operands = 3 : i64, tpu.core_type = #tpu.core_type<tc>, window_params = [{transform_indices = @transform_0, window_bounds = array<i64: 8, 8, 128>}, {transform_indices = @transform_1, window_bounds = array<i64: 8, 8, 128>}, {pipeline_mode = #tpu.pipeline_mode<synchronous>, transform_indices = @transform_2, window_bounds = array<i64: 2, 128, 128>}, {pipeline_mode = #tpu.pipeline_mode<synchronous>, transform_indices = @transform_3, window_bounds = array<i64: 256, 256>}, {pipeline_mode = #tpu.pipeline_mode<synchronous>, transform_indices = @transform_4, window_bounds = array<i64: 2, 1, 128>}, {transform_indices = @transform_5, window_bounds = array<i64: 8, 8, 128>}, {transform_indices = @transform_6, window_bounds = array<i64: 8, 8, 128>}]} {
    %c0_i32 = arith.constant 0 : i32
    %0 = arith.cmpi eq, %arg0, %c0_i32 : i32
    %1 = arith.extui %0 : i1 to i32
    %c0_i32_0 = arith.constant 0 : i32
    %2 = arith.cmpi ne, %1, %c0_i32_0 : i32
    scf.if %2 {
      %cst_147 = arith.constant 0.000000e+00 : f32
      %218 = vector.broadcast %cst_147 : f32 to vector<8x256xf32>
      %c0_148 = arith.constant 0 : index
      %c0_149 = arith.constant 0 : index
      %219 = vector.load %arg8[%c0_148, %c0_149] : memref<8x256xf32, #tpu.memory_space<vmem>>, vector<8x256xf32>
      tpu.vector_store %arg8[%c0_148, %c0_149], %218 {strides = array<i32>} : memref<8x256xf32, #tpu.memory_space<vmem>>, vector<8x256xf32>,
    } else {
    }
    %c0 = arith.constant 0 : index
    %c0_1 = arith.constant 0 : index
    %c0_2 = arith.constant 0 : index
    %3 = vector.load %arg1[%c0, %c0_1, %c0_2] : memref<8x8x128xf32, #tpu.memory_space<vmem>>, vector<8x8x128xf32>
    %c0_3 = arith.constant 0 : index
    %c0_4 = arith.constant 0 : index
    %c0_5 = arith.constant 0 : index
    %4 = vector.load %arg2[%c0_3, %c0_4, %c0_5] : memref<8x8x128xf32, #tpu.memory_space<vmem>>, vector<8x8x128xf32>
    %5 = vector.shape_cast %3 : vector<8x8x128xf32> to vector<64x128xf32>
    %6 = vector.shape_cast %4 : vector<8x8x128xf32> to vector<64x128xf32>
    %c0_6 = arith.constant 0 : index
    %c0_7 = arith.constant 0 : index
    %c0_8 = arith.constant 0 : index
    %7 = vector.load %arg3[%c0_6, %c0_7, %c0_8] : memref<2x128x128xf32, #tpu.memory_space<vmem>>, vector<1x128x128xf32>
    %8 = vector.shape_cast %7 : vector<1x128x128xf32> to vector<128x128xf32>
    %cst = arith.constant dense<0.000000e+00> : vector<64x128xf32>
    %9 = tpu.matmul %5, %8, %cst {dimension_numbers = #tpu.dot_dimension_numbers<[1], [0], [0], [1], [0, 0, 1, 1], [], []>} : vector<64x128xf32>, vector<128x128xf32>, vector<64x128xf32> -> vector<64x128xf32>
    %c0_9 = arith.constant 0 : index
    %c0_10 = arith.constant 0 : index
    %c0_11 = arith.constant 0 : index
    %10 = vector.load %arg5[%c0_9, %c0_10, %c0_11] : memref<2x1x128xf32, #tpu.memory_space<vmem>>, vector<1x1x128xf32>
    %11 = vector.shape_cast %10 : vector<1x1x128xf32> to vector<1x128xf32>
    %12 = vector.broadcast %11 : vector<1x128xf32> to vector<64x128xf32>
    %13 = arith.addf %9, %12 : vector<64x128xf32>
    %14 = vector.shape_cast %13 : vector<64x128xf32> to vector<8x8x128xf32>
    %c0_12 = arith.constant 0 : index
    %c0_13 = arith.constant 0 : index
    %c0_14 = arith.constant 0 : index
    %15 = vector.load %arg9[%c0_12, %c0_13, %c0_14] : memref<8x8x128xf32, #tpu.memory_space<vmem>>, vector<8x8x128xf32>
    tpu.vector_store %arg9[%c0_12, %c0_13, %c0_14], %14 {strides = array<i32>} : memref<8x8x128xf32, #tpu.memory_space<vmem>>, vector<8x8x128xf32>,
    %c1 = arith.constant 1 : index
    %c0_15 = arith.constant 0 : index
    %c0_16 = arith.constant 0 : index
    %16 = vector.load %arg3[%c1, %c0_15, %c0_16] : memref<2x128x128xf32, #tpu.memory_space<vmem>>, vector<1x128x128xf32>
    %17 = vector.shape_cast %16 : vector<1x128x128xf32> to vector<128x128xf32>
    %cst_17 = arith.constant dense<0.000000e+00> : vector<64x128xf32>
    %18 = tpu.matmul %6, %17, %cst_17 {dimension_numbers = #tpu.dot_dimension_numbers<[1], [0], [0], [1], [0, 0, 1, 1], [], []>} : vector<64x128xf32>, vector<128x128xf32>, vector<64x128xf32> -> vector<64x128xf32>
    %c1_18 = arith.constant 1 : index
    %c0_19 = arith.constant 0 : index
    %c0_20 = arith.constant 0 : index
    %19 = vector.load %arg5[%c1_18, %c0_19, %c0_20] : memref<2x1x128xf32, #tpu.memory_space<vmem>>, vector<1x1x128xf32>
    %20 = vector.shape_cast %19 : vector<1x1x128xf32> to vector<1x128xf32>
    %21 = vector.broadcast %20 : vector<1x128xf32> to vector<64x128xf32>
    %22 = arith.addf %18, %21 : vector<64x128xf32>
    %23 = vector.shape_cast %22 : vector<64x128xf32> to vector<8x8x128xf32>
    %c0_21 = arith.constant 0 : index
    %c0_22 = arith.constant 0 : index
    %c0_23 = arith.constant 0 : index
    %24 = vector.load %arg10[%c0_21, %c0_22, %c0_23] : memref<8x8x128xf32, #tpu.memory_space<vmem>>, vector<8x8x128xf32>
    tpu.vector_store %arg10[%c0_21, %c0_22, %c0_23], %23 {strides = array<i32>} : memref<8x8x128xf32, #tpu.memory_space<vmem>>, vector<8x8x128xf32>,
    %c0_24 = arith.constant 0 : index
    %c0_25 = arith.constant 0 : index
    %25 = vector.load %arg4[%c0_24, %c0_25] : memref<256x256xf32, #tpu.memory_space<vmem>>, vector<256x256xf32>
    %c0_i32_26 = arith.constant 0 : i32
    %26 = arith.index_cast %c0_i32_26 : i32 to index
    %c0_27 = arith.constant 0 : index
    %c0_28 = arith.constant 0 : index
    %27 = vector.load %arg9[%26, %c0_27, %c0_28] : memref<8x8x128xf32, #tpu.memory_space<vmem>>, vector<1x8x128xf32>
    %28 = vector.shape_cast %27 : vector<1x8x128xf32> to vector<8x128xf32>
    %c7_i32 = arith.constant 7 : i32
    %29 = arith.subi %c7_i32, %c0_i32_26 : i32
    %30 = arith.index_cast %29 : i32 to index
    %c0_29 = arith.constant 0 : index
    %c0_30 = arith.constant 0 : index
    %31 = vector.load %arg10[%30, %c0_29, %c0_30] : memref<8x8x128xf32, #tpu.memory_space<vmem>>, vector<1x8x128xf32>
    %32 = vector.shape_cast %31 : vector<1x8x128xf32> to vector<8x128xf32>
    %33 = tpu.concatenate %28, %32 in 1 : vector<8x128xf32>, vector<8x128xf32> -> vector<8x256xf32>
    %c0_31 = arith.constant 0 : index
    %c0_32 = arith.constant 0 : index
    %34 = vector.load %arg8[%c0_31, %c0_32] : memref<8x256xf32, #tpu.memory_space<vmem>>, vector<8x256xf32>
    %cst_33 = arith.constant dense<0.000000e+00> : vector<8x256xf32>
    %35 = tpu.matmul %34, %25, %cst_33 {dimension_numbers = #tpu.dot_dimension_numbers<[1], [0], [0], [1], [0, 0, 1, 1], [], []>} : vector<8x256xf32>, vector<256x256xf32>, vector<8x256xf32> -> vector<8x256xf32>
    %36 = arith.addf %33, %35 : vector<8x256xf32>
    %37 = math.tanh %36 : vector<8x256xf32>
    %c0_34 = arith.constant 0 : index
    %c0_35 = arith.constant 0 : index
    %38 = vector.load %arg8[%c0_34, %c0_35] : memref<8x256xf32, #tpu.memory_space<vmem>>, vector<8x256xf32>
    tpu.vector_store %arg8[%c0_34, %c0_35], %37 {strides = array<i32>} : memref<8x256xf32, #tpu.memory_space<vmem>>, vector<8x256xf32>,
    %39 = vector.extract_strided_slice %37 {offsets = [0, 0], sizes = [8, 128], strides = [1, 1]} : vector<8x256xf32> to vector<8x128xf32>
    %40 = arith.index_cast %c0_i32_26 : i32 to index
    %c0_36 = arith.constant 0 : index
    %c0_37 = arith.constant 0 : index
    %41 = vector.load %arg6[%40, %c0_36, %c0_37] : memref<8x8x128xf32, #tpu.memory_space<vmem>>, vector<1x8x128xf32>
    %42 = vector.shape_cast %41 : vector<1x8x128xf32> to vector<8x128xf32>
    %43 = vector.shape_cast %39 : vector<8x128xf32> to vector<1x8x128xf32>
    tpu.vector_store %arg6[%40, %c0_36, %c0_37], %43 {strides = array<i32>} : memref<8x8x128xf32, #tpu.memory_space<vmem>>, vector<1x8x128xf32>,
    %44 = vector.extract_strided_slice %37 {offsets = [0, 128], sizes = [8, 128], strides = [1, 1]} : vector<8x256xf32> to vector<8x128xf32>
    %c7_i32_38 = arith.constant 7 : i32
    %45 = arith.subi %c7_i32_38, %c0_i32_26 : i32
    %46 = arith.index_cast %45 : i32 to index
    %c0_39 = arith.constant 0 : index
    %c0_40 = arith.constant 0 : index
    %47 = vector.load %arg7[%46, %c0_39, %c0_40] : memref<8x8x128xf32, #tpu.memory_space<vmem>>, vector<1x8x128xf32>
    %48 = vector.shape_cast %47 : vector<1x8x128xf32> to vector<8x128xf32>
    %49 = vector.shape_cast %44 : vector<8x128xf32> to vector<1x8x128xf32>
    tpu.vector_store %arg7[%46, %c0_39, %c0_40], %49 {strides = array<i32>} : memref<8x8x128xf32, #tpu.memory_space<vmem>>, vector<1x8x128xf32>,
    %c1_i32 = arith.constant 1 : i32
    %50 = arith.index_cast %c1_i32 : i32 to index
    %c0_41 = arith.constant 0 : index
    %c0_42 = arith.constant 0 : index
    %51 = vector.load %arg9[%50, %c0_41, %c0_42] : memref<8x8x128xf32, #tpu.memory_space<vmem>>, vector<1x8x128xf32>
    %52 = vector.shape_cast %51 : vector<1x8x128xf32> to vector<8x128xf32>
    %c7_i32_43 = arith.constant 7 : i32
    %53 = arith.subi %c7_i32_43, %c1_i32 : i32
    %54 = arith.index_cast %53 : i32 to index
    %c0_44 = arith.constant 0 : index
    %c0_45 = arith.constant 0 : index
    %55 = vector.load %arg10[%54, %c0_44, %c0_45] : memref<8x8x128xf32, #tpu.memory_space<vmem>>, vector<1x8x128xf32>
    %56 = vector.shape_cast %55 : vector<1x8x128xf32> to vector<8x128xf32>
    %57 = tpu.concatenate %52, %56 in 1 : vector<8x128xf32>, vector<8x128xf32> -> vector<8x256xf32>
    %c0_46 = arith.constant 0 : index
    %c0_47 = arith.constant 0 : index
    %58 = vector.load %arg8[%c0_46, %c0_47] : memref<8x256xf32, #tpu.memory_space<vmem>>, vector<8x256xf32>
    %cst_48 = arith.constant dense<0.000000e+00> : vector<8x256xf32>
    %59 = tpu.matmul %58, %25, %cst_48 {dimension_numbers = #tpu.dot_dimension_numbers<[1], [0], [0], [1], [0, 0, 1, 1], [], []>} : vector<8x256xf32>, vector<256x256xf32>, vector<8x256xf32> -> vector<8x256xf32>
    %60 = arith.addf %57, %59 : vector<8x256xf32>
    %61 = math.tanh %60 : vector<8x256xf32>
    %c0_49 = arith.constant 0 : index
    %c0_50 = arith.constant 0 : index
    %62 = vector.load %arg8[%c0_49, %c0_50] : memref<8x256xf32, #tpu.memory_space<vmem>>, vector<8x256xf32>
    tpu.vector_store %arg8[%c0_49, %c0_50], %61 {strides = array<i32>} : memref<8x256xf32, #tpu.memory_space<vmem>>, vector<8x256xf32>,
    %63 = vector.extract_strided_slice %61 {offsets = [0, 0], sizes = [8, 128], strides = [1, 1]} : vector<8x256xf32> to vector<8x128xf32>
    %64 = arith.index_cast %c1_i32 : i32 to index
    %c0_51 = arith.constant 0 : index
    %c0_52 = arith.constant 0 : index
    %65 = vector.load %arg6[%64, %c0_51, %c0_52] : memref<8x8x128xf32, #tpu.memory_space<vmem>>, vector<1x8x128xf32>
    %66 = vector.shape_cast %65 : vector<1x8x128xf32> to vector<8x128xf32>
    %67 = vector.shape_cast %63 : vector<8x128xf32> to vector<1x8x128xf32>
    tpu.vector_store %arg6[%64, %c0_51, %c0_52], %67 {strides = array<i32>} : memref<8x8x128xf32, #tpu.memory_space<vmem>>, vector<1x8x128xf32>,
    %68 = vector.extract_strided_slice %61 {offsets = [0, 128], sizes = [8, 128], strides = [1, 1]} : vector<8x256xf32> to vector<8x128xf32>
    %c7_i32_53 = arith.constant 7 : i32
    %69 = arith.subi %c7_i32_53, %c1_i32 : i32
    %70 = arith.index_cast %69 : i32 to index
    %c0_54 = arith.constant 0 : index
    %c0_55 = arith.constant 0 : index
    %71 = vector.load %arg7[%70, %c0_54, %c0_55] : memref<8x8x128xf32, #tpu.memory_space<vmem>>, vector<1x8x128xf32>
    %72 = vector.shape_cast %71 : vector<1x8x128xf32> to vector<8x128xf32>
    %73 = vector.shape_cast %68 : vector<8x128xf32> to vector<1x8x128xf32>
    tpu.vector_store %arg7[%70, %c0_54, %c0_55], %73 {strides = array<i32>} : memref<8x8x128xf32, #tpu.memory_space<vmem>>, vector<1x8x128xf32>,
    %c2_i32 = arith.constant 2 : i32
    %74 = arith.index_cast %c2_i32 : i32 to index
    %c0_56 = arith.constant 0 : index
    %c0_57 = arith.constant 0 : index
    %75 = vector.load %arg9[%74, %c0_56, %c0_57] : memref<8x8x128xf32, #tpu.memory_space<vmem>>, vector<1x8x128xf32>
    %76 = vector.shape_cast %75 : vector<1x8x128xf32> to vector<8x128xf32>
    %c7_i32_58 = arith.constant 7 : i32
    %77 = arith.subi %c7_i32_58, %c2_i32 : i32
    %78 = arith.index_cast %77 : i32 to index
    %c0_59 = arith.constant 0 : index
    %c0_60 = arith.constant 0 : index
    %79 = vector.load %arg10[%78, %c0_59, %c0_60] : memref<8x8x128xf32, #tpu.memory_space<vmem>>, vector<1x8x128xf32>
    %80 = vector.shape_cast %79 : vector<1x8x128xf32> to vector<8x128xf32>
    %81 = tpu.concatenate %76, %80 in 1 : vector<8x128xf32>, vector<8x128xf32> -> vector<8x256xf32>
    %c0_61 = arith.constant 0 : index
    %c0_62 = arith.constant 0 : index
    %82 = vector.load %arg8[%c0_61, %c0_62] : memref<8x256xf32, #tpu.memory_space<vmem>>, vector<8x256xf32>
    %cst_63 = arith.constant dense<0.000000e+00> : vector<8x256xf32>
    %83 = tpu.matmul %82, %25, %cst_63 {dimension_numbers = #tpu.dot_dimension_numbers<[1], [0], [0], [1], [0, 0, 1, 1], [], []>} : vector<8x256xf32>, vector<256x256xf32>, vector<8x256xf32> -> vector<8x256xf32>
    %84 = arith.addf %81, %83 : vector<8x256xf32>
    %85 = math.tanh %84 : vector<8x256xf32>
    %c0_64 = arith.constant 0 : index
    %c0_65 = arith.constant 0 : index
    %86 = vector.load %arg8[%c0_64, %c0_65] : memref<8x256xf32, #tpu.memory_space<vmem>>, vector<8x256xf32>
    tpu.vector_store %arg8[%c0_64, %c0_65], %85 {strides = array<i32>} : memref<8x256xf32, #tpu.memory_space<vmem>>, vector<8x256xf32>,
    %87 = vector.extract_strided_slice %85 {offsets = [0, 0], sizes = [8, 128], strides = [1, 1]} : vector<8x256xf32> to vector<8x128xf32>
    %88 = arith.index_cast %c2_i32 : i32 to index
    %c0_66 = arith.constant 0 : index
    %c0_67 = arith.constant 0 : index
    %89 = vector.load %arg6[%88, %c0_66, %c0_67] : memref<8x8x128xf32, #tpu.memory_space<vmem>>, vector<1x8x128xf32>
    %90 = vector.shape_cast %89 : vector<1x8x128xf32> to vector<8x128xf32>
    %91 = vector.shape_cast %87 : vector<8x128xf32> to vector<1x8x128xf32>
    tpu.vector_store %arg6[%88, %c0_66, %c0_67], %91 {strides = array<i32>} : memref<8x8x128xf32, #tpu.memory_space<vmem>>, vector<1x8x128xf32>,
    %92 = vector.extract_strided_slice %85 {offsets = [0, 128], sizes = [8, 128], strides = [1, 1]} : vector<8x256xf32> to vector<8x128xf32>
    %c7_i32_68 = arith.constant 7 : i32
    %93 = arith.subi %c7_i32_68, %c2_i32 : i32
    %94 = arith.index_cast %93 : i32 to index
    %c0_69 = arith.constant 0 : index
    %c0_70 = arith.constant 0 : index
    %95 = vector.load %arg7[%94, %c0_69, %c0_70] : memref<8x8x128xf32, #tpu.memory_space<vmem>>, vector<1x8x128xf32>
    %96 = vector.shape_cast %95 : vector<1x8x128xf32> to vector<8x128xf32>
    %97 = vector.shape_cast %92 : vector<8x128xf32> to vector<1x8x128xf32>
    tpu.vector_store %arg7[%94, %c0_69, %c0_70], %97 {strides = array<i32>} : memref<8x8x128xf32, #tpu.memory_space<vmem>>, vector<1x8x128xf32>,
    %c3_i32 = arith.constant 3 : i32
    %98 = arith.index_cast %c3_i32 : i32 to index
    %c0_71 = arith.constant 0 : index
    %c0_72 = arith.constant 0 : index
    %99 = vector.load %arg9[%98, %c0_71, %c0_72] : memref<8x8x128xf32, #tpu.memory_space<vmem>>, vector<1x8x128xf32>
    %100 = vector.shape_cast %99 : vector<1x8x128xf32> to vector<8x128xf32>
    %c7_i32_73 = arith.constant 7 : i32
    %101 = arith.subi %c7_i32_73, %c3_i32 : i32
    %102 = arith.index_cast %101 : i32 to index
    %c0_74 = arith.constant 0 : index
    %c0_75 = arith.constant 0 : index
    %103 = vector.load %arg10[%102, %c0_74, %c0_75] : memref<8x8x128xf32, #tpu.memory_space<vmem>>, vector<1x8x128xf32>
    %104 = vector.shape_cast %103 : vector<1x8x128xf32> to vector<8x128xf32>
    %105 = tpu.concatenate %100, %104 in 1 : vector<8x128xf32>, vector<8x128xf32> -> vector<8x256xf32>
    %c0_76 = arith.constant 0 : index
    %c0_77 = arith.constant 0 : index
    %106 = vector.load %arg8[%c0_76, %c0_77] : memref<8x256xf32, #tpu.memory_space<vmem>>, vector<8x256xf32>
    %cst_78 = arith.constant dense<0.000000e+00> : vector<8x256xf32>
    %107 = tpu.matmul %106, %25, %cst_78 {dimension_numbers = #tpu.dot_dimension_numbers<[1], [0], [0], [1], [0, 0, 1, 1], [], []>} : vector<8x256xf32>, vector<256x256xf32>, vector<8x256xf32> -> vector<8x256xf32>
    %108 = arith.addf %105, %107 : vector<8x256xf32>
    %109 = math.tanh %108 : vector<8x256xf32>
    %c0_79 = arith.constant 0 : index
    %c0_80 = arith.constant 0 : index
    %110 = vector.load %arg8[%c0_79, %c0_80] : memref<8x256xf32, #tpu.memory_space<vmem>>, vector<8x256xf32>
    tpu.vector_store %arg8[%c0_79, %c0_80], %109 {strides = array<i32>} : memref<8x256xf32, #tpu.memory_space<vmem>>, vector<8x256xf32>,
    %111 = vector.extract_strided_slice %109 {offsets = [0, 0], sizes = [8, 128], strides = [1, 1]} : vector<8x256xf32> to vector<8x128xf32>
    %112 = arith.index_cast %c3_i32 : i32 to index
    %c0_81 = arith.constant 0 : index
    %c0_82 = arith.constant 0 : index
    %113 = vector.load %arg6[%112, %c0_81, %c0_82] : memref<8x8x128xf32, #tpu.memory_space<vmem>>, vector<1x8x128xf32>
    %114 = vector.shape_cast %113 : vector<1x8x128xf32> to vector<8x128xf32>
    %115 = vector.shape_cast %111 : vector<8x128xf32> to vector<1x8x128xf32>
    tpu.vector_store %arg6[%112, %c0_81, %c0_82], %115 {strides = array<i32>} : memref<8x8x128xf32, #tpu.memory_space<vmem>>, vector<1x8x128xf32>,
    %116 = vector.extract_strided_slice %109 {offsets = [0, 128], sizes = [8, 128], strides = [1, 1]} : vector<8x256xf32> to vector<8x128xf32>
    %c7_i32_83 = arith.constant 7 : i32
    %117 = arith.subi %c7_i32_83, %c3_i32 : i32
    %118 = arith.index_cast %117 : i32 to index
    %c0_84 = arith.constant 0 : index
    %c0_85 = arith.constant 0 : index
    %119 = vector.load %arg7[%118, %c0_84, %c0_85] : memref<8x8x128xf32, #tpu.memory_space<vmem>>, vector<1x8x128xf32>
    %120 = vector.shape_cast %119 : vector<1x8x128xf32> to vector<8x128xf32>
    %121 = vector.shape_cast %116 : vector<8x128xf32> to vector<1x8x128xf32>
    tpu.vector_store %arg7[%118, %c0_84, %c0_85], %121 {strides = array<i32>} : memref<8x8x128xf32, #tpu.memory_space<vmem>>, vector<1x8x128xf32>,
    %c4_i32 = arith.constant 4 : i32
    %122 = arith.index_cast %c4_i32 : i32 to index
    %c0_86 = arith.constant 0 : index
    %c0_87 = arith.constant 0 : index
    %123 = vector.load %arg9[%122, %c0_86, %c0_87] : memref<8x8x128xf32, #tpu.memory_space<vmem>>, vector<1x8x128xf32>
    %124 = vector.shape_cast %123 : vector<1x8x128xf32> to vector<8x128xf32>
    %c7_i32_88 = arith.constant 7 : i32
    %125 = arith.subi %c7_i32_88, %c4_i32 : i32
    %126 = arith.index_cast %125 : i32 to index
    %c0_89 = arith.constant 0 : index
    %c0_90 = arith.constant 0 : index
    %127 = vector.load %arg10[%126, %c0_89, %c0_90] : memref<8x8x128xf32, #tpu.memory_space<vmem>>, vector<1x8x128xf32>
    %128 = vector.shape_cast %127 : vector<1x8x128xf32> to vector<8x128xf32>
    %129 = tpu.concatenate %124, %128 in 1 : vector<8x128xf32>, vector<8x128xf32> -> vector<8x256xf32>
    %c0_91 = arith.constant 0 : index
    %c0_92 = arith.constant 0 : index
    %130 = vector.load %arg8[%c0_91, %c0_92] : memref<8x256xf32, #tpu.memory_space<vmem>>, vector<8x256xf32>
    %cst_93 = arith.constant dense<0.000000e+00> : vector<8x256xf32>
    %131 = tpu.matmul %130, %25, %cst_93 {dimension_numbers = #tpu.dot_dimension_numbers<[1], [0], [0], [1], [0, 0, 1, 1], [], []>} : vector<8x256xf32>, vector<256x256xf32>, vector<8x256xf32> -> vector<8x256xf32>
    %132 = arith.addf %129, %131 : vector<8x256xf32>
    %133 = math.tanh %132 : vector<8x256xf32>
    %c0_94 = arith.constant 0 : index
    %c0_95 = arith.constant 0 : index
    %134 = vector.load %arg8[%c0_94, %c0_95] : memref<8x256xf32, #tpu.memory_space<vmem>>, vector<8x256xf32>
    tpu.vector_store %arg8[%c0_94, %c0_95], %133 {strides = array<i32>} : memref<8x256xf32, #tpu.memory_space<vmem>>, vector<8x256xf32>,
    %135 = vector.extract_strided_slice %133 {offsets = [0, 0], sizes = [8, 128], strides = [1, 1]} : vector<8x256xf32> to vector<8x128xf32>
    %136 = arith.index_cast %c4_i32 : i32 to index
    %c0_96 = arith.constant 0 : index
    %c0_97 = arith.constant 0 : index
    %137 = vector.load %arg6[%136, %c0_96, %c0_97] : memref<8x8x128xf32, #tpu.memory_space<vmem>>, vector<1x8x128xf32>
    %138 = vector.shape_cast %137 : vector<1x8x128xf32> to vector<8x128xf32>
    %139 = vector.shape_cast %135 : vector<8x128xf32> to vector<1x8x128xf32>
    tpu.vector_store %arg6[%136, %c0_96, %c0_97], %139 {strides = array<i32>} : memref<8x8x128xf32, #tpu.memory_space<vmem>>, vector<1x8x128xf32>,
    %140 = vector.extract_strided_slice %133 {offsets = [0, 128], sizes = [8, 128], strides = [1, 1]} : vector<8x256xf32> to vector<8x128xf32>
    %c7_i32_98 = arith.constant 7 : i32
    %141 = arith.subi %c7_i32_98, %c4_i32 : i32
    %142 = arith.index_cast %141 : i32 to index
    %c0_99 = arith.constant 0 : index
    %c0_100 = arith.constant 0 : index
    %143 = vector.load %arg7[%142, %c0_99, %c0_100] : memref<8x8x128xf32, #tpu.memory_space<vmem>>, vector<1x8x128xf32>
    %144 = vector.shape_cast %143 : vector<1x8x128xf32> to vector<8x128xf32>
    %145 = vector.shape_cast %140 : vector<8x128xf32> to vector<1x8x128xf32>
    tpu.vector_store %arg7[%142, %c0_99, %c0_100], %145 {strides = array<i32>} : memref<8x8x128xf32, #tpu.memory_space<vmem>>, vector<1x8x128xf32>,
    %c5_i32 = arith.constant 5 : i32
    %146 = arith.index_cast %c5_i32 : i32 to index
    %c0_101 = arith.constant 0 : index
    %c0_102 = arith.constant 0 : index
    %147 = vector.load %arg9[%146, %c0_101, %c0_102] : memref<8x8x128xf32, #tpu.memory_space<vmem>>, vector<1x8x128xf32>
    %148 = vector.shape_cast %147 : vector<1x8x128xf32> to vector<8x128xf32>
    %c7_i32_103 = arith.constant 7 : i32
    %149 = arith.subi %c7_i32_103, %c5_i32 : i32
    %150 = arith.index_cast %149 : i32 to index
    %c0_104 = arith.constant 0 : index
    %c0_105 = arith.constant 0 : index
    %151 = vector.load %arg10[%150, %c0_104, %c0_105] : memref<8x8x128xf32, #tpu.memory_space<vmem>>, vector<1x8x128xf32>
    %152 = vector.shape_cast %151 : vector<1x8x128xf32> to vector<8x128xf32>
    %153 = tpu.concatenate %148, %152 in 1 : vector<8x128xf32>, vector<8x128xf32> -> vector<8x256xf32>
    %c0_106 = arith.constant 0 : index
    %c0_107 = arith.constant 0 : index
    %154 = vector.load %arg8[%c0_106, %c0_107] : memref<8x256xf32, #tpu.memory_space<vmem>>, vector<8x256xf32>
    %cst_108 = arith.constant dense<0.000000e+00> : vector<8x256xf32>
    %155 = tpu.matmul %154, %25, %cst_108 {dimension_numbers = #tpu.dot_dimension_numbers<[1], [0], [0], [1], [0, 0, 1, 1], [], []>} : vector<8x256xf32>, vector<256x256xf32>, vector<8x256xf32> -> vector<8x256xf32>
    %156 = arith.addf %153, %155 : vector<8x256xf32>
    %157 = math.tanh %156 : vector<8x256xf32>
    %c0_109 = arith.constant 0 : index
    %c0_110 = arith.constant 0 : index
    %158 = vector.load %arg8[%c0_109, %c0_110] : memref<8x256xf32, #tpu.memory_space<vmem>>, vector<8x256xf32>
    tpu.vector_store %arg8[%c0_109, %c0_110], %157 {strides = array<i32>} : memref<8x256xf32, #tpu.memory_space<vmem>>, vector<8x256xf32>,
    %159 = vector.extract_strided_slice %157 {offsets = [0, 0], sizes = [8, 128], strides = [1, 1]} : vector<8x256xf32> to vector<8x128xf32>
    %160 = arith.index_cast %c5_i32 : i32 to index
    %c0_111 = arith.constant 0 : index
    %c0_112 = arith.constant 0 : index
    %161 = vector.load %arg6[%160, %c0_111, %c0_112] : memref<8x8x128xf32, #tpu.memory_space<vmem>>, vector<1x8x128xf32>
    %162 = vector.shape_cast %161 : vector<1x8x128xf32> to vector<8x128xf32>
    %163 = vector.shape_cast %159 : vector<8x128xf32> to vector<1x8x128xf32>
    tpu.vector_store %arg6[%160, %c0_111, %c0_112], %163 {strides = array<i32>} : memref<8x8x128xf32, #tpu.memory_space<vmem>>, vector<1x8x128xf32>,
    %164 = vector.extract_strided_slice %157 {offsets = [0, 128], sizes = [8, 128], strides = [1, 1]} : vector<8x256xf32> to vector<8x128xf32>
    %c7_i32_113 = arith.constant 7 : i32
    %165 = arith.subi %c7_i32_113, %c5_i32 : i32
    %166 = arith.index_cast %165 : i32 to index
    %c0_114 = arith.constant 0 : index
    %c0_115 = arith.constant 0 : index
    %167 = vector.load %arg7[%166, %c0_114, %c0_115] : memref<8x8x128xf32, #tpu.memory_space<vmem>>, vector<1x8x128xf32>
    %168 = vector.shape_cast %167 : vector<1x8x128xf32> to vector<8x128xf32>
    %169 = vector.shape_cast %164 : vector<8x128xf32> to vector<1x8x128xf32>
    tpu.vector_store %arg7[%166, %c0_114, %c0_115], %169 {strides = array<i32>} : memref<8x8x128xf32, #tpu.memory_space<vmem>>, vector<1x8x128xf32>,
    %c6_i32 = arith.constant 6 : i32
    %170 = arith.index_cast %c6_i32 : i32 to index
    %c0_116 = arith.constant 0 : index
    %c0_117 = arith.constant 0 : index
    %171 = vector.load %arg9[%170, %c0_116, %c0_117] : memref<8x8x128xf32, #tpu.memory_space<vmem>>, vector<1x8x128xf32>
    %172 = vector.shape_cast %171 : vector<1x8x128xf32> to vector<8x128xf32>
    %c7_i32_118 = arith.constant 7 : i32
    %173 = arith.subi %c7_i32_118, %c6_i32 : i32
    %174 = arith.index_cast %173 : i32 to index
    %c0_119 = arith.constant 0 : index
    %c0_120 = arith.constant 0 : index
    %175 = vector.load %arg10[%174, %c0_119, %c0_120] : memref<8x8x128xf32, #tpu.memory_space<vmem>>, vector<1x8x128xf32>
    %176 = vector.shape_cast %175 : vector<1x8x128xf32> to vector<8x128xf32>
    %177 = tpu.concatenate %172, %176 in 1 : vector<8x128xf32>, vector<8x128xf32> -> vector<8x256xf32>
    %c0_121 = arith.constant 0 : index
    %c0_122 = arith.constant 0 : index
    %178 = vector.load %arg8[%c0_121, %c0_122] : memref<8x256xf32, #tpu.memory_space<vmem>>, vector<8x256xf32>
    %cst_123 = arith.constant dense<0.000000e+00> : vector<8x256xf32>
    %179 = tpu.matmul %178, %25, %cst_123 {dimension_numbers = #tpu.dot_dimension_numbers<[1], [0], [0], [1], [0, 0, 1, 1], [], []>} : vector<8x256xf32>, vector<256x256xf32>, vector<8x256xf32> -> vector<8x256xf32>
    %180 = arith.addf %177, %179 : vector<8x256xf32>
    %181 = math.tanh %180 : vector<8x256xf32>
    %c0_124 = arith.constant 0 : index
    %c0_125 = arith.constant 0 : index
    %182 = vector.load %arg8[%c0_124, %c0_125] : memref<8x256xf32, #tpu.memory_space<vmem>>, vector<8x256xf32>
    tpu.vector_store %arg8[%c0_124, %c0_125], %181 {strides = array<i32>} : memref<8x256xf32, #tpu.memory_space<vmem>>, vector<8x256xf32>,
    %183 = vector.extract_strided_slice %181 {offsets = [0, 0], sizes = [8, 128], strides = [1, 1]} : vector<8x256xf32> to vector<8x128xf32>
    %184 = arith.index_cast %c6_i32 : i32 to index
    %c0_126 = arith.constant 0 : index
    %c0_127 = arith.constant 0 : index
    %185 = vector.load %arg6[%184, %c0_126, %c0_127] : memref<8x8x128xf32, #tpu.memory_space<vmem>>, vector<1x8x128xf32>
    %186 = vector.shape_cast %185 : vector<1x8x128xf32> to vector<8x128xf32>
    %187 = vector.shape_cast %183 : vector<8x128xf32> to vector<1x8x128xf32>
    tpu.vector_store %arg6[%184, %c0_126, %c0_127], %187 {strides = array<i32>} : memref<8x8x128xf32, #tpu.memory_space<vmem>>, vector<1x8x128xf32>,
    %188 = vector.extract_strided_slice %181 {offsets = [0, 128], sizes = [8, 128], strides = [1, 1]} : vector<8x256xf32> to vector<8x128xf32>
    %c7_i32_128 = arith.constant 7 : i32
    %189 = arith.subi %c7_i32_128, %c6_i32 : i32
    %190 = arith.index_cast %189 : i32 to index
    %c0_129 = arith.constant 0 : index
    %c0_130 = arith.constant 0 : index
    %191 = vector.load %arg7[%190, %c0_129, %c0_130] : memref<8x8x128xf32, #tpu.memory_space<vmem>>, vector<1x8x128xf32>
    %192 = vector.shape_cast %191 : vector<1x8x128xf32> to vector<8x128xf32>
    %193 = vector.shape_cast %188 : vector<8x128xf32> to vector<1x8x128xf32>
    tpu.vector_store %arg7[%190, %c0_129, %c0_130], %193 {strides = array<i32>} : memref<8x8x128xf32, #tpu.memory_space<vmem>>, vector<1x8x128xf32>,
    %c7_i32_131 = arith.constant 7 : i32
    %194 = arith.index_cast %c7_i32_131 : i32 to index
    %c0_132 = arith.constant 0 : index
    %c0_133 = arith.constant 0 : index
    %195 = vector.load %arg9[%194, %c0_132, %c0_133] : memref<8x8x128xf32, #tpu.memory_space<vmem>>, vector<1x8x128xf32>
    %196 = vector.shape_cast %195 : vector<1x8x128xf32> to vector<8x128xf32>
    %c7_i32_134 = arith.constant 7 : i32
    %197 = arith.subi %c7_i32_134, %c7_i32_131 : i32
    %198 = arith.index_cast %197 : i32 to index
    %c0_135 = arith.constant 0 : index
    %c0_136 = arith.constant 0 : index
    %199 = vector.load %arg10[%198, %c0_135, %c0_136] : memref<8x8x128xf32, #tpu.memory_space<vmem>>, vector<1x8x128xf32>
    %200 = vector.shape_cast %199 : vector<1x8x128xf32> to vector<8x128xf32>
    %201 = tpu.concatenate %196, %200 in 1 : vector<8x128xf32>, vector<8x128xf32> -> vector<8x256xf32>
    %c0_137 = arith.constant 0 : index
    %c0_138 = arith.constant 0 : index
    %202 = vector.load %arg8[%c0_137, %c0_138] : memref<8x256xf32, #tpu.memory_space<vmem>>, vector<8x256xf32>
    %cst_139 = arith.constant dense<0.000000e+00> : vector<8x256xf32>
    %203 = tpu.matmul %202, %25, %cst_139 {dimension_numbers = #tpu.dot_dimension_numbers<[1], [0], [0], [1], [0, 0, 1, 1], [], []>} : vector<8x256xf32>, vector<256x256xf32>, vector<8x256xf32> -> vector<8x256xf32>
    %204 = arith.addf %201, %203 : vector<8x256xf32>
    %205 = math.tanh %204 : vector<8x256xf32>
    %c0_140 = arith.constant 0 : index
    %c0_141 = arith.constant 0 : index
    %206 = vector.load %arg8[%c0_140, %c0_141] : memref<8x256xf32, #tpu.memory_space<vmem>>, vector<8x256xf32>
    tpu.vector_store %arg8[%c0_140, %c0_141], %205 {strides = array<i32>} : memref<8x256xf32, #tpu.memory_space<vmem>>, vector<8x256xf32>,
    %207 = vector.extract_strided_slice %205 {offsets = [0, 0], sizes = [8, 128], strides = [1, 1]} : vector<8x256xf32> to vector<8x128xf32>
    %208 = arith.index_cast %c7_i32_131 : i32 to index
    %c0_142 = arith.constant 0 : index
    %c0_143 = arith.constant 0 : index
    %209 = vector.load %arg6[%208, %c0_142, %c0_143] : memref<8x8x128xf32, #tpu.memory_space<vmem>>, vector<1x8x128xf32>
    %210 = vector.shape_cast %209 : vector<1x8x128xf32> to vector<8x128xf32>
    %211 = vector.shape_cast %207 : vector<8x128xf32> to vector<1x8x128xf32>
    tpu.vector_store %arg6[%208, %c0_142, %c0_143], %211 {strides = array<i32>} : memref<8x8x128xf32, #tpu.memory_space<vmem>>, vector<1x8x128xf32>,
    %212 = vector.extract_strided_slice %205 {offsets = [0, 128], sizes = [8, 128], strides = [1, 1]} : vector<8x256xf32> to vector<8x128xf32>
    %c7_i32_144 = arith.constant 7 : i32
    %213 = arith.subi %c7_i32_144, %c7_i32_131 : i32
    %214 = arith.index_cast %213 : i32 to index
    %c0_145 = arith.constant 0 : index
    %c0_146 = arith.constant 0 : index
    %215 = vector.load %arg7[%214, %c0_145, %c0_146] : memref<8x8x128xf32, #tpu.memory_space<vmem>>, vector<1x8x128xf32>
    %216 = vector.shape_cast %215 : vector<1x8x128xf32> to vector<8x128xf32>
    %217 = vector.shape_cast %212 : vector<8x128xf32> to vector<1x8x128xf32>
    tpu.vector_store %arg7[%214, %c0_145, %c0_146], %217 {strides = array<i32>} : memref<8x8x128xf32, #tpu.memory_space<vmem>>, vector<1x8x128xf32>,
    %c8_i32 = arith.constant 8 : i32
    return
  }
  func.func @transform_0(%arg0: i32) -> (i32, i32, i32) {
    %c0_i32 = arith.constant 0 : i32
    %c0_i32_0 = arith.constant 0 : i32
    %c0_i32_1 = arith.constant 0 : i32
    return %arg0, %c0_i32, %c0_i32_0 : i32, i32, i32
  }
  func.func @transform_1(%arg0: i32) -> (i32, i32, i32) {
    %c0_i32 = arith.constant 0 : i32
    %0 = arith.subi %c0_i32, %arg0 : i32
    %c0_i32_0 = arith.constant 0 : i32
    %c0_i32_1 = arith.constant 0 : i32
    %c0_i32_2 = arith.constant 0 : i32
    return %0, %c0_i32_0, %c0_i32_1 : i32, i32, i32
  }
  func.func @transform_2(%arg0: i32) -> (i32, i32, i32) {
    %c0_i32 = arith.constant 0 : i32
    %c0_i32_0 = arith.constant 0 : i32
    %c0_i32_1 = arith.constant 0 : i32
    %c0_i32_2 = arith.constant 0 : i32
    return %c0_i32, %c0_i32_0, %c0_i32_1 : i32, i32, i32
  }
  func.func @transform_3(%arg0: i32) -> (i32, i32) {
    %c0_i32 = arith.constant 0 : i32
    %c0_i32_0 = arith.constant 0 : i32
    %c0_i32_1 = arith.constant 0 : i32
    return %c0_i32, %c0_i32_0 : i32, i32
  }
  func.func @transform_4(%arg0: i32) -> (i32, i32, i32) {
    %c0_i32 = arith.constant 0 : i32
    %c0_i32_0 = arith.constant 0 : i32
    %c0_i32_1 = arith.constant 0 : i32
    %c0_i32_2 = arith.constant 0 : i32
    return %c0_i32, %c0_i32_0, %c0_i32_1 : i32, i32, i32
  }
  func.func @transform_5(%arg0: i32) -> (i32, i32, i32) {
    %c0_i32 = arith.constant 0 : i32
    %c0_i32_0 = arith.constant 0 : i32
    %c0_i32_1 = arith.constant 0 : i32
    return %arg0, %c0_i32, %c0_i32_0 : i32, i32, i32
  }
  func.func @transform_6(%arg0: i32) -> (i32, i32, i32) {
    %c0_i32 = arith.constant 0 : i32
    %0 = arith.subi %c0_i32, %arg0 : i32
    %c0_i32_0 = arith.constant 0 : i32
    %c0_i32_1 = arith.constant 0 : i32
    %c0_i32_2 = arith.constant 0 : i32
    return %0, %c0_i32_0, %c0_i32_1 : i32, i32, i32
  }
}

module attributes {stable_mosaic.version = 11 : i64} {
  func.func @_fc_kernel(%arg0: i32, %arg1: memref<64x128xf32, #tpu.memory_space<vmem>>, %arg2: memref<64x128xf32, #tpu.memory_space<vmem>>, %arg3: memref<256x128xf32, #tpu.memory_space<vmem>>, %arg4: memref<1x128xf32, #tpu.memory_space<vmem>>, %arg5: memref<64x128xf32, #tpu.memory_space<vmem>>) attributes {dimension_semantics = [#tpu.dimension_semantics<parallel>], iteration_bounds = array<i64: 1>, scalar_prefetch = 0 : i64, scratch_operands = 0 : i64, tpu.core_type = #tpu.core_type<tc>, window_params = [{transform_indices = @transform_0, window_bounds = array<i64: 64, 128>}, {transform_indices = @transform_1, window_bounds = array<i64: 64, 128>}, {pipeline_mode = #tpu.pipeline_mode<synchronous>, transform_indices = @transform_2, window_bounds = array<i64: 256, 128>}, {pipeline_mode = #tpu.pipeline_mode<synchronous>, transform_indices = @transform_3, window_bounds = array<i64: 1, 128>}, {transform_indices = @transform_4, window_bounds = array<i64: 64, 128>}]} {
    %c0 = arith.constant 0 : index
    %c0_0 = arith.constant 0 : index
    %0 = vector.load %arg1[%c0, %c0_0] : memref<64x128xf32, #tpu.memory_space<vmem>>, vector<64x128xf32>
    %c0_1 = arith.constant 0 : index
    %c0_2 = arith.constant 0 : index
    %1 = vector.load %arg2[%c0_1, %c0_2] : memref<64x128xf32, #tpu.memory_space<vmem>>, vector<64x128xf32>
    %2 = tpu.concatenate %0, %1 in 1 : vector<64x128xf32>, vector<64x128xf32> -> vector<64x256xf32>
    %c0_3 = arith.constant 0 : index
    %c0_4 = arith.constant 0 : index
    %3 = vector.load %arg3[%c0_3, %c0_4] : memref<256x128xf32, #tpu.memory_space<vmem>>, vector<256x128xf32>
    %cst = arith.constant dense<0.000000e+00> : vector<64x128xf32>
    %4 = tpu.matmul %2, %3, %cst {dimension_numbers = #tpu.dot_dimension_numbers<[1], [0], [0], [1], [0, 0, 1, 1], [], []>} : vector<64x256xf32>, vector<256x128xf32>, vector<64x128xf32> -> vector<64x128xf32>
    %c0_5 = arith.constant 0 : index
    %c0_6 = arith.constant 0 : index
    %5 = vector.load %arg4[%c0_5, %c0_6] : memref<1x128xf32, #tpu.memory_space<vmem>>, vector<1x128xf32>
    %6 = vector.broadcast %5 : vector<1x128xf32> to vector<64x128xf32>
    %7 = arith.addf %4, %6 : vector<64x128xf32>
    %c0_7 = arith.constant 0 : index
    %c0_8 = arith.constant 0 : index
    %8 = vector.load %arg5[%c0_7, %c0_8] : memref<64x128xf32, #tpu.memory_space<vmem>>, vector<64x128xf32>
    tpu.vector_store %arg5[%c0_7, %c0_8], %7 {strides = array<i32>} : memref<64x128xf32, #tpu.memory_space<vmem>>, vector<64x128xf32>,
    return
  }
  func.func @transform_0(%arg0: i32) -> (i32, i32) {
    %c0_i32 = arith.constant 0 : i32
    %c0_i32_0 = arith.constant 0 : i32
    return %arg0, %c0_i32 : i32, i32
  }
  func.func @transform_1(%arg0: i32) -> (i32, i32) {
    %c0_i32 = arith.constant 0 : i32
    %c0_i32_0 = arith.constant 0 : i32
    return %arg0, %c0_i32 : i32, i32
  }
  func.func @transform_2(%arg0: i32) -> (i32, i32) {
    %c0_i32 = arith.constant 0 : i32
    %c0_i32_0 = arith.constant 0 : i32
    %c0_i32_1 = arith.constant 0 : i32
    return %c0_i32, %c0_i32_0 : i32, i32
  }
  func.func @transform_3(%arg0: i32) -> (i32, i32) {
    %c0_i32 = arith.constant 0 : i32
    %c0_i32_0 = arith.constant 0 : i32
    %c0_i32_1 = arith.constant 0 : i32
    return %c0_i32, %c0_i32_0 : i32, i32
  }
  func.func @transform_4(%arg0: i32) -> (i32, i32) {
    %c0_i32 = arith.constant 0 : i32
    %c0_i32_0 = arith.constant 0 : i32
    return %arg0, %c0_i32 : i32, i32
  }
}

module attributes {stable_mosaic.version = 11 : i64} {
  func.func @kernel(%arg0: i32, %arg1: memref<8x8x128xf32, #tpu.memory_space<vmem>>, %arg2: memref<8x8x128xf32, #tpu.memory_space<vmem>>, %arg3: memref<8x8x128xf32, #tpu.memory_space<vmem>>, %arg4: memref<8x8x128xf32, #tpu.memory_space<vmem>>, %arg5: memref<2x256x128xf32, #tpu.memory_space<vmem>>, %arg6: memref<256x256xf32, #tpu.memory_space<vmem>>, %arg7: memref<2x1x128xf32, #tpu.memory_space<vmem>>, %arg8: memref<8x8x128xf32, #tpu.memory_space<vmem>>, %arg9: memref<8x8x128xf32, #tpu.memory_space<vmem>>, %arg10: memref<8x256xf32, #tpu.memory_space<vmem>>, %arg11: memref<8x8x128xf32, #tpu.memory_space<vmem>>, %arg12: memref<8x8x128xf32, #tpu.memory_space<vmem>>) attributes {dimension_semantics = [#tpu.dimension_semantics<arbitrary>], iteration_bounds = array<i64: 1>, scalar_prefetch = 0 : i64, scratch_operands = 3 : i64, tpu.core_type = #tpu.core_type<tc>, window_params = [{transform_indices = @transform_0, window_bounds = array<i64: 8, 8, 128>}, {transform_indices = @transform_1, window_bounds = array<i64: 8, 8, 128>}, {transform_indices = @transform_2, window_bounds = array<i64: 8, 8, 128>}, {transform_indices = @transform_3, window_bounds = array<i64: 8, 8, 128>}, {pipeline_mode = #tpu.pipeline_mode<synchronous>, transform_indices = @transform_4, window_bounds = array<i64: 2, 256, 128>}, {pipeline_mode = #tpu.pipeline_mode<synchronous>, transform_indices = @transform_5, window_bounds = array<i64: 256, 256>}, {pipeline_mode = #tpu.pipeline_mode<synchronous>, transform_indices = @transform_6, window_bounds = array<i64: 2, 1, 128>}, {transform_indices = @transform_7, window_bounds = array<i64: 8, 8, 128>}, {transform_indices = @transform_8, window_bounds = array<i64: 8, 8, 128>}]} {
    %c0_i32 = arith.constant 0 : i32
    %0 = arith.cmpi eq, %arg0, %c0_i32 : i32
    %1 = arith.extui %0 : i1 to i32
    %c0_i32_0 = arith.constant 0 : i32
    %2 = arith.cmpi ne, %1, %c0_i32_0 : i32
    scf.if %2 {
      %cst_153 = arith.constant 0.000000e+00 : f32
      %222 = vector.broadcast %cst_153 : f32 to vector<8x256xf32>
      %c0_154 = arith.constant 0 : index
      %c0_155 = arith.constant 0 : index
      %223 = vector.load %arg10[%c0_154, %c0_155] : memref<8x256xf32, #tpu.memory_space<vmem>>, vector<8x256xf32>
      tpu.vector_store %arg10[%c0_154, %c0_155], %222 {strides = array<i32>} : memref<8x256xf32, #tpu.memory_space<vmem>>, vector<8x256xf32>,
    } else {
    }
    %c0 = arith.constant 0 : index
    %c0_1 = arith.constant 0 : index
    %c0_2 = arith.constant 0 : index
    %3 = vector.load %arg1[%c0, %c0_1, %c0_2] : memref<8x8x128xf32, #tpu.memory_space<vmem>>, vector<8x8x128xf32>
    %c0_3 = arith.constant 0 : index
    %c0_4 = arith.constant 0 : index
    %c0_5 = arith.constant 0 : index
    %4 = vector.load %arg2[%c0_3, %c0_4, %c0_5] : memref<8x8x128xf32, #tpu.memory_space<vmem>>, vector<8x8x128xf32>
    %5 = tpu.concatenate %3, %4 in 2 : vector<8x8x128xf32>, vector<8x8x128xf32> -> vector<8x8x256xf32>
    %c0_6 = arith.constant 0 : index
    %c0_7 = arith.constant 0 : index
    %c0_8 = arith.constant 0 : index
    %6 = vector.load %arg3[%c0_6, %c0_7, %c0_8] : memref<8x8x128xf32, #tpu.memory_space<vmem>>, vector<8x8x128xf32>
    %c0_9 = arith.constant 0 : index
    %c0_10 = arith.constant 0 : index
    %c0_11 = arith.constant 0 : index
    %7 = vector.load %arg4[%c0_9, %c0_10, %c0_11] : memref<8x8x128xf32, #tpu.memory_space<vmem>>, vector<8x8x128xf32>
    %8 = tpu.concatenate %6, %7 in 2 : vector<8x8x128xf32>, vector<8x8x128xf32> -> vector<8x8x256xf32>
    %9 = vector.shape_cast %5 : vector<8x8x256xf32> to vector<64x256xf32>
    %10 = vector.shape_cast %8 : vector<8x8x256xf32> to vector<64x256xf32>
    %c0_12 = arith.constant 0 : index
    %c0_13 = arith.constant 0 : index
    %c0_14 = arith.constant 0 : index
    %11 = vector.load %arg5[%c0_12, %c0_13, %c0_14] : memref<2x256x128xf32, #tpu.memory_space<vmem>>, vector<1x256x128xf32>
    %12 = vector.shape_cast %11 : vector<1x256x128xf32> to vector<256x128xf32>
    %cst = arith.constant dense<0.000000e+00> : vector<64x128xf32>
    %13 = tpu.matmul %9, %12, %cst {dimension_numbers = #tpu.dot_dimension_numbers<[1], [0], [0], [1], [0, 0, 1, 1], [], []>} : vector<64x256xf32>, vector<256x128xf32>, vector<64x128xf32> -> vector<64x128xf32>
    %c0_15 = arith.constant 0 : index
    %c0_16 = arith.constant 0 : index
    %c0_17 = arith.constant 0 : index
    %14 = vector.load %arg7[%c0_15, %c0_16, %c0_17] : memref<2x1x128xf32, #tpu.memory_space<vmem>>, vector<1x1x128xf32>
    %15 = vector.shape_cast %14 : vector<1x1x128xf32> to vector<1x128xf32>
    %16 = vector.broadcast %15 : vector<1x128xf32> to vector<64x128xf32>
    %17 = arith.addf %13, %16 : vector<64x128xf32>
    %18 = vector.shape_cast %17 : vector<64x128xf32> to vector<8x8x128xf32>
    %c0_18 = arith.constant 0 : index
    %c0_19 = arith.constant 0 : index
    %c0_20 = arith.constant 0 : index
    %19 = vector.load %arg11[%c0_18, %c0_19, %c0_20] : memref<8x8x128xf32, #tpu.memory_space<vmem>>, vector<8x8x128xf32>
    tpu.vector_store %arg11[%c0_18, %c0_19, %c0_20], %18 {strides = array<i32>} : memref<8x8x128xf32, #tpu.memory_space<vmem>>, vector<8x8x128xf32>,
    %c1 = arith.constant 1 : index
    %c0_21 = arith.constant 0 : index
    %c0_22 = arith.constant 0 : index
    %20 = vector.load %arg5[%c1, %c0_21, %c0_22] : memref<2x256x128xf32, #tpu.memory_space<vmem>>, vector<1x256x128xf32>
    %21 = vector.shape_cast %20 : vector<1x256x128xf32> to vector<256x128xf32>
    %cst_23 = arith.constant dense<0.000000e+00> : vector<64x128xf32>
    %22 = tpu.matmul %10, %21, %cst_23 {dimension_numbers = #tpu.dot_dimension_numbers<[1], [0], [0], [1], [0, 0, 1, 1], [], []>} : vector<64x256xf32>, vector<256x128xf32>, vector<64x128xf32> -> vector<64x128xf32>
    %c1_24 = arith.constant 1 : index
    %c0_25 = arith.constant 0 : index
    %c0_26 = arith.constant 0 : index
    %23 = vector.load %arg7[%c1_24, %c0_25, %c0_26] : memref<2x1x128xf32, #tpu.memory_space<vmem>>, vector<1x1x128xf32>
    %24 = vector.shape_cast %23 : vector<1x1x128xf32> to vector<1x128xf32>
    %25 = vector.broadcast %24 : vector<1x128xf32> to vector<64x128xf32>
    %26 = arith.addf %22, %25 : vector<64x128xf32>
    %27 = vector.shape_cast %26 : vector<64x128xf32> to vector<8x8x128xf32>
    %c0_27 = arith.constant 0 : index
    %c0_28 = arith.constant 0 : index
    %c0_29 = arith.constant 0 : index
    %28 = vector.load %arg12[%c0_27, %c0_28, %c0_29] : memref<8x8x128xf32, #tpu.memory_space<vmem>>, vector<8x8x128xf32>
    tpu.vector_store %arg12[%c0_27, %c0_28, %c0_29], %27 {strides = array<i32>} : memref<8x8x128xf32, #tpu.memory_space<vmem>>, vector<8x8x128xf32>,
    %c0_30 = arith.constant 0 : index
    %c0_31 = arith.constant 0 : index
    %29 = vector.load %arg6[%c0_30, %c0_31] : memref<256x256xf32, #tpu.memory_space<vmem>>, vector<256x256xf32>
    %c0_i32_32 = arith.constant 0 : i32
    %30 = arith.index_cast %c0_i32_32 : i32 to index
    %c0_33 = arith.constant 0 : index
    %c0_34 = arith.constant 0 : index
    %31 = vector.load %arg11[%30, %c0_33, %c0_34] : memref<8x8x128xf32, #tpu.memory_space<vmem>>, vector<1x8x128xf32>
    %32 = vector.shape_cast %31 : vector<1x8x128xf32> to vector<8x128xf32>
    %c7_i32 = arith.constant 7 : i32
    %33 = arith.subi %c7_i32, %c0_i32_32 : i32
    %34 = arith.index_cast %33 : i32 to index
    %c0_35 = arith.constant 0 : index
    %c0_36 = arith.constant 0 : index
    %35 = vector.load %arg12[%34, %c0_35, %c0_36] : memref<8x8x128xf32, #tpu.memory_space<vmem>>, vector<1x8x128xf32>
    %36 = vector.shape_cast %35 : vector<1x8x128xf32> to vector<8x128xf32>
    %37 = tpu.concatenate %32, %36 in 1 : vector<8x128xf32>, vector<8x128xf32> -> vector<8x256xf32>
    %c0_37 = arith.constant 0 : index
    %c0_38 = arith.constant 0 : index
    %38 = vector.load %arg10[%c0_37, %c0_38] : memref<8x256xf32, #tpu.memory_space<vmem>>, vector<8x256xf32>
    %cst_39 = arith.constant dense<0.000000e+00> : vector<8x256xf32>
    %39 = tpu.matmul %38, %29, %cst_39 {dimension_numbers = #tpu.dot_dimension_numbers<[1], [0], [0], [1], [0, 0, 1, 1], [], []>} : vector<8x256xf32>, vector<256x256xf32>, vector<8x256xf32> -> vector<8x256xf32>
    %40 = arith.addf %37, %39 : vector<8x256xf32>
    %41 = math.tanh %40 : vector<8x256xf32>
    %c0_40 = arith.constant 0 : index
    %c0_41 = arith.constant 0 : index
    %42 = vector.load %arg10[%c0_40, %c0_41] : memref<8x256xf32, #tpu.memory_space<vmem>>, vector<8x256xf32>
    tpu.vector_store %arg10[%c0_40, %c0_41], %41 {strides = array<i32>} : memref<8x256xf32, #tpu.memory_space<vmem>>, vector<8x256xf32>,
    %43 = vector.extract_strided_slice %41 {offsets = [0, 0], sizes = [8, 128], strides = [1, 1]} : vector<8x256xf32> to vector<8x128xf32>
    %44 = arith.index_cast %c0_i32_32 : i32 to index
    %c0_42 = arith.constant 0 : index
    %c0_43 = arith.constant 0 : index
    %45 = vector.load %arg8[%44, %c0_42, %c0_43] : memref<8x8x128xf32, #tpu.memory_space<vmem>>, vector<1x8x128xf32>
    %46 = vector.shape_cast %45 : vector<1x8x128xf32> to vector<8x128xf32>
    %47 = vector.shape_cast %43 : vector<8x128xf32> to vector<1x8x128xf32>
    tpu.vector_store %arg8[%44, %c0_42, %c0_43], %47 {strides = array<i32>} : memref<8x8x128xf32, #tpu.memory_space<vmem>>, vector<1x8x128xf32>,
    %48 = vector.extract_strided_slice %41 {offsets = [0, 128], sizes = [8, 128], strides = [1, 1]} : vector<8x256xf32> to vector<8x128xf32>
    %c7_i32_44 = arith.constant 7 : i32
    %49 = arith.subi %c7_i32_44, %c0_i32_32 : i32
    %50 = arith.index_cast %49 : i32 to index
    %c0_45 = arith.constant 0 : index
    %c0_46 = arith.constant 0 : index
    %51 = vector.load %arg9[%50, %c0_45, %c0_46] : memref<8x8x128xf32, #tpu.memory_space<vmem>>, vector<1x8x128xf32>
    %52 = vector.shape_cast %51 : vector<1x8x128xf32> to vector<8x128xf32>
    %53 = vector.shape_cast %48 : vector<8x128xf32> to vector<1x8x128xf32>
    tpu.vector_store %arg9[%50, %c0_45, %c0_46], %53 {strides = array<i32>} : memref<8x8x128xf32, #tpu.memory_space<vmem>>, vector<1x8x128xf32>,
    %c1_i32 = arith.constant 1 : i32
    %54 = arith.index_cast %c1_i32 : i32 to index
    %c0_47 = arith.constant 0 : index
    %c0_48 = arith.constant 0 : index
    %55 = vector.load %arg11[%54, %c0_47, %c0_48] : memref<8x8x128xf32, #tpu.memory_space<vmem>>, vector<1x8x128xf32>
    %56 = vector.shape_cast %55 : vector<1x8x128xf32> to vector<8x128xf32>
    %c7_i32_49 = arith.constant 7 : i32
    %57 = arith.subi %c7_i32_49, %c1_i32 : i32
    %58 = arith.index_cast %57 : i32 to index
    %c0_50 = arith.constant 0 : index
    %c0_51 = arith.constant 0 : index
    %59 = vector.load %arg12[%58, %c0_50, %c0_51] : memref<8x8x128xf32, #tpu.memory_space<vmem>>, vector<1x8x128xf32>
    %60 = vector.shape_cast %59 : vector<1x8x128xf32> to vector<8x128xf32>
    %61 = tpu.concatenate %56, %60 in 1 : vector<8x128xf32>, vector<8x128xf32> -> vector<8x256xf32>
    %c0_52 = arith.constant 0 : index
    %c0_53 = arith.constant 0 : index
    %62 = vector.load %arg10[%c0_52, %c0_53] : memref<8x256xf32, #tpu.memory_space<vmem>>, vector<8x256xf32>
    %cst_54 = arith.constant dense<0.000000e+00> : vector<8x256xf32>
    %63 = tpu.matmul %62, %29, %cst_54 {dimension_numbers = #tpu.dot_dimension_numbers<[1], [0], [0], [1], [0, 0, 1, 1], [], []>} : vector<8x256xf32>, vector<256x256xf32>, vector<8x256xf32> -> vector<8x256xf32>
    %64 = arith.addf %61, %63 : vector<8x256xf32>
    %65 = math.tanh %64 : vector<8x256xf32>
    %c0_55 = arith.constant 0 : index
    %c0_56 = arith.constant 0 : index
    %66 = vector.load %arg10[%c0_55, %c0_56] : memref<8x256xf32, #tpu.memory_space<vmem>>, vector<8x256xf32>
    tpu.vector_store %arg10[%c0_55, %c0_56], %65 {strides = array<i32>} : memref<8x256xf32, #tpu.memory_space<vmem>>, vector<8x256xf32>,
    %67 = vector.extract_strided_slice %65 {offsets = [0, 0], sizes = [8, 128], strides = [1, 1]} : vector<8x256xf32> to vector<8x128xf32>
    %68 = arith.index_cast %c1_i32 : i32 to index
    %c0_57 = arith.constant 0 : index
    %c0_58 = arith.constant 0 : index
    %69 = vector.load %arg8[%68, %c0_57, %c0_58] : memref<8x8x128xf32, #tpu.memory_space<vmem>>, vector<1x8x128xf32>
    %70 = vector.shape_cast %69 : vector<1x8x128xf32> to vector<8x128xf32>
    %71 = vector.shape_cast %67 : vector<8x128xf32> to vector<1x8x128xf32>
    tpu.vector_store %arg8[%68, %c0_57, %c0_58], %71 {strides = array<i32>} : memref<8x8x128xf32, #tpu.memory_space<vmem>>, vector<1x8x128xf32>,
    %72 = vector.extract_strided_slice %65 {offsets = [0, 128], sizes = [8, 128], strides = [1, 1]} : vector<8x256xf32> to vector<8x128xf32>
    %c7_i32_59 = arith.constant 7 : i32
    %73 = arith.subi %c7_i32_59, %c1_i32 : i32
    %74 = arith.index_cast %73 : i32 to index
    %c0_60 = arith.constant 0 : index
    %c0_61 = arith.constant 0 : index
    %75 = vector.load %arg9[%74, %c0_60, %c0_61] : memref<8x8x128xf32, #tpu.memory_space<vmem>>, vector<1x8x128xf32>
    %76 = vector.shape_cast %75 : vector<1x8x128xf32> to vector<8x128xf32>
    %77 = vector.shape_cast %72 : vector<8x128xf32> to vector<1x8x128xf32>
    tpu.vector_store %arg9[%74, %c0_60, %c0_61], %77 {strides = array<i32>} : memref<8x8x128xf32, #tpu.memory_space<vmem>>, vector<1x8x128xf32>,
    %c2_i32 = arith.constant 2 : i32
    %78 = arith.index_cast %c2_i32 : i32 to index
    %c0_62 = arith.constant 0 : index
    %c0_63 = arith.constant 0 : index
    %79 = vector.load %arg11[%78, %c0_62, %c0_63] : memref<8x8x128xf32, #tpu.memory_space<vmem>>, vector<1x8x128xf32>
    %80 = vector.shape_cast %79 : vector<1x8x128xf32> to vector<8x128xf32>
    %c7_i32_64 = arith.constant 7 : i32
    %81 = arith.subi %c7_i32_64, %c2_i32 : i32
    %82 = arith.index_cast %81 : i32 to index
    %c0_65 = arith.constant 0 : index
    %c0_66 = arith.constant 0 : index
    %83 = vector.load %arg12[%82, %c0_65, %c0_66] : memref<8x8x128xf32, #tpu.memory_space<vmem>>, vector<1x8x128xf32>
    %84 = vector.shape_cast %83 : vector<1x8x128xf32> to vector<8x128xf32>
    %85 = tpu.concatenate %80, %84 in 1 : vector<8x128xf32>, vector<8x128xf32> -> vector<8x256xf32>
    %c0_67 = arith.constant 0 : index
    %c0_68 = arith.constant 0 : index
    %86 = vector.load %arg10[%c0_67, %c0_68] : memref<8x256xf32, #tpu.memory_space<vmem>>, vector<8x256xf32>
    %cst_69 = arith.constant dense<0.000000e+00> : vector<8x256xf32>
    %87 = tpu.matmul %86, %29, %cst_69 {dimension_numbers = #tpu.dot_dimension_numbers<[1], [0], [0], [1], [0, 0, 1, 1], [], []>} : vector<8x256xf32>, vector<256x256xf32>, vector<8x256xf32> -> vector<8x256xf32>
    %88 = arith.addf %85, %87 : vector<8x256xf32>
    %89 = math.tanh %88 : vector<8x256xf32>
    %c0_70 = arith.constant 0 : index
    %c0_71 = arith.constant 0 : index
    %90 = vector.load %arg10[%c0_70, %c0_71] : memref<8x256xf32, #tpu.memory_space<vmem>>, vector<8x256xf32>
    tpu.vector_store %arg10[%c0_70, %c0_71], %89 {strides = array<i32>} : memref<8x256xf32, #tpu.memory_space<vmem>>, vector<8x256xf32>,
    %91 = vector.extract_strided_slice %89 {offsets = [0, 0], sizes = [8, 128], strides = [1, 1]} : vector<8x256xf32> to vector<8x128xf32>
    %92 = arith.index_cast %c2_i32 : i32 to index
    %c0_72 = arith.constant 0 : index
    %c0_73 = arith.constant 0 : index
    %93 = vector.load %arg8[%92, %c0_72, %c0_73] : memref<8x8x128xf32, #tpu.memory_space<vmem>>, vector<1x8x128xf32>
    %94 = vector.shape_cast %93 : vector<1x8x128xf32> to vector<8x128xf32>
    %95 = vector.shape_cast %91 : vector<8x128xf32> to vector<1x8x128xf32>
    tpu.vector_store %arg8[%92, %c0_72, %c0_73], %95 {strides = array<i32>} : memref<8x8x128xf32, #tpu.memory_space<vmem>>, vector<1x8x128xf32>,
    %96 = vector.extract_strided_slice %89 {offsets = [0, 128], sizes = [8, 128], strides = [1, 1]} : vector<8x256xf32> to vector<8x128xf32>
    %c7_i32_74 = arith.constant 7 : i32
    %97 = arith.subi %c7_i32_74, %c2_i32 : i32
    %98 = arith.index_cast %97 : i32 to index
    %c0_75 = arith.constant 0 : index
    %c0_76 = arith.constant 0 : index
    %99 = vector.load %arg9[%98, %c0_75, %c0_76] : memref<8x8x128xf32, #tpu.memory_space<vmem>>, vector<1x8x128xf32>
    %100 = vector.shape_cast %99 : vector<1x8x128xf32> to vector<8x128xf32>
    %101 = vector.shape_cast %96 : vector<8x128xf32> to vector<1x8x128xf32>
    tpu.vector_store %arg9[%98, %c0_75, %c0_76], %101 {strides = array<i32>} : memref<8x8x128xf32, #tpu.memory_space<vmem>>, vector<1x8x128xf32>,
    %c3_i32 = arith.constant 3 : i32
    %102 = arith.index_cast %c3_i32 : i32 to index
    %c0_77 = arith.constant 0 : index
    %c0_78 = arith.constant 0 : index
    %103 = vector.load %arg11[%102, %c0_77, %c0_78] : memref<8x8x128xf32, #tpu.memory_space<vmem>>, vector<1x8x128xf32>
    %104 = vector.shape_cast %103 : vector<1x8x128xf32> to vector<8x128xf32>
    %c7_i32_79 = arith.constant 7 : i32
    %105 = arith.subi %c7_i32_79, %c3_i32 : i32
    %106 = arith.index_cast %105 : i32 to index
    %c0_80 = arith.constant 0 : index
    %c0_81 = arith.constant 0 : index
    %107 = vector.load %arg12[%106, %c0_80, %c0_81] : memref<8x8x128xf32, #tpu.memory_space<vmem>>, vector<1x8x128xf32>
    %108 = vector.shape_cast %107 : vector<1x8x128xf32> to vector<8x128xf32>
    %109 = tpu.concatenate %104, %108 in 1 : vector<8x128xf32>, vector<8x128xf32> -> vector<8x256xf32>
    %c0_82 = arith.constant 0 : index
    %c0_83 = arith.constant 0 : index
    %110 = vector.load %arg10[%c0_82, %c0_83] : memref<8x256xf32, #tpu.memory_space<vmem>>, vector<8x256xf32>
    %cst_84 = arith.constant dense<0.000000e+00> : vector<8x256xf32>
    %111 = tpu.matmul %110, %29, %cst_84 {dimension_numbers = #tpu.dot_dimension_numbers<[1], [0], [0], [1], [0, 0, 1, 1], [], []>} : vector<8x256xf32>, vector<256x256xf32>, vector<8x256xf32> -> vector<8x256xf32>
    %112 = arith.addf %109, %111 : vector<8x256xf32>
    %113 = math.tanh %112 : vector<8x256xf32>
    %c0_85 = arith.constant 0 : index
    %c0_86 = arith.constant 0 : index
    %114 = vector.load %arg10[%c0_85, %c0_86] : memref<8x256xf32, #tpu.memory_space<vmem>>, vector<8x256xf32>
    tpu.vector_store %arg10[%c0_85, %c0_86], %113 {strides = array<i32>} : memref<8x256xf32, #tpu.memory_space<vmem>>, vector<8x256xf32>,
    %115 = vector.extract_strided_slice %113 {offsets = [0, 0], sizes = [8, 128], strides = [1, 1]} : vector<8x256xf32> to vector<8x128xf32>
    %116 = arith.index_cast %c3_i32 : i32 to index
    %c0_87 = arith.constant 0 : index
    %c0_88 = arith.constant 0 : index
    %117 = vector.load %arg8[%116, %c0_87, %c0_88] : memref<8x8x128xf32, #tpu.memory_space<vmem>>, vector<1x8x128xf32>
    %118 = vector.shape_cast %117 : vector<1x8x128xf32> to vector<8x128xf32>
    %119 = vector.shape_cast %115 : vector<8x128xf32> to vector<1x8x128xf32>
    tpu.vector_store %arg8[%116, %c0_87, %c0_88], %119 {strides = array<i32>} : memref<8x8x128xf32, #tpu.memory_space<vmem>>, vector<1x8x128xf32>,
    %120 = vector.extract_strided_slice %113 {offsets = [0, 128], sizes = [8, 128], strides = [1, 1]} : vector<8x256xf32> to vector<8x128xf32>
    %c7_i32_89 = arith.constant 7 : i32
    %121 = arith.subi %c7_i32_89, %c3_i32 : i32
    %122 = arith.index_cast %121 : i32 to index
    %c0_90 = arith.constant 0 : index
    %c0_91 = arith.constant 0 : index
    %123 = vector.load %arg9[%122, %c0_90, %c0_91] : memref<8x8x128xf32, #tpu.memory_space<vmem>>, vector<1x8x128xf32>
    %124 = vector.shape_cast %123 : vector<1x8x128xf32> to vector<8x128xf32>
    %125 = vector.shape_cast %120 : vector<8x128xf32> to vector<1x8x128xf32>
    tpu.vector_store %arg9[%122, %c0_90, %c0_91], %125 {strides = array<i32>} : memref<8x8x128xf32, #tpu.memory_space<vmem>>, vector<1x8x128xf32>,
    %c4_i32 = arith.constant 4 : i32
    %126 = arith.index_cast %c4_i32 : i32 to index
    %c0_92 = arith.constant 0 : index
    %c0_93 = arith.constant 0 : index
    %127 = vector.load %arg11[%126, %c0_92, %c0_93] : memref<8x8x128xf32, #tpu.memory_space<vmem>>, vector<1x8x128xf32>
    %128 = vector.shape_cast %127 : vector<1x8x128xf32> to vector<8x128xf32>
    %c7_i32_94 = arith.constant 7 : i32
    %129 = arith.subi %c7_i32_94, %c4_i32 : i32
    %130 = arith.index_cast %129 : i32 to index
    %c0_95 = arith.constant 0 : index
    %c0_96 = arith.constant 0 : index
    %131 = vector.load %arg12[%130, %c0_95, %c0_96] : memref<8x8x128xf32, #tpu.memory_space<vmem>>, vector<1x8x128xf32>
    %132 = vector.shape_cast %131 : vector<1x8x128xf32> to vector<8x128xf32>
    %133 = tpu.concatenate %128, %132 in 1 : vector<8x128xf32>, vector<8x128xf32> -> vector<8x256xf32>
    %c0_97 = arith.constant 0 : index
    %c0_98 = arith.constant 0 : index
    %134 = vector.load %arg10[%c0_97, %c0_98] : memref<8x256xf32, #tpu.memory_space<vmem>>, vector<8x256xf32>
    %cst_99 = arith.constant dense<0.000000e+00> : vector<8x256xf32>
    %135 = tpu.matmul %134, %29, %cst_99 {dimension_numbers = #tpu.dot_dimension_numbers<[1], [0], [0], [1], [0, 0, 1, 1], [], []>} : vector<8x256xf32>, vector<256x256xf32>, vector<8x256xf32> -> vector<8x256xf32>
    %136 = arith.addf %133, %135 : vector<8x256xf32>
    %137 = math.tanh %136 : vector<8x256xf32>
    %c0_100 = arith.constant 0 : index
    %c0_101 = arith.constant 0 : index
    %138 = vector.load %arg10[%c0_100, %c0_101] : memref<8x256xf32, #tpu.memory_space<vmem>>, vector<8x256xf32>
    tpu.vector_store %arg10[%c0_100, %c0_101], %137 {strides = array<i32>} : memref<8x256xf32, #tpu.memory_space<vmem>>, vector<8x256xf32>,
    %139 = vector.extract_strided_slice %137 {offsets = [0, 0], sizes = [8, 128], strides = [1, 1]} : vector<8x256xf32> to vector<8x128xf32>
    %140 = arith.index_cast %c4_i32 : i32 to index
    %c0_102 = arith.constant 0 : index
    %c0_103 = arith.constant 0 : index
    %141 = vector.load %arg8[%140, %c0_102, %c0_103] : memref<8x8x128xf32, #tpu.memory_space<vmem>>, vector<1x8x128xf32>
    %142 = vector.shape_cast %141 : vector<1x8x128xf32> to vector<8x128xf32>
    %143 = vector.shape_cast %139 : vector<8x128xf32> to vector<1x8x128xf32>
    tpu.vector_store %arg8[%140, %c0_102, %c0_103], %143 {strides = array<i32>} : memref<8x8x128xf32, #tpu.memory_space<vmem>>, vector<1x8x128xf32>,
    %144 = vector.extract_strided_slice %137 {offsets = [0, 128], sizes = [8, 128], strides = [1, 1]} : vector<8x256xf32> to vector<8x128xf32>
    %c7_i32_104 = arith.constant 7 : i32
    %145 = arith.subi %c7_i32_104, %c4_i32 : i32
    %146 = arith.index_cast %145 : i32 to index
    %c0_105 = arith.constant 0 : index
    %c0_106 = arith.constant 0 : index
    %147 = vector.load %arg9[%146, %c0_105, %c0_106] : memref<8x8x128xf32, #tpu.memory_space<vmem>>, vector<1x8x128xf32>
    %148 = vector.shape_cast %147 : vector<1x8x128xf32> to vector<8x128xf32>
    %149 = vector.shape_cast %144 : vector<8x128xf32> to vector<1x8x128xf32>
    tpu.vector_store %arg9[%146, %c0_105, %c0_106], %149 {strides = array<i32>} : memref<8x8x128xf32, #tpu.memory_space<vmem>>, vector<1x8x128xf32>,
    %c5_i32 = arith.constant 5 : i32
    %150 = arith.index_cast %c5_i32 : i32 to index
    %c0_107 = arith.constant 0 : index
    %c0_108 = arith.constant 0 : index
    %151 = vector.load %arg11[%150, %c0_107, %c0_108] : memref<8x8x128xf32, #tpu.memory_space<vmem>>, vector<1x8x128xf32>
    %152 = vector.shape_cast %151 : vector<1x8x128xf32> to vector<8x128xf32>
    %c7_i32_109 = arith.constant 7 : i32
    %153 = arith.subi %c7_i32_109, %c5_i32 : i32
    %154 = arith.index_cast %153 : i32 to index
    %c0_110 = arith.constant 0 : index
    %c0_111 = arith.constant 0 : index
    %155 = vector.load %arg12[%154, %c0_110, %c0_111] : memref<8x8x128xf32, #tpu.memory_space<vmem>>, vector<1x8x128xf32>
    %156 = vector.shape_cast %155 : vector<1x8x128xf32> to vector<8x128xf32>
    %157 = tpu.concatenate %152, %156 in 1 : vector<8x128xf32>, vector<8x128xf32> -> vector<8x256xf32>
    %c0_112 = arith.constant 0 : index
    %c0_113 = arith.constant 0 : index
    %158 = vector.load %arg10[%c0_112, %c0_113] : memref<8x256xf32, #tpu.memory_space<vmem>>, vector<8x256xf32>
    %cst_114 = arith.constant dense<0.000000e+00> : vector<8x256xf32>
    %159 = tpu.matmul %158, %29, %cst_114 {dimension_numbers = #tpu.dot_dimension_numbers<[1], [0], [0], [1], [0, 0, 1, 1], [], []>} : vector<8x256xf32>, vector<256x256xf32>, vector<8x256xf32> -> vector<8x256xf32>
    %160 = arith.addf %157, %159 : vector<8x256xf32>
    %161 = math.tanh %160 : vector<8x256xf32>
    %c0_115 = arith.constant 0 : index
    %c0_116 = arith.constant 0 : index
    %162 = vector.load %arg10[%c0_115, %c0_116] : memref<8x256xf32, #tpu.memory_space<vmem>>, vector<8x256xf32>
    tpu.vector_store %arg10[%c0_115, %c0_116], %161 {strides = array<i32>} : memref<8x256xf32, #tpu.memory_space<vmem>>, vector<8x256xf32>,
    %163 = vector.extract_strided_slice %161 {offsets = [0, 0], sizes = [8, 128], strides = [1, 1]} : vector<8x256xf32> to vector<8x128xf32>
    %164 = arith.index_cast %c5_i32 : i32 to index
    %c0_117 = arith.constant 0 : index
    %c0_118 = arith.constant 0 : index
    %165 = vector.load %arg8[%164, %c0_117, %c0_118] : memref<8x8x128xf32, #tpu.memory_space<vmem>>, vector<1x8x128xf32>
    %166 = vector.shape_cast %165 : vector<1x8x128xf32> to vector<8x128xf32>
    %167 = vector.shape_cast %163 : vector<8x128xf32> to vector<1x8x128xf32>
    tpu.vector_store %arg8[%164, %c0_117, %c0_118], %167 {strides = array<i32>} : memref<8x8x128xf32, #tpu.memory_space<vmem>>, vector<1x8x128xf32>,
    %168 = vector.extract_strided_slice %161 {offsets = [0, 128], sizes = [8, 128], strides = [1, 1]} : vector<8x256xf32> to vector<8x128xf32>
    %c7_i32_119 = arith.constant 7 : i32
    %169 = arith.subi %c7_i32_119, %c5_i32 : i32
    %170 = arith.index_cast %169 : i32 to index
    %c0_120 = arith.constant 0 : index
    %c0_121 = arith.constant 0 : index
    %171 = vector.load %arg9[%170, %c0_120, %c0_121] : memref<8x8x128xf32, #tpu.memory_space<vmem>>, vector<1x8x128xf32>
    %172 = vector.shape_cast %171 : vector<1x8x128xf32> to vector<8x128xf32>
    %173 = vector.shape_cast %168 : vector<8x128xf32> to vector<1x8x128xf32>
    tpu.vector_store %arg9[%170, %c0_120, %c0_121], %173 {strides = array<i32>} : memref<8x8x128xf32, #tpu.memory_space<vmem>>, vector<1x8x128xf32>,
    %c6_i32 = arith.constant 6 : i32
    %174 = arith.index_cast %c6_i32 : i32 to index
    %c0_122 = arith.constant 0 : index
    %c0_123 = arith.constant 0 : index
    %175 = vector.load %arg11[%174, %c0_122, %c0_123] : memref<8x8x128xf32, #tpu.memory_space<vmem>>, vector<1x8x128xf32>
    %176 = vector.shape_cast %175 : vector<1x8x128xf32> to vector<8x128xf32>
    %c7_i32_124 = arith.constant 7 : i32
    %177 = arith.subi %c7_i32_124, %c6_i32 : i32
    %178 = arith.index_cast %177 : i32 to index
    %c0_125 = arith.constant 0 : index
    %c0_126 = arith.constant 0 : index
    %179 = vector.load %arg12[%178, %c0_125, %c0_126] : memref<8x8x128xf32, #tpu.memory_space<vmem>>, vector<1x8x128xf32>
    %180 = vector.shape_cast %179 : vector<1x8x128xf32> to vector<8x128xf32>
    %181 = tpu.concatenate %176, %180 in 1 : vector<8x128xf32>, vector<8x128xf32> -> vector<8x256xf32>
    %c0_127 = arith.constant 0 : index
    %c0_128 = arith.constant 0 : index
    %182 = vector.load %arg10[%c0_127, %c0_128] : memref<8x256xf32, #tpu.memory_space<vmem>>, vector<8x256xf32>
    %cst_129 = arith.constant dense<0.000000e+00> : vector<8x256xf32>
    %183 = tpu.matmul %182, %29, %cst_129 {dimension_numbers = #tpu.dot_dimension_numbers<[1], [0], [0], [1], [0, 0, 1, 1], [], []>} : vector<8x256xf32>, vector<256x256xf32>, vector<8x256xf32> -> vector<8x256xf32>
    %184 = arith.addf %181, %183 : vector<8x256xf32>
    %185 = math.tanh %184 : vector<8x256xf32>
    %c0_130 = arith.constant 0 : index
    %c0_131 = arith.constant 0 : index
    %186 = vector.load %arg10[%c0_130, %c0_131] : memref<8x256xf32, #tpu.memory_space<vmem>>, vector<8x256xf32>
    tpu.vector_store %arg10[%c0_130, %c0_131], %185 {strides = array<i32>} : memref<8x256xf32, #tpu.memory_space<vmem>>, vector<8x256xf32>,
    %187 = vector.extract_strided_slice %185 {offsets = [0, 0], sizes = [8, 128], strides = [1, 1]} : vector<8x256xf32> to vector<8x128xf32>
    %188 = arith.index_cast %c6_i32 : i32 to index
    %c0_132 = arith.constant 0 : index
    %c0_133 = arith.constant 0 : index
    %189 = vector.load %arg8[%188, %c0_132, %c0_133] : memref<8x8x128xf32, #tpu.memory_space<vmem>>, vector<1x8x128xf32>
    %190 = vector.shape_cast %189 : vector<1x8x128xf32> to vector<8x128xf32>
    %191 = vector.shape_cast %187 : vector<8x128xf32> to vector<1x8x128xf32>
    tpu.vector_store %arg8[%188, %c0_132, %c0_133], %191 {strides = array<i32>} : memref<8x8x128xf32, #tpu.memory_space<vmem>>, vector<1x8x128xf32>,
    %192 = vector.extract_strided_slice %185 {offsets = [0, 128], sizes = [8, 128], strides = [1, 1]} : vector<8x256xf32> to vector<8x128xf32>
    %c7_i32_134 = arith.constant 7 : i32
    %193 = arith.subi %c7_i32_134, %c6_i32 : i32
    %194 = arith.index_cast %193 : i32 to index
    %c0_135 = arith.constant 0 : index
    %c0_136 = arith.constant 0 : index
    %195 = vector.load %arg9[%194, %c0_135, %c0_136] : memref<8x8x128xf32, #tpu.memory_space<vmem>>, vector<1x8x128xf32>
    %196 = vector.shape_cast %195 : vector<1x8x128xf32> to vector<8x128xf32>
    %197 = vector.shape_cast %192 : vector<8x128xf32> to vector<1x8x128xf32>
    tpu.vector_store %arg9[%194, %c0_135, %c0_136], %197 {strides = array<i32>} : memref<8x8x128xf32, #tpu.memory_space<vmem>>, vector<1x8x128xf32>,
    %c7_i32_137 = arith.constant 7 : i32
    %198 = arith.index_cast %c7_i32_137 : i32 to index
    %c0_138 = arith.constant 0 : index
    %c0_139 = arith.constant 0 : index
    %199 = vector.load %arg11[%198, %c0_138, %c0_139] : memref<8x8x128xf32, #tpu.memory_space<vmem>>, vector<1x8x128xf32>
    %200 = vector.shape_cast %199 : vector<1x8x128xf32> to vector<8x128xf32>
    %c7_i32_140 = arith.constant 7 : i32
    %201 = arith.subi %c7_i32_140, %c7_i32_137 : i32
    %202 = arith.index_cast %201 : i32 to index
    %c0_141 = arith.constant 0 : index
    %c0_142 = arith.constant 0 : index
    %203 = vector.load %arg12[%202, %c0_141, %c0_142] : memref<8x8x128xf32, #tpu.memory_space<vmem>>, vector<1x8x128xf32>
    %204 = vector.shape_cast %203 : vector<1x8x128xf32> to vector<8x128xf32>
    %205 = tpu.concatenate %200, %204 in 1 : vector<8x128xf32>, vector<8x128xf32> -> vector<8x256xf32>
    %c0_143 = arith.constant 0 : index
    %c0_144 = arith.constant 0 : index
    %206 = vector.load %arg10[%c0_143, %c0_144] : memref<8x256xf32, #tpu.memory_space<vmem>>, vector<8x256xf32>
    %cst_145 = arith.constant dense<0.000000e+00> : vector<8x256xf32>
    %207 = tpu.matmul %206, %29, %cst_145 {dimension_numbers = #tpu.dot_dimension_numbers<[1], [0], [0], [1], [0, 0, 1, 1], [], []>} : vector<8x256xf32>, vector<256x256xf32>, vector<8x256xf32> -> vector<8x256xf32>
    %208 = arith.addf %205, %207 : vector<8x256xf32>
    %209 = math.tanh %208 : vector<8x256xf32>
    %c0_146 = arith.constant 0 : index
    %c0_147 = arith.constant 0 : index
    %210 = vector.load %arg10[%c0_146, %c0_147] : memref<8x256xf32, #tpu.memory_space<vmem>>, vector<8x256xf32>
    tpu.vector_store %arg10[%c0_146, %c0_147], %209 {strides = array<i32>} : memref<8x256xf32, #tpu.memory_space<vmem>>, vector<8x256xf32>,
    %211 = vector.extract_strided_slice %209 {offsets = [0, 0], sizes = [8, 128], strides = [1, 1]} : vector<8x256xf32> to vector<8x128xf32>
    %212 = arith.index_cast %c7_i32_137 : i32 to index
    %c0_148 = arith.constant 0 : index
    %c0_149 = arith.constant 0 : index
    %213 = vector.load %arg8[%212, %c0_148, %c0_149] : memref<8x8x128xf32, #tpu.memory_space<vmem>>, vector<1x8x128xf32>
    %214 = vector.shape_cast %213 : vector<1x8x128xf32> to vector<8x128xf32>
    %215 = vector.shape_cast %211 : vector<8x128xf32> to vector<1x8x128xf32>
    tpu.vector_store %arg8[%212, %c0_148, %c0_149], %215 {strides = array<i32>} : memref<8x8x128xf32, #tpu.memory_space<vmem>>, vector<1x8x128xf32>,
    %216 = vector.extract_strided_slice %209 {offsets = [0, 128], sizes = [8, 128], strides = [1, 1]} : vector<8x256xf32> to vector<8x128xf32>
    %c7_i32_150 = arith.constant 7 : i32
    %217 = arith.subi %c7_i32_150, %c7_i32_137 : i32
    %218 = arith.index_cast %217 : i32 to index
    %c0_151 = arith.constant 0 : index
    %c0_152 = arith.constant 0 : index
    %219 = vector.load %arg9[%218, %c0_151, %c0_152] : memref<8x8x128xf32, #tpu.memory_space<vmem>>, vector<1x8x128xf32>
    %220 = vector.shape_cast %219 : vector<1x8x128xf32> to vector<8x128xf32>
    %221 = vector.shape_cast %216 : vector<8x128xf32> to vector<1x8x128xf32>
    tpu.vector_store %arg9[%218, %c0_151, %c0_152], %221 {strides = array<i32>} : memref<8x8x128xf32, #tpu.memory_space<vmem>>, vector<1x8x128xf32>,
    %c8_i32 = arith.constant 8 : i32
    return
  }
  func.func @transform_0(%arg0: i32) -> (i32, i32, i32) {
    %c0_i32 = arith.constant 0 : i32
    %c0_i32_0 = arith.constant 0 : i32
    %c0_i32_1 = arith.constant 0 : i32
    return %arg0, %c0_i32, %c0_i32_0 : i32, i32, i32
  }
  func.func @transform_1(%arg0: i32) -> (i32, i32, i32) {
    %c0_i32 = arith.constant 0 : i32
    %c0_i32_0 = arith.constant 0 : i32
    %c0_i32_1 = arith.constant 0 : i32
    return %arg0, %c0_i32, %c0_i32_0 : i32, i32, i32
  }
  func.func @transform_2(%arg0: i32) -> (i32, i32, i32) {
    %c0_i32 = arith.constant 0 : i32
    %0 = arith.subi %c0_i32, %arg0 : i32
    %c0_i32_0 = arith.constant 0 : i32
    %c0_i32_1 = arith.constant 0 : i32
    %c0_i32_2 = arith.constant 0 : i32
    return %0, %c0_i32_0, %c0_i32_1 : i32, i32, i32
  }
  func.func @transform_3(%arg0: i32) -> (i32, i32, i32) {
    %c0_i32 = arith.constant 0 : i32
    %0 = arith.subi %c0_i32, %arg0 : i32
    %c0_i32_0 = arith.constant 0 : i32
    %c0_i32_1 = arith.constant 0 : i32
    %c0_i32_2 = arith.constant 0 : i32
    return %0, %c0_i32_0, %c0_i32_1 : i32, i32, i32
  }
  func.func @transform_4(%arg0: i32) -> (i32, i32, i32) {
    %c0_i32 = arith.constant 0 : i32
    %c0_i32_0 = arith.constant 0 : i32
    %c0_i32_1 = arith.constant 0 : i32
    %c0_i32_2 = arith.constant 0 : i32
    return %c0_i32, %c0_i32_0, %c0_i32_1 : i32, i32, i32
  }
  func.func @transform_5(%arg0: i32) -> (i32, i32) {
    %c0_i32 = arith.constant 0 : i32
    %c0_i32_0 = arith.constant 0 : i32
    %c0_i32_1 = arith.constant 0 : i32
    return %c0_i32, %c0_i32_0 : i32, i32
  }
  func.func @transform_6(%arg0: i32) -> (i32, i32, i32) {
    %c0_i32 = arith.constant 0 : i32
    %c0_i32_0 = arith.constant 0 : i32
    %c0_i32_1 = arith.constant 0 : i32
    %c0_i32_2 = arith.constant 0 : i32
    return %c0_i32, %c0_i32_0, %c0_i32_1 : i32, i32, i32
  }
  func.func @transform_7(%arg0: i32) -> (i32, i32, i32) {
    %c0_i32 = arith.constant 0 : i32
    %c0_i32_0 = arith.constant 0 : i32
    %c0_i32_1 = arith.constant 0 : i32
    return %arg0, %c0_i32, %c0_i32_0 : i32, i32, i32
  }
  func.func @transform_8(%arg0: i32) -> (i32, i32, i32) {
    %c0_i32 = arith.constant 0 : i32
    %0 = arith.subi %c0_i32, %arg0 : i32
    %c0_i32_0 = arith.constant 0 : i32
    %c0_i32_1 = arith.constant 0 : i32
    %c0_i32_2 = arith.constant 0 : i32
    return %0, %c0_i32_0, %c0_i32_1 : i32, i32, i32
  }
}

</mosaic_0001>

<llo_original>
// kernel: _lambda_.5
$region0: #{_lambda_.5}
  #allocation0 [shape = 'u32[]', space=smem, size = 0x4, offset = 0x4, fixed_abs, tag = 'smem constant byte address 0x4 - core index']
  #allocation1 [shape = 'u32[144,128]{1,0:T(1,128)}', space=vmem, size = 0x12000, scoped, tag = 'internal scratch']
  %s0 = inlined_call_operand.vmem [shape: f32[64,128], index: 0, kind: input, shape index: {}]
  %s1 = inlined_call_operand.vmem [shape: f32[64,128], index: 1, kind: input, shape index: {}]
  %s2 = inlined_call_operand.vmem [shape: f32[256,128], index: 2, kind: input, shape index: {}]
  %s3 = inlined_call_operand.vmem [shape: f32[1,128], index: 3, kind: input, shape index: {}]
  %s4 = inlined_call_operand.vmem [shape: f32[64,128], index: 4, kind: output, shape index: {}]
  %s5 = sld [smem:[#allocation0]]
  $region26: #{_lambda_.5} parent=0
    _
  %s7 = ssub.s32 1, %s5
  %s8 = scalar_select 0, %s7, %s5
  // Predicated region
  $region2: #{_lambda_.5} parent=0 // pred_check
    _
  $region3: #{_lambda_.5} parent=0 // pred_check_branch
    %10 = sbr.rel (0) target = $region5
  $region4: #{_lambda_.5} parent=0 // pred_region
    _
  $region5: #{_lambda_.5} parent=0 // pred_fallthru
    _
  // Predicated region
  $region6: #{_lambda_.5} parent=0 // pred_check
    _
  $region7: #{_lambda_.5} parent=0 // pred_check_branch
    %12 = sbr.rel (0) target = $region9
  $region8: #{_lambda_.5} parent=0 // pred_region
    _
  $region9: #{_lambda_.5} parent=0 // pred_fallthru
    _
  // Predicated region
  $region10: #{_lambda_.5} parent=0 // pred_check
    _
  $region11: #{_lambda_.5} parent=0 // pred_check_branch
    %14 = sbr.rel (0) target = $region13
  $region12: #{_lambda_.5} parent=0 // pred_region
    _
  $region13: #{_lambda_.5} parent=0 // pred_fallthru
    _
  // Predicated region
  $region14: #{_lambda_.5} parent=0 // pred_check
    _
  $region15: #{_lambda_.5} parent=0 // pred_check_branch
    %16 = sbr.rel (0) target = $region17
  $region16: #{_lambda_.5} parent=0 // pred_region
    _
  $region17: #{_lambda_.5} parent=0 // pred_fallthru
    _
  %v17 = vld [vmem:[%s0] sm:$0xff]
  %v18 = vld [vmem:[%s0 + $0x8] sm:$0xff]
  %v19 = vld [vmem:[%s0 + $0x10] sm:$0xff]
  %v20 = vld [vmem:[%s0 + $0x18] sm:$0xff]
  %v21 = vld [vmem:[%s0 + $0x20] sm:$0xff]
  %v22 = vld [vmem:[%s0 + $0x28] sm:$0xff]
  %v23 = vld [vmem:[%s0 + $0x30] sm:$0xff]
  %v24 = vld [vmem:[%s0 + $0x38] sm:$0xff]
  %v25 = vld [vmem:[%s1] sm:$0xff]
  %v26 = vld [vmem:[%s1 + $0x8] sm:$0xff]
  %v27 = vld [vmem:[%s1 + $0x10] sm:$0xff]
  %v28 = vld [vmem:[%s1 + $0x18] sm:$0xff]
  %v29 = vld [vmem:[%s1 + $0x20] sm:$0xff]
  %v30 = vld [vmem:[%s1 + $0x28] sm:$0xff]
  %v31 = vld [vmem:[%s1 + $0x30] sm:$0xff]
  %v32 = vld [vmem:[%s1 + $0x38] sm:$0xff]
  %v33 = vld [vmem:[%s2] sm:$0xff]
  %v34 = vld [vmem:[%s2 + $0x8] sm:$0xff]
  %v35 = vld [vmem:[%s2 + $0x10] sm:$0xff]
  %v36 = vld [vmem:[%s2 + $0x18] sm:$0xff]
  %v37 = vld [vmem:[%s2 + $0x20] sm:$0xff]
  %v38 = vld [vmem:[%s2 + $0x28] sm:$0xff]
  %v39 = vld [vmem:[%s2 + $0x30] sm:$0xff]
  %v40 = vld [vmem:[%s2 + $0x38] sm:$0xff]
  %v41 = vld [vmem:[%s2 + $0x40] sm:$0xff]
  %v42 = vld [vmem:[%s2 + $0x48] sm:$0xff]
  %v43 = vld [vmem:[%s2 + $0x50] sm:$0xff]
  %v44 = vld [vmem:[%s2 + $0x58] sm:$0xff]
  %v45 = vld [vmem:[%s2 + $0x60] sm:$0xff]
  %v46 = vld [vmem:[%s2 + $0x68] sm:$0xff]
  %v47 = vld [vmem:[%s2 + $0x70] sm:$0xff]
  %v48 = vld [vmem:[%s2 + $0x78] sm:$0xff]
  %v49 = vld [vmem:[%s2 + $0x80] sm:$0xff]
  %v50 = vld [vmem:[%s2 + $0x88] sm:$0xff]
  %v51 = vld [vmem:[%s2 + $0x90] sm:$0xff]
  %v52 = vld [vmem:[%s2 + $0x98] sm:$0xff]
  %v53 = vld [vmem:[%s2 + $0xa0] sm:$0xff]
  %v54 = vld [vmem:[%s2 + $0xa8] sm:$0xff]
  %v55 = vld [vmem:[%s2 + $0xb0] sm:$0xff]
  %v56 = vld [vmem:[%s2 + $0xb8] sm:$0xff]
  %v57 = vld [vmem:[%s2 + $0xc0] sm:$0xff]
  %v58 = vld [vmem:[%s2 + $0xc8] sm:$0xff]
  %v59 = vld [vmem:[%s2 + $0xd0] sm:$0xff]
  %v60 = vld [vmem:[%s2 + $0xd8] sm:$0xff]
  %v61 = vld [vmem:[%s2 + $0xe0] sm:$0xff]
  %v62 = vld [vmem:[%s2 + $0xe8] sm:$0xff]
  %v63 = vld [vmem:[%s2 + $0xf0] sm:$0xff]
  %v64 = vld [vmem:[%s2 + $0xf8] sm:$0xff]
  %v65 = vld [vmem:[%s3] sm:$0x1]
  %v67 = vlaneseq
  %v68 = vshrl.u32 %v67, 7
  %v69 = vsub.s32 0, %v68
  %v70 = vrot.slane %v65, %v69
  %72 = vmatprep.subr.mxu0 0.0
  %73 = vmatpush1.msra.mxu0 %v33
  %74 = vmatprep.subr.mxu0 0.0
  %75 = vmatpush1.msra.mxu0 %v34
  %76 = vmatprep.subr.mxu0 0.0
  %77 = vmatpush1.msra.mxu0 %v35
  %78 = vmatprep.subr.mxu0 0.0
  %79 = vmatpush1.msra.mxu0 %v36
  %80 = vmatprep.subr.mxu0 0.0
  %81 = vmatpush1.msra.mxu0 %v37
  %82 = vmatprep.subr.mxu0 0.0
  %83 = vmatpush1.msra.mxu0 %v38
  %84 = vmatprep.subr.mxu0 0.0
  %85 = vmatpush1.msra.mxu0 %v39
  %86 = vmatprep.subr.mxu0 0.0
  %87 = vmatpush1.msra.mxu0 %v40
  %88 = vmatprep.subr.mxu0 0.0
  %89 = vmatpush1.msra.mxu0 %v41
  %90 = vmatprep.subr.mxu0 0.0
  %91 = vmatpush1.msra.mxu0 %v42
  %92 = vmatprep.subr.mxu0 0.0
  %93 = vmatpush1.msra.mxu0 %v43
  %94 = vmatprep.subr.mxu0 0.0
  %95 = vmatpush1.msra.mxu0 %v44
  %96 = vmatprep.subr.mxu0 0.0
  %97 = vmatpush1.msra.mxu0 %v45
  %98 = vmatprep.subr.mxu0 0.0
  %99 = vmatpush1.msra.mxu0 %v46
  %100 = vmatprep.subr.mxu0 0.0
  %101 = vmatpush1.msra.mxu0 %v47
  %102 = vmatprep.subr.mxu0 0.0
  %103 = vmatpush1.msra.mxu0 %v48
  %104 = vmatprep.subr.mxu0 0.0
  %105 = vmatpush1.msra.mxu0 %v49
  %106 = vmatprep.subr.mxu0 0.0
  %107 = vmatpush1.msra.mxu0 %v50
  %108 = vmatprep.subr.mxu0 0.0
  %109 = vmatpush1.msra.mxu0 %v51
  %110 = vmatprep.subr.mxu0 0.0
  %111 = vmatpush1.msra.mxu0 %v52
  %112 = vmatprep.subr.mxu0 0.0
  %113 = vmatpush1.msra.mxu0 %v53
  %114 = vmatprep.subr.mxu0 0.0
  %115 = vmatpush1.msra.mxu0 %v54
  %116 = vmatprep.subr.mxu0 0.0
  %117 = vmatpush1.msra.mxu0 %v55
  %118 = vmatprep.subr.mxu0 0.0
  %119 = vmatpush1.msra.mxu0 %v56
  %120 = vmatprep.subr.mxu0 0.0
  %121 = vmatpush1.msra.mxu0 %v57
  %122 = vmatprep.subr.mxu0 0.0
  %123 = vmatpush1.msra.mxu0 %v58
  %124 = vmatprep.subr.mxu0 0.0
  %125 = vmatpush1.msra.mxu0 %v59
  %126 = vmatprep.subr.mxu0 0.0
  %127 = vmatpush1.msra.mxu0 %v60
  %128 = vmatprep.subr.mxu0 0.0
  %129 = vmatpush1.msra.mxu0 %v61
  %130 = vmatprep.subr.mxu0 0.0
  %131 = vmatpush1.msra.mxu0 %v62
  %132 = vmatprep.subr.mxu0 0.0
  %133 = vmatpush1.msra.mxu0 %v63
  %134 = vmatprep.subr.mxu0 0.0
  %135 = vmatpush1.msra.mxu0 %v64
  %136 = vmatprep.mubr.f32.mxu0 %v25
  %137 = vmatmul.mubr.f32.gmra.mrb[0].mxu0 %v17
  %v138 = vpop.f32.mrb[0].mxu0
  %v139 = vadd.f32 %v70, %v138
  %v140 = vpop.f32.mrb[0].mxu0
  %141 = vmatprep.mubr.f32.mxu0 %v26
  %142 = vmatmul.mubr.f32.gmra.mrb[0].mxu0 %v18
  %v143 = vpop.f32.mrb[0].mxu0
  %v144 = vadd.f32 %v70, %v143
  %v145 = vpop.f32.mrb[0].mxu0
  %146 = vmatprep.mubr.f32.mxu0 %v27
  %147 = vmatmul.mubr.f32.gmra.mrb[0].mxu0 %v19
  %v148 = vpop.f32.mrb[0].mxu0
  %v149 = vadd.f32 %v70, %v148
  %v150 = vpop.f32.mrb[0].mxu0
  %151 = vmatprep.mubr.f32.mxu0 %v28
  %152 = vmatmul.mubr.f32.gmra.mrb[0].mxu0 %v20
  %v153 = vpop.f32.mrb[0].mxu0
  %v154 = vadd.f32 %v70, %v153
  %v155 = vpop.f32.mrb[0].mxu0
  %156 = vmatprep.mubr.f32.mxu0 %v29
  %157 = vmatmul.mubr.f32.gmra.mrb[0].mxu0 %v21
  %v158 = vpop.f32.mrb[0].mxu0
  %v159 = vadd.f32 %v70, %v158
  %v160 = vpop.f32.mrb[0].mxu0
  %161 = vmatprep.mubr.f32.mxu0 %v30
  %162 = vmatmul.mubr.f32.gmra.mrb[0].mxu0 %v22
  %v163 = vpop.f32.mrb[0].mxu0
  %v164 = vadd.f32 %v70, %v163
  %v165 = vpop.f32.mrb[0].mxu0
  %166 = vmatprep.mubr.f32.mxu0 %v31
  %167 = vmatmul.mubr.f32.gmra.mrb[0].mxu0 %v23
  %v168 = vpop.f32.mrb[0].mxu0
  %v169 = vadd.f32 %v70, %v168
  %v170 = vpop.f32.mrb[0].mxu0
  %171 = vmatprep.mubr.f32.mxu0 %v32
  %172 = vmatmul.mubr.f32.gmra.mrb[0].mxu0 %v24
  %v173 = vpop.f32.mrb[0].mxu0
  %v174 = vadd.f32 %v70, %v173
  %v175 = vpop.f32.mrb[0].mxu0
  %176 = vdwg.mxu0
  %177 = vst [vmem:[%s4] sm:$0xff] %v139
  %178 = vst [vmem:[%s4 + $0x8] sm:$0xff] %v144
  %179 = vst [vmem:[%s4 + $0x10] sm:$0xff] %v149
  %180 = vst [vmem:[%s4 + $0x18] sm:$0xff] %v154
  %181 = vst [vmem:[%s4 + $0x20] sm:$0xff] %v159
  %182 = vst [vmem:[%s4 + $0x28] sm:$0xff] %v164
  %183 = vst [vmem:[%s4 + $0x30] sm:$0xff] %v169
  %184 = vst [vmem:[%s4 + $0x38] sm:$0xff] %v174
  // Predicated region
  $region18: #{_lambda_.5} parent=0 // pred_check
    _
  $region19: #{_lambda_.5} parent=0 // pred_check_branch
    %186 = sbr.rel (0) target = $region21
  $region20: #{_lambda_.5} parent=0 // pred_region
    _
  $region21: #{_lambda_.5} parent=0 // pred_fallthru
    _
  // Predicated region
  $region22: #{_lambda_.5} parent=0 // pred_check
    _
  $region23: #{_lambda_.5} parent=0 // pred_check_branch
    %188 = sbr.rel (0) target = $region25
  $region24: #{_lambda_.5} parent=0 // pred_region
    _
  $region25: #{_lambda_.5} parent=0 // pred_fallthru
    _

// kernel: _lambda_.4
$region0: #{_lambda_.4}
  #allocation0 [shape = 'u32[]', space=smem, size = 0x4, offset = 0x4, fixed_abs, tag = 'smem constant byte address 0x4 - core index']
  #allocation1 [shape = 'u32[144,128]{1,0:T(1,128)}', space=vmem, size = 0x12000, scoped, tag = 'internal scratch']
  #allocation2 [shape = 'f32[8,256]{1,0:T(8,128)}', space=vmem, size = 0x2000, scoped, tag = 'scratch operand']
  #allocation3 [shape = 'f32[8,8,128]{2,1,0:T(8,128)}', space=vmem, size = 0x8000, scoped, tag = 'scratch operand']
  #allocation4 [shape = 'f32[8,8,128]{2,1,0:T(8,128)}', space=vmem, size = 0x8000, scoped, tag = 'scratch operand']
  %s0 = inlined_call_operand.vmem [shape: f32[8,8,128], index: 0, kind: input, shape index: {}, may-alias: {0,2}]
  %s1 = inlined_call_operand.vmem [shape: f32[8,8,128], index: 1, kind: input, shape index: {}, may-alias: {1,3}]
  %s2 = inlined_call_operand.vmem [shape: f32[8,8,128], index: 2, kind: input, shape index: {}, may-alias: {0,2}]
  %s3 = inlined_call_operand.vmem [shape: f32[8,8,128], index: 3, kind: input, shape index: {}, may-alias: {1,3}]
  %s4 = inlined_call_operand.hbm [shape: f32[2,256,128], index: 4, kind: input, shape index: {}]
  %s5 = inlined_call_operand.vmem [shape: f32[256,256], index: 5, kind: input, shape index: {}]
  %s6 = inlined_call_operand.vmem [shape: f32[2,1,128], index: 6, kind: input, shape index: {}]
  %s7 = inlined_call_operand.vmem [shape: f32[8,8,128], index: 7, kind: output, shape index: {0}]
  %s8 = inlined_call_operand.vmem [shape: f32[8,8,128], index: 8, kind: output, shape index: {1}]
  %9 = xla_tuple %s7, %s8
  %s10 = sld [smem:[#allocation0]]
  $region54: #{_lambda_.4} parent=0
    _
  %s12 = ssub.s32 1, %s10
  %s13 = scalar_select 0, %s12, %s10
  $region1: #{_lambda_.4} parent=0
    #allocation5 [shape = 'u8[262144]{0}', space=vmem, size = 0x40000, scoped, tag = 'input window, operand 4, single buffered']
    #allocation6 [shape = 's32[1]{0}', space=sflag, size = 0x4, scoped, tag = 'scoped memory for _lambda_.4']
    %14 = vsyncpa [#allocation6], 0
    // Predicated region
    $region2: #{_lambda_.4} parent=1 // pred_check
      _
    $region3: #{_lambda_.4} parent=1 // pred_check_branch
      %16 = sbr.rel (0) target = $region5
    $region4: #{_lambda_.4} parent=1 // pred_region
      _
    $region5: #{_lambda_.4} parent=1 // pred_fallthru
      _
    // Predicated region
    $region6: #{_lambda_.4} parent=1 // pred_check
      _
    $region7: #{_lambda_.4} parent=1 // pred_check_branch
      %18 = sbr.rel (0) target = $region9
    $region8: #{_lambda_.4} parent=1 // pred_region
      _
    $region9: #{_lambda_.4} parent=1 // pred_fallthru
      _
    // Predicated region
    $region10: #{_lambda_.4} parent=1 // pred_check
      _
    $region11: #{_lambda_.4} parent=1 // pred_check_branch
      %20 = sbr.rel (0) target = $region13
    $region12: #{_lambda_.4} parent=1 // pred_region
      %s21 = ssub.s32 0, 0
      %s22 = smul.u32 8, %s21
      %p23 = scmp.lt.s32.totalorder %s22, 7
      %s24 = scalar_select %p23, %s22, 7
      %s25 = smul.addr %s24, 8
      %s26 = scalar_lea.vmem %s2, %s25
      %s27 = ssub.s32 0, 0
      %s28 = smul.u32 8, %s27
    $region13: #{_lambda_.4} parent=1 // pred_fallthru
      _
    // Predicated region
    $region14: #{_lambda_.4} parent=1 // pred_check
      _
    $region15: #{_lambda_.4} parent=1 // pred_check_branch
      %30 = sbr.rel (0) target = $region17
    $region16: #{_lambda_.4} parent=1 // pred_region
      %s31 = ssub.s32 0, 0
      %s32 = smul.u32 8, %s31
      %p33 = scmp.lt.s32.totalorder %s32, 7
      %s34 = scalar_select %p33, %s32, 7
      %s35 = smul.addr %s34, 8
      %s36 = scalar_lea.vmem %s3, %s35
      %s37 = ssub.s32 0, 0
      %s38 = smul.u32 8, %s37
    $region17: #{_lambda_.4} parent=1 // pred_fallthru
      _
    // Predicated region
    $region18: #{_lambda_.4} parent=1 // pred_check
      _
    $region19: #{_lambda_.4} parent=1 // pred_check_branch
      %40 = sbr.rel (0) target = $region21
    $region20: #{_lambda_.4} parent=1 // pred_region
      %s42 = ssub.s32 8192, 8192
      %43 = vsyncadd [#allocation6], %s42
      %s44 = sshll.u32 [#allocation5], 4
      %s45 = int_to_ptr.vmem [resolvable:$true] %s44
      %50 = dma.hbm_to_vmem [thread:$0]  %s4, 8192, %s45, [#allocation6], 128, 128, 8
    $region21: #{_lambda_.4} parent=1 // pred_fallthru
      _
    // Predicated region
    $region22: #{_lambda_.4} parent=1 // pred_check
      _
    $region23: #{_lambda_.4} parent=1 // pred_check_branch
      %52 = sbr.rel (0) target = $region25
    $region24: #{_lambda_.4} parent=1 // pred_region
      _
    $region25: #{_lambda_.4} parent=1 // pred_fallthru
      _
    // Predicated region
    $region26: #{_lambda_.4} parent=1 // pred_check
      _
    $region27: #{_lambda_.4} parent=1 // pred_check_branch
      %54 = sbr.rel (0) target = $region29
    $region28: #{_lambda_.4} parent=1 // pred_region
      _
    $region29: #{_lambda_.4} parent=1 // pred_fallthru
      _
    // Predicated region
    $region30: #{_lambda_.4} parent=1 // pred_check
      _
    $region31: #{_lambda_.4} parent=1 // pred_check_branch
      %56 = sbr.rel (0) target = $region33
    $region32: #{_lambda_.4} parent=1 // pred_region
      %57 = dma.done [#allocation6], 8192
    $region33: #{_lambda_.4} parent=1 // pred_fallthru
      _
    %s58 = ssub.s32 0, 0
    %s59 = smul.u32 8, %s58
    %p60 = scmp.lt.s32.totalorder %s59, 7
    %s61 = scalar_select %p60, %s59, 7
    %s62 = smul.addr %s61, 8
    %s63 = scalar_lea.vmem %s2, %s62
    %s64 = ssub.s32 0, 0
    %s65 = smul.u32 8, %s64
    %p66 = scmp.lt.s32.totalorder %s65, 7
    %s67 = scalar_select %p66, %s65, 7
    %s68 = smul.addr %s67, 8
    %s69 = scalar_lea.vmem %s3, %s68
    %s70 = ssub.s32 0, 0
    %s71 = smul.u32 8, %s70
    %p72 = scmp.lt.s32.totalorder %s71, 7
    %s73 = scalar_select %p72, %s71, 7
    %s74 = smul.addr %s73, 8
    %s75 = scalar_lea.vmem %s8, %s74
    %s76 = ssub.s32 0, 0
    %s77 = smul.u32 8, %s76
    %p78 = scmp.lt.s32.totalorder %s77, 7
    %s79 = scalar_select %p78, %s77, 7
    %s80 = smul.addr %s79, 8
    %s81 = scalar_lea.vmem %s2, %s80
    %s82 = ssub.s32 0, 0
    %s83 = smul.u32 8, %s82
    %s84 = ssub.s32 0, 0
    %s85 = smul.u32 8, %s84
    %p86 = scmp.lt.s32.totalorder %s85, 7
    %s87 = scalar_select %p86, %s85, 7
    %s88 = smul.addr %s87, 8
    %s89 = scalar_lea.vmem %s3, %s88
    %s90 = ssub.s32 0, 0
    %s91 = smul.u32 8, %s90
    %s92 = ssub.s32 0, 0
    %s93 = smul.u32 8, %s92
    %p94 = scmp.lt.s32.totalorder %s93, 7
    %s95 = scalar_select %p94, %s93, 7
    %s96 = smul.addr %s95, 8
    %s97 = scalar_lea.vmem %s8, %s96
    %s98 = ssub.s32 0, 0
    %s99 = smul.u32 8, %s98
    %p100 = scmp.eq.s32.totalorder 0, 0
    // Predicated region
    $region34: #{_lambda_.4} parent=1 // pred_check
      %p101 = pneg %p100
    $region35: #{_lambda_.4} parent=1 // pred_check_branch
      %103 = sbr.rel (%p101) target = $region37
    $region36: #{_lambda_.4} parent=1 // pred_region
      %104 = vst [vmem:[#allocation2] sm:$0xff] 0.0
      %105 = vst [vmem:[#allocation2 + $0x8] sm:$0xff] 0.0
    $region37: #{_lambda_.4} parent=1 // pred_fallthru
      _
    %v106 = vld [vmem:[%s0] sm:$0xff]
    %v107 = vld [vmem:[%s0 + $0x8] sm:$0xff]
    %v108 = vld [vmem:[%s0 + $0x10] sm:$0xff]
    %v109 = vld [vmem:[%s0 + $0x18] sm:$0xff]
    %v110 = vld [vmem:[%s0 + $0x20] sm:$0xff]
    %v111 = vld [vmem:[%s0 + $0x28] sm:$0xff]
    %v112 = vld [vmem:[%s0 + $0x30] sm:$0xff]
    %v113 = vld [vmem:[%s0 + $0x38] sm:$0xff]
    %v114 = vld [vmem:[%s1] sm:$0xff]
    %v115 = vld [vmem:[%s1 + $0x8] sm:$0xff]
    %v116 = vld [vmem:[%s1 + $0x10] sm:$0xff]
    %v117 = vld [vmem:[%s1 + $0x18] sm:$0xff]
    %v118 = vld [vmem:[%s1 + $0x20] sm:$0xff]
    %v119 = vld [vmem:[%s1 + $0x28] sm:$0xff]
    %v120 = vld [vmem:[%s1 + $0x30] sm:$0xff]
    %v121 = vld [vmem:[%s1 + $0x38] sm:$0xff]
    %v122 = vld [vmem:[%s81] sm:$0xff]
    %v123 = vld [vmem:[%s81 + $0x8] sm:$0xff]
    %v124 = vld [vmem:[%s81 + $0x10] sm:$0xff]
    %v125 = vld [vmem:[%s81 + $0x18] sm:$0xff]
    %v126 = vld [vmem:[%s81 + $0x20] sm:$0xff]
    %v127 = vld [vmem:[%s81 + $0x28] sm:$0xff]
    %v128 = vld [vmem:[%s81 + $0x30] sm:$0xff]
    %v129 = vld [vmem:[%s81 + $0x38] sm:$0xff]
    %v130 = vld [vmem:[%s89] sm:$0xff]
    %v131 = vld [vmem:[%s89 + $0x8] sm:$0xff]
    %v132 = vld [vmem:[%s89 + $0x10] sm:$0xff]
    %v133 = vld [vmem:[%s89 + $0x18] sm:$0xff]
    %v134 = vld [vmem:[%s89 + $0x20] sm:$0xff]
    %v135 = vld [vmem:[%s89 + $0x28] sm:$0xff]
    %v136 = vld [vmem:[%s89 + $0x30] sm:$0xff]
    %v137 = vld [vmem:[%s89 + $0x38] sm:$0xff]
    %v138 = vld [vmem:[#allocation5] sm:$0xff]
    %v139 = vld [vmem:[#allocation5 + $0x8] sm:$0xff]
    %v140 = vld [vmem:[#allocation5 + $0x10] sm:$0xff]
    %v141 = vld [vmem:[#allocation5 + $0x18] sm:$0xff]
    %v142 = vld [vmem:[#allocation5 + $0x20] sm:$0xff]
    %v143 = vld [vmem:[#allocation5 + $0x28] sm:$0xff]
    %v144 = vld [vmem:[#allocation5 + $0x30] sm:$0xff]
    %v145 = vld [vmem:[#allocation5 + $0x38] sm:$0xff]
    %v146 = vld [vmem:[#allocation5 + $0x40] sm:$0xff]
    %v147 = vld [vmem:[#allocation5 + $0x48] sm:$0xff]
    %v148 = vld [vmem:[#allocation5 + $0x50] sm:$0xff]
    %v149 = vld [vmem:[#allocation5 + $0x58] sm:$0xff]
    %v150 = vld [vmem:[#allocation5 + $0x60] sm:$0xff]
    %v151 = vld [vmem:[#allocation5 + $0x68] sm:$0xff]
    %v152 = vld [vmem:[#allocation5 + $0x70] sm:$0xff]
    %v153 = vld [vmem:[#allocation5 + $0x78] sm:$0xff]
    %v154 = vld [vmem:[#allocation5 + $0x80] sm:$0xff]
    %v155 = vld [vmem:[#allocation5 + $0x88] sm:$0xff]
    %v156 = vld [vmem:[#allocation5 + $0x90] sm:$0xff]
    %v157 = vld [vmem:[#allocation5 + $0x98] sm:$0xff]
    %v158 = vld [vmem:[#allocation5 + $0xa0] sm:$0xff]
    %v159 = vld [vmem:[#allocation5 + $0xa8] sm:$0xff]
    %v160 = vld [vmem:[#allocation5 + $0xb0] sm:$0xff]
    %v161 = vld [vmem:[#allocation5 + $0xb8] sm:$0xff]
    %v162 = vld [vmem:[#allocation5 + $0xc0] sm:$0xff]
    %v163 = vld [vmem:[#allocation5 + $0xc8] sm:$0xff]
    %v164 = vld [vmem:[#allocation5 + $0xd0] sm:$0xff]
    %v165 = vld [vmem:[#allocation5 + $0xd8] sm:$0xff]
    %v166 = vld [vmem:[#allocation5 + $0xe0] sm:$0xff]
    %v167 = vld [vmem:[#allocation5 + $0xe8] sm:$0xff]
    %v168 = vld [vmem:[#allocation5 + $0xf0] sm:$0xff]
    %v169 = vld [vmem:[#allocation5 + $0xf8] sm:$0xff]
    %v170 = vld [vmem:[%s6] sm:$0x1]
    %v172 = vlaneseq
    %v173 = vshrl.u32 %v172, 7
    %v174 = vsub.s32 0, %v173
    %v175 = vrot.slane %v170, %v174
    %177 = vmatprep.subr.mxu0 0.0
    %178 = vmatpush1.msra.mxu0 %v138
    %179 = vmatprep.subr.mxu0 0.0
    %180 = vmatpush1.msra.mxu0 %v139
    %181 = vmatprep.subr.mxu0 0.0
    %182 = vmatpush1.msra.mxu0 %v140
    %183 = vmatprep.subr.mxu0 0.0
    %184 = vmatpush1.msra.mxu0 %v141
    %185 = vmatprep.subr.mxu0 0.0
    %186 = vmatpush1.msra.mxu0 %v142
    %187 = vmatprep.subr.mxu0 0.0
    %188 = vmatpush1.msra.mxu0 %v143
    %189 = vmatprep.subr.mxu0 0.0
    %190 = vmatpush1.msra.mxu0 %v144
    %191 = vmatprep.subr.mxu0 0.0
    %192 = vmatpush1.msra.mxu0 %v145
    %193 = vmatprep.subr.mxu0 0.0
    %194 = vmatpush1.msra.mxu0 %v146
    %195 = vmatprep.subr.mxu0 0.0
    %196 = vmatpush1.msra.mxu0 %v147
    %197 = vmatprep.subr.mxu0 0.0
    %198 = vmatpush1.msra.mxu0 %v148
    %199 = vmatprep.subr.mxu0 0.0
    %200 = vmatpush1.msra.mxu0 %v149
    %201 = vmatprep.subr.mxu0 0.0
    %202 = vmatpush1.msra.mxu0 %v150
    %203 = vmatprep.subr.mxu0 0.0
    %204 = vmatpush1.msra.mxu0 %v151
    %205 = vmatprep.subr.mxu0 0.0
    %206 = vmatpush1.msra.mxu0 %v152
    %207 = vmatprep.subr.mxu0 0.0
    %208 = vmatpush1.msra.mxu0 %v153
    %209 = vmatprep.subr.mxu0 0.0
    %210 = vmatpush1.msra.mxu0 %v154
    %211 = vmatprep.subr.mxu0 0.0
    %212 = vmatpush1.msra.mxu0 %v155
    %213 = vmatprep.subr.mxu0 0.0
    %214 = vmatpush1.msra.mxu0 %v156
    %215 = vmatprep.subr.mxu0 0.0
    %216 = vmatpush1.msra.mxu0 %v157
    %217 = vmatprep.subr.mxu0 0.0
    %218 = vmatpush1.msra.mxu0 %v158
    %219 = vmatprep.subr.mxu0 0.0
    %220 = vmatpush1.msra.mxu0 %v159
    %221 = vmatprep.subr.mxu0 0.0
    %222 = vmatpush1.msra.mxu0 %v160
    %223 = vmatprep.subr.mxu0 0.0
    %224 = vmatpush1.msra.mxu0 %v161
    %225 = vmatprep.subr.mxu0 0.0
    %226 = vmatpush1.msra.mxu0 %v162
    %227 = vmatprep.subr.mxu0 0.0
    %228 = vmatpush1.msra.mxu0 %v163
    %229 = vmatprep.subr.mxu0 0.0
    %230 = vmatpush1.msra.mxu0 %v164
    %231 = vmatprep.subr.mxu0 0.0
    %232 = vmatpush1.msra.mxu0 %v165
    %233 = vmatprep.subr.mxu0 0.0
    %234 = vmatpush1.msra.mxu0 %v166
    %235 = vmatprep.subr.mxu0 0.0
    %236 = vmatpush1.msra.mxu0 %v167
    %237 = vmatprep.subr.mxu0 0.0
    %238 = vmatpush1.msra.mxu0 %v168
    %239 = vmatprep.subr.mxu0 0.0
    %240 = vmatpush1.msra.mxu0 %v169
    %241 = vmatprep.mubr.f32.mxu0 %v114
    %242 = vmatmul.mubr.f32.gmra.mrb[0].mxu0 %v106
    %v243 = vpop.f32.mrb[0].mxu0
    %v244 = vadd.f32 %v175, %v243
    %v245 = vpop.f32.mrb[0].mxu0
    %246 = vmatprep.mubr.f32.mxu0 %v115
    %247 = vmatmul.mubr.f32.gmra.mrb[0].mxu0 %v107
    %v248 = vpop.f32.mrb[0].mxu0
    %v249 = vadd.f32 %v175, %v248
    %v250 = vpop.f32.mrb[0].mxu0
    %251 = vmatprep.mubr.f32.mxu0 %v116
    %252 = vmatmul.mubr.f32.gmra.mrb[0].mxu0 %v108
    %v253 = vpop.f32.mrb[0].mxu0
    %v254 = vadd.f32 %v175, %v253
    %v255 = vpop.f32.mrb[0].mxu0
    %256 = vmatprep.mubr.f32.mxu0 %v117
    %257 = vmatmul.mubr.f32.gmra.mrb[0].mxu0 %v109
    %v258 = vpop.f32.mrb[0].mxu0
    %v259 = vadd.f32 %v175, %v258
    %v260 = vpop.f32.mrb[0].mxu0
    %261 = vmatprep.mubr.f32.mxu0 %v118
    %262 = vmatmul.mubr.f32.gmra.mrb[0].mxu0 %v110
    %v263 = vpop.f32.mrb[0].mxu0
    %v264 = vadd.f32 %v175, %v263
    %v265 = vpop.f32.mrb[0].mxu0
    %266 = vmatprep.mubr.f32.mxu0 %v119
    %267 = vmatmul.mubr.f32.gmra.mrb[0].mxu0 %v111
    %v268 = vpop.f32.mrb[0].mxu0
    %v269 = vadd.f32 %v175, %v268
    %v270 = vpop.f32.mrb[0].mxu0
    %271 = vmatprep.mubr.f32.mxu0 %v120
    %272 = vmatmul.mubr.f32.gmra.mrb[0].mxu0 %v112
    %v273 = vpop.f32.mrb[0].mxu0
    %v274 = vadd.f32 %v175, %v273
    %v275 = vpop.f32.mrb[0].mxu0
    %276 = vmatprep.mubr.f32.mxu0 %v121
    %277 = vmatmul.mubr.f32.gmra.mrb[0].mxu0 %v113
    %v278 = vpop.f32.mrb[0].mxu0
    %v279 = vadd.f32 %v175, %v278
    %v280 = vpop.f32.mrb[0].mxu0
    %281 = vdwg.mxu0
    %282 = vst [vmem:[#allocation3] sm:$0xff] %v244
    %283 = vst [vmem:[#allocation3 + $0x8] sm:$0xff] %v249
    %284 = vst [vmem:[#allocation3 + $0x10] sm:$0xff] %v254
    %285 = vst [vmem:[#allocation3 + $0x18] sm:$0xff] %v259
    %286 = vst [vmem:[#allocation3 + $0x20] sm:$0xff] %v264
    %287 = vst [vmem:[#allocation3 + $0x28] sm:$0xff] %v269
    %288 = vst [vmem:[#allocation3 + $0x30] sm:$0xff] %v274
    %289 = vst [vmem:[#allocation3 + $0x38] sm:$0xff] %v279
    %s290 = scalar_lea.vmem [#allocation5], 256
    %v291 = vld [vmem:[%s290] sm:$0xff]
    %v292 = vld [vmem:[%s290 + $0x8] sm:$0xff]
    %v293 = vld [vmem:[%s290 + $0x10] sm:$0xff]
    %v294 = vld [vmem:[%s290 + $0x18] sm:$0xff]
    %v295 = vld [vmem:[%s290 + $0x20] sm:$0xff]
    %v296 = vld [vmem:[%s290 + $0x28] sm:$0xff]
    %v297 = vld [vmem:[%s290 + $0x30] sm:$0xff]
    %v298 = vld [vmem:[%s290 + $0x38] sm:$0xff]
    %v299 = vld [vmem:[%s290 + $0x40] sm:$0xff]
    %v300 = vld [vmem:[%s290 + $0x48] sm:$0xff]
    %v301 = vld [vmem:[%s290 + $0x50] sm:$0xff]
    %v302 = vld [vmem:[%s290 + $0x58] sm:$0xff]
    %v303 = vld [vmem:[%s290 + $0x60] sm:$0xff]
    %v304 = vld [vmem:[%s290 + $0x68] sm:$0xff]
    %v305 = vld [vmem:[%s290 + $0x70] sm:$0xff]
    %v306 = vld [vmem:[%s290 + $0x78] sm:$0xff]
    %v307 = vld [vmem:[%s290 + $0x80] sm:$0xff]
    %v308 = vld [vmem:[%s290 + $0x88] sm:$0xff]
    %v309 = vld [vmem:[%s290 + $0x90] sm:$0xff]
    %v310 = vld [vmem:[%s290 + $0x98] sm:$0xff]
    %v311 = vld [vmem:[%s290 + $0xa0] sm:$0xff]
    %v312 = vld [vmem:[%s290 + $0xa8] sm:$0xff]
    %v313 = vld [vmem:[%s290 + $0xb0] sm:$0xff]
    %v314 = vld [vmem:[%s290 + $0xb8] sm:$0xff]
    %v315 = vld [vmem:[%s290 + $0xc0] sm:$0xff]
    %v316 = vld [vmem:[%s290 + $0xc8] sm:$0xff]
    %v317 = vld [vmem:[%s290 + $0xd0] sm:$0xff]
    %v318 = vld [vmem:[%s290 + $0xd8] sm:$0xff]
    %v319 = vld [vmem:[%s290 + $0xe0] sm:$0xff]
    %v320 = vld [vmem:[%s290 + $0xe8] sm:$0xff]
    %v321 = vld [vmem:[%s290 + $0xf0] sm:$0xff]
    %v322 = vld [vmem:[%s290 + $0xf8] sm:$0xff]
    %s323 = scalar_lea.vmem %s6, 1
    %v324 = vld [vmem:[%s323] sm:$0x1]
    %v326 = vlaneseq
    %v327 = vshrl.u32 %v326, 7
    %v328 = vsub.s32 0, %v327
    %v329 = vrot.slane %v324, %v328
    %331 = vmatprep.subr.mxu0 0.0
    %332 = vmatpush1.msra.mxu0 %v291
    %333 = vmatprep.subr.mxu0 0.0
    %334 = vmatpush1.msra.mxu0 %v292
    %335 = vmatprep.subr.mxu0 0.0
    %336 = vmatpush1.msra.mxu0 %v293
    %337 = vmatprep.subr.mxu0 0.0
    %338 = vmatpush1.msra.mxu0 %v294
    %339 = vmatprep.subr.mxu0 0.0
    %340 = vmatpush1.msra.mxu0 %v295
    %341 = vmatprep.subr.mxu0 0.0
    %342 = vmatpush1.msra.mxu0 %v296
    %343 = vmatprep.subr.mxu0 0.0
    %344 = vmatpush1.msra.mxu0 %v297
    %345 = vmatprep.subr.mxu0 0.0
    %346 = vmatpush1.msra.mxu0 %v298
    %347 = vmatprep.subr.mxu0 0.0
    %348 = vmatpush1.msra.mxu0 %v299
    %349 = vmatprep.subr.mxu0 0.0
    %350 = vmatpush1.msra.mxu0 %v300
    %351 = vmatprep.subr.mxu0 0.0
    %352 = vmatpush1.msra.mxu0 %v301
    %353 = vmatprep.subr.mxu0 0.0
    %354 = vmatpush1.msra.mxu0 %v302
    %355 = vmatprep.subr.mxu0 0.0
    %356 = vmatpush1.msra.mxu0 %v303
    %357 = vmatprep.subr.mxu0 0.0
    %358 = vmatpush1.msra.mxu0 %v304
    %359 = vmatprep.subr.mxu0 0.0
    %360 = vmatpush1.msra.mxu0 %v305
    %361 = vmatprep.subr.mxu0 0.0
    %362 = vmatpush1.msra.mxu0 %v306
    %363 = vmatprep.subr.mxu0 0.0
    %364 = vmatpush1.msra.mxu0 %v307
    %365 = vmatprep.subr.mxu0 0.0
    %366 = vmatpush1.msra.mxu0 %v308
    %367 = vmatprep.subr.mxu0 0.0
    %368 = vmatpush1.msra.mxu0 %v309
    %369 = vmatprep.subr.mxu0 0.0
    %370 = vmatpush1.msra.mxu0 %v310
    %371 = vmatprep.subr.mxu0 0.0
    %372 = vmatpush1.msra.mxu0 %v311
    %373 = vmatprep.subr.mxu0 0.0
    %374 = vmatpush1.msra.mxu0 %v312
    %375 = vmatprep.subr.mxu0 0.0
    %376 = vmatpush1.msra.mxu0 %v313
    %377 = vmatprep.subr.mxu0 0.0
    %378 = vmatpush1.msra.mxu0 %v314
    %379 = vmatprep.subr.mxu0 0.0
    %380 = vmatpush1.msra.mxu0 %v315
    %381 = vmatprep.subr.mxu0 0.0
    %382 = vmatpush1.msra.mxu0 %v316
    %383 = vmatprep.subr.mxu0 0.0
    %384 = vmatpush1.msra.mxu0 %v317
    %385 = vmatprep.subr.mxu0 0.0
    %386 = vmatpush1.msra.mxu0 %v318
    %387 = vmatprep.subr.mxu0 0.0
    %388 = vmatpush1.msra.mxu0 %v319
    %389 = vmatprep.subr.mxu0 0.0
    %390 = vmatpush1.msra.mxu0 %v320
    %391 = vmatprep.subr.mxu0 0.0
    %392 = vmatpush1.msra.mxu0 %v321
    %393 = vmatprep.subr.mxu0 0.0
    %394 = vmatpush1.msra.mxu0 %v322
    %395 = vmatprep.mubr.f32.mxu0 %v130
    %396 = vmatmul.mubr.f32.gmra.mrb[0].mxu0 %v122
    %v397 = vpop.f32.mrb[0].mxu0
    %v398 = vadd.f32 %v329, %v397
    %v399 = vpop.f32.mrb[0].mxu0
    %400 = vmatprep.mubr.f32.mxu0 %v131
    %401 = vmatmul.mubr.f32.gmra.mrb[0].mxu0 %v123
    %v402 = vpop.f32.mrb[0].mxu0
    %v403 = vadd.f32 %v329, %v402
    %v404 = vpop.f32.mrb[0].mxu0
    %405 = vmatprep.mubr.f32.mxu0 %v132
    %406 = vmatmul.mubr.f32.gmra.mrb[0].mxu0 %v124
    %v407 = vpop.f32.mrb[0].mxu0
    %v408 = vadd.f32 %v329, %v407
    %v409 = vpop.f32.mrb[0].mxu0
    %410 = vmatprep.mubr.f32.mxu0 %v133
    %411 = vmatmul.mubr.f32.gmra.mrb[0].mxu0 %v125
    %v412 = vpop.f32.mrb[0].mxu0
    %v413 = vadd.f32 %v329, %v412
    %v414 = vpop.f32.mrb[0].mxu0
    %415 = vmatprep.mubr.f32.mxu0 %v134
    %416 = vmatmul.mubr.f32.gmra.mrb[0].mxu0 %v126
    %v417 = vpop.f32.mrb[0].mxu0
    %v418 = vadd.f32 %v329, %v417
    %v419 = vpop.f32.mrb[0].mxu0
    %420 = vmatprep.mubr.f32.mxu0 %v135
    %421 = vmatmul.mubr.f32.gmra.mrb[0].mxu0 %v127
    %v422 = vpop.f32.mrb[0].mxu0
    %v423 = vadd.f32 %v329, %v422
    %v424 = vpop.f32.mrb[0].mxu0
    %425 = vmatprep.mubr.f32.mxu0 %v136
    %426 = vmatmul.mubr.f32.gmra.mrb[0].mxu0 %v128
    %v427 = vpop.f32.mrb[0].mxu0
    %v428 = vadd.f32 %v329, %v427
    %v429 = vpop.f32.mrb[0].mxu0
    %430 = vmatprep.mubr.f32.mxu0 %v137
    %431 = vmatmul.mubr.f32.gmra.mrb[0].mxu0 %v129
    %v432 = vpop.f32.mrb[0].mxu0
    %v433 = vadd.f32 %v329, %v432
    %v434 = vpop.f32.mrb[0].mxu0
    %435 = vdwg.mxu0
    %436 = vst [vmem:[#allocation4] sm:$0xff] %v398
    %437 = vst [vmem:[#allocation4 + $0x8] sm:$0xff] %v403
    %438 = vst [vmem:[#allocation4 + $0x10] sm:$0xff] %v408
    %439 = vst [vmem:[#allocation4 + $0x18] sm:$0xff] %v413
    %440 = vst [vmem:[#allocation4 + $0x20] sm:$0xff] %v418
    %441 = vst [vmem:[#allocation4 + $0x28] sm:$0xff] %v423
    %442 = vst [vmem:[#allocation4 + $0x30] sm:$0xff] %v428
    %443 = vst [vmem:[#allocation4 + $0x38] sm:$0xff] %v433
    %v444 = vld [vmem:[%s5] sm:$0xff]
    %v445 = vld [vmem:[%s5 + $0x8] sm:$0xff]
    %v446 = vld [vmem:[%s5 + $0x10] sm:$0xff]
    %v447 = vld [vmem:[%s5 + $0x18] sm:$0xff]
    %v448 = vld [vmem:[%s5 + $0x20] sm:$0xff]
    %v449 = vld [vmem:[%s5 + $0x28] sm:$0xff]
    %v450 = vld [vmem:[%s5 + $0x30] sm:$0xff]
    %v451 = vld [vmem:[%s5 + $0x38] sm:$0xff]
    %v452 = vld [vmem:[%s5 + $0x40] sm:$0xff]
    %v453 = vld [vmem:[%s5 + $0x48] sm:$0xff]
    %v454 = vld [vmem:[%s5 + $0x50] sm:$0xff]
    %v455 = vld [vmem:[%s5 + $0x58] sm:$0xff]
    %v456 = vld [vmem:[%s5 + $0x60] sm:$0xff]
    %v457 = vld [vmem:[%s5 + $0x68] sm:$0xff]
    %v458 = vld [vmem:[%s5 + $0x70] sm:$0xff]
    %v459 = vld [vmem:[%s5 + $0x78] sm:$0xff]
    %v460 = vld [vmem:[%s5 + $0x80] sm:$0xff]
    %v461 = vld [vmem:[%s5 + $0x88] sm:$0xff]
    %v462 = vld [vmem:[%s5 + $0x90] sm:$0xff]
    %v463 = vld [vmem:[%s5 + $0x98] sm:$0xff]
    %v464 = vld [vmem:[%s5 + $0xa0] sm:$0xff]
    %v465 = vld [vmem:[%s5 + $0xa8] sm:$0xff]
    %v466 = vld [vmem:[%s5 + $0xb0] sm:$0xff]
    %v467 = vld [vmem:[%s5 + $0xb8] sm:$0xff]
    %v468 = vld [vmem:[%s5 + $0xc0] sm:$0xff]
    %v469 = vld [vmem:[%s5 + $0xc8] sm:$0xff]
    %v470 = vld [vmem:[%s5 + $0xd0] sm:$0xff]
    %v471 = vld [vmem:[%s5 + $0xd8] sm:$0xff]
    %v472 = vld [vmem:[%s5 + $0xe0] sm:$0xff]
    %v473 = vld [vmem:[%s5 + $0xe8] sm:$0xff]
    %v474 = vld [vmem:[%s5 + $0xf0] sm:$0xff]
    %v475 = vld [vmem:[%s5 + $0xf8] sm:$0xff]
    %v476 = vld [vmem:[%s5 + $0x100] sm:$0xff]
    %v477 = vld [vmem:[%s5 + $0x108] sm:$0xff]
    %v478 = vld [vmem:[%s5 + $0x110] sm:$0xff]
    %v479 = vld [vmem:[%s5 + $0x118] sm:$0xff]
    %v480 = vld [vmem:[%s5 + $0x120] sm:$0xff]
    %v481 = vld [vmem:[%s5 + $0x128] sm:$0xff]
    %v482 = vld [vmem:[%s5 + $0x130] sm:$0xff]
    %v483 = vld [vmem:[%s5 + $0x138] sm:$0xff]
    %v484 = vld [vmem:[%s5 + $0x140] sm:$0xff]
    %v485 = vld [vmem:[%s5 + $0x148] sm:$0xff]
    %v486 = vld [vmem:[%s5 + $0x150] sm:$0xff]
    %v487 = vld [vmem:[%s5 + $0x158] sm:$0xff]
    %v488 = vld [vmem:[%s5 + $0x160] sm:$0xff]
    %v489 = vld [vmem:[%s5 + $0x168] sm:$0xff]
    %v490 = vld [vmem:[%s5 + $0x170] sm:$0xff]
    %v491 = vld [vmem:[%s5 + $0x178] sm:$0xff]
    %v492 = vld [vmem:[%s5 + $0x180] sm:$0xff]
    %v493 = vld [vmem:[%s5 + $0x188] sm:$0xff]
    %v494 = vld [vmem:[%s5 + $0x190] sm:$0xff]
    %v495 = vld [vmem:[%s5 + $0x198] sm:$0xff]
    %v496 = vld [vmem:[%s5 + $0x1a0] sm:$0xff]
    %v497 = vld [vmem:[%s5 + $0x1a8] sm:$0xff]
    %v498 = vld [vmem:[%s5 + $0x1b0] sm:$0xff]
    %v499 = vld [vmem:[%s5 + $0x1b8] sm:$0xff]
    %v500 = vld [vmem:[%s5 + $0x1c0] sm:$0xff]
    %v501 = vld [vmem:[%s5 + $0x1c8] sm:$0xff]
    %v502 = vld [vmem:[%s5 + $0x1d0] sm:$0xff]
    %v503 = vld [vmem:[%s5 + $0x1d8] sm:$0xff]
    %v504 = vld [vmem:[%s5 + $0x1e0] sm:$0xff]
    %v505 = vld [vmem:[%s5 + $0x1e8] sm:$0xff]
    %v506 = vld [vmem:[%s5 + $0x1f0] sm:$0xff]
    %v507 = vld [vmem:[%s5 + $0x1f8] sm:$0xff]
    %v508 = vld [vmem:[#allocation3] sm:$0xff]
    %s509 = scalar_lea.vmem [#allocation4], 56
    %v510 = vld [vmem:[%s509] sm:$0xff]
    %v511 = vld [vmem:[#allocation2] sm:$0xff]
    %v512 = vld [vmem:[#allocation2 + $0x8] sm:$0xff]
    %513 = vmatprep.subr.mxu0 %v445
    %514 = vmatpush1.msra.mxu0 %v444
    %515 = vmatprep.subr.mxu0 %v447
    %516 = vmatpush1.msra.mxu0 %v446
    %517 = vmatprep.subr.mxu0 %v449
    %518 = vmatpush1.msra.mxu0 %v448
    %519 = vmatprep.subr.mxu0 %v451
    %520 = vmatpush1.msra.mxu0 %v450
    %521 = vmatprep.subr.mxu0 %v453
    %522 = vmatpush1.msra.mxu0 %v452
    %523 = vmatprep.subr.mxu0 %v455
    %524 = vmatpush1.msra.mxu0 %v454
    %525 = vmatprep.subr.mxu0 %v457
    %526 = vmatpush1.msra.mxu0 %v456
    %527 = vmatprep.subr.mxu0 %v459
    %528 = vmatpush1.msra.mxu0 %v458
    %529 = vmatprep.subr.mxu0 %v461
    %530 = vmatpush1.msra.mxu0 %v460
    %531 = vmatprep.subr.mxu0 %v463
    %532 = vmatpush1.msra.mxu0 %v462
    %533 = vmatprep.subr.mxu0 %v465
    %534 = vmatpush1.msra.mxu0 %v464
    %535 = vmatprep.subr.mxu0 %v467
    %536 = vmatpush1.msra.mxu0 %v466
    %537 = vmatprep.subr.mxu0 %v469
    %538 = vmatpush1.msra.mxu0 %v468
    %539 = vmatprep.subr.mxu0 %v471
    %540 = vmatpush1.msra.mxu0 %v470
    %541 = vmatprep.subr.mxu0 %v473
    %542 = vmatpush1.msra.mxu0 %v472
    %543 = vmatprep.subr.mxu0 %v475
    %544 = vmatpush1.msra.mxu0 %v474
    %545 = vmatprep.subr.mxu0 %v477
    %546 = vmatpush1.msra.mxu0 %v476
    %547 = vmatprep.subr.mxu0 %v479
    %548 = vmatpush1.msra.mxu0 %v478
    %549 = vmatprep.subr.mxu0 %v481
    %550 = vmatpush1.msra.mxu0 %v480
    %551 = vmatprep.subr.mxu0 %v483
    %552 = vmatpush1.msra.mxu0 %v482
    %553 = vmatprep.subr.mxu0 %v485
    %554 = vmatpush1.msra.mxu0 %v484
    %555 = vmatprep.subr.mxu0 %v487
    %556 = vmatpush1.msra.mxu0 %v486
    %557 = vmatprep.subr.mxu0 %v489
    %558 = vmatpush1.msra.mxu0 %v488
    %559 = vmatprep.subr.mxu0 %v491
    %560 = vmatpush1.msra.mxu0 %v490
    %561 = vmatprep.subr.mxu0 %v493
    %562 = vmatpush1.msra.mxu0 %v492
    %563 = vmatprep.subr.mxu0 %v495
    %564 = vmatpush1.msra.mxu0 %v494
    %565 = vmatprep.subr.mxu0 %v497
    %566 = vmatpush1.msra.mxu0 %v496
    %567 = vmatprep.subr.mxu0 %v499
    %568 = vmatpush1.msra.mxu0 %v498
    %569 = vmatprep.subr.mxu0 %v501
    %570 = vmatpush1.msra.mxu0 %v500
    %571 = vmatprep.subr.mxu0 %v503
    %572 = vmatpush1.msra.mxu0 %v502
    %573 = vmatprep.subr.mxu0 %v505
    %574 = vmatpush1.msra.mxu0 %v504
    %575 = vmatprep.subr.mxu0 %v507
    %576 = vmatpush1.msra.mxu0 %v506
    %577 = vmatprep.mubr.f32.mxu0 %v512
    %578 = vmatmul.mubr.f32.gmra.mrb[0].mxu0 %v511
    %v579 = vpop.f32.mrb[0].mxu0
    %v580 = vadd.f32 0.0, %v579
    %v581 = vpop.f32.mrb[0].mxu0
    %v582 = vadd.f32 0.0, %v581
    %583 = vdwg.mxu0
    %v584 = vadd.f32 %v508, %v580
    %v585 = vadd.f32 %v510, %v582
    %v586 = vtanh.pop %v584
    %v587 = vtanh.pop %v585
    %588 = vst [vmem:[#allocation2] sm:$0xff] %v586
    %589 = vst [vmem:[#allocation2 + $0x8] sm:$0xff] %v587
    %590 = vst [vmem:[%s7] sm:$0xff] %v586
    %s591 = scalar_lea.vmem %s97, 56
    %592 = vst [vmem:[%s591] sm:$0xff] %v587
    %s593 = scalar_lea.vmem [#allocation3], 8
    %v594 = vld [vmem:[%s593] sm:$0xff]
    %s595 = scalar_lea.vmem [#allocation4], 48
    %v596 = vld [vmem:[%s595] sm:$0xff]
    %v597 = vld [vmem:[#allocation2] sm:$0xff]
    %v598 = vld [vmem:[#allocation2 + $0x8] sm:$0xff]
    %599 = vmatprep.subr.mxu0 %v445
    %600 = vmatpush1.msra.mxu0 %v444
    %601 = vmatprep.subr.mxu0 %v447
    %602 = vmatpush1.msra.mxu0 %v446
    %603 = vmatprep.subr.mxu0 %v449
    %604 = vmatpush1.msra.mxu0 %v448
    %605 = vmatprep.subr.mxu0 %v451
    %606 = vmatpush1.msra.mxu0 %v450
    %607 = vmatprep.subr.mxu0 %v453
    %608 = vmatpush1.msra.mxu0 %v452
    %609 = vmatprep.subr.mxu0 %v455
    %610 = vmatpush1.msra.mxu0 %v454
    %611 = vmatprep.subr.mxu0 %v457
    %612 = vmatpush1.msra.mxu0 %v456
    %613 = vmatprep.subr.mxu0 %v459
    %614 = vmatpush1.msra.mxu0 %v458
    %615 = vmatprep.subr.mxu0 %v461
    %616 = vmatpush1.msra.mxu0 %v460
    %617 = vmatprep.subr.mxu0 %v463
    %618 = vmatpush1.msra.mxu0 %v462
    %619 = vmatprep.subr.mxu0 %v465
    %620 = vmatpush1.msra.mxu0 %v464
    %621 = vmatprep.subr.mxu0 %v467
    %622 = vmatpush1.msra.mxu0 %v466
    %623 = vmatprep.subr.mxu0 %v469
    %624 = vmatpush1.msra.mxu0 %v468
    %625 = vmatprep.subr.mxu0 %v471
    %626 = vmatpush1.msra.mxu0 %v470
    %627 = vmatprep.subr.mxu0 %v473
    %628 = vmatpush1.msra.mxu0 %v472
    %629 = vmatprep.subr.mxu0 %v475
    %630 = vmatpush1.msra.mxu0 %v474
    %631 = vmatprep.subr.mxu0 %v477
    %632 = vmatpush1.msra.mxu0 %v476
    %633 = vmatprep.subr.mxu0 %v479
    %634 = vmatpush1.msra.mxu0 %v478
    %635 = vmatprep.subr.mxu0 %v481
    %636 = vmatpush1.msra.mxu0 %v480
    %637 = vmatprep.subr.mxu0 %v483
    %638 = vmatpush1.msra.mxu0 %v482
    %639 = vmatprep.subr.mxu0 %v485
    %640 = vmatpush1.msra.mxu0 %v484
    %641 = vmatprep.subr.mxu0 %v487
    %642 = vmatpush1.msra.mxu0 %v486
    %643 = vmatprep.subr.mxu0 %v489
    %644 = vmatpush1.msra.mxu0 %v488
    %645 = vmatprep.subr.mxu0 %v491
    %646 = vmatpush1.msra.mxu0 %v490
    %647 = vmatprep.subr.mxu0 %v493
    %648 = vmatpush1.msra.mxu0 %v492
    %649 = vmatprep.subr.mxu0 %v495
    %650 = vmatpush1.msra.mxu0 %v494
    %651 = vmatprep.subr.mxu0 %v497
    %652 = vmatpush1.msra.mxu0 %v496
    %653 = vmatprep.subr.mxu0 %v499
    %654 = vmatpush1.msra.mxu0 %v498
    %655 = vmatprep.subr.mxu0 %v501
    %656 = vmatpush1.msra.mxu0 %v500
    %657 = vmatprep.subr.mxu0 %v503
    %658 = vmatpush1.msra.mxu0 %v502
    %659 = vmatprep.subr.mxu0 %v505
    %660 = vmatpush1.msra.mxu0 %v504
    %661 = vmatprep.subr.mxu0 %v507
    %662 = vmatpush1.msra.mxu0 %v506
    %663 = vmatprep.mubr.f32.mxu0 %v598
    %664 = vmatmul.mubr.f32.gmra.mrb[0].mxu0 %v597
    %v665 = vpop.f32.mrb[0].mxu0
    %v666 = vadd.f32 0.0, %v665
    %v667 = vpop.f32.mrb[0].mxu0
    %v668 = vadd.f32 0.0, %v667
    %669 = vdwg.mxu0
    %v670 = vadd.f32 %v594, %v666
    %v671 = vadd.f32 %v596, %v668
    %v672 = vtanh.pop %v670
    %v673 = vtanh.pop %v671
    %674 = vst [vmem:[#allocation2] sm:$0xff] %v672
    %675 = vst [vmem:[#allocation2 + $0x8] sm:$0xff] %v673
    %s676 = scalar_lea.vmem %s7, 8
    %677 = vst [vmem:[%s676] sm:$0xff] %v672
    %s678 = scalar_lea.vmem %s97, 48
    %679 = vst [vmem:[%s678] sm:$0xff] %v673
    %s680 = scalar_lea.vmem [#allocation3], 16
    %v681 = vld [vmem:[%s680] sm:$0xff]
    %s682 = scalar_lea.vmem [#allocation4], 40
    %v683 = vld [vmem:[%s682] sm:$0xff]
    %v684 = vld [vmem:[#allocation2] sm:$0xff]
    %v685 = vld [vmem:[#allocation2 + $0x8] sm:$0xff]
    %686 = vmatprep.subr.mxu0 %v445
    %687 = vmatpush1.msra.mxu0 %v444
    %688 = vmatprep.subr.mxu0 %v447
    %689 = vmatpush1.msra.mxu0 %v446
    %690 = vmatprep.subr.mxu0 %v449
    %691 = vmatpush1.msra.mxu0 %v448
    %692 = vmatprep.subr.mxu0 %v451
    %693 = vmatpush1.msra.mxu0 %v450
    %694 = vmatprep.subr.mxu0 %v453
    %695 = vmatpush1.msra.mxu0 %v452
    %696 = vmatprep.subr.mxu0 %v455
    %697 = vmatpush1.msra.mxu0 %v454
    %698 = vmatprep.subr.mxu0 %v457
    %699 = vmatpush1.msra.mxu0 %v456
    %700 = vmatprep.subr.mxu0 %v459
    %701 = vmatpush1.msra.mxu0 %v458
    %702 = vmatprep.subr.mxu0 %v461
    %703 = vmatpush1.msra.mxu0 %v460
    %704 = vmatprep.subr.mxu0 %v463
    %705 = vmatpush1.msra.mxu0 %v462
    %706 = vmatprep.subr.mxu0 %v465
    %707 = vmatpush1.msra.mxu0 %v464
    %708 = vmatprep.subr.mxu0 %v467
    %709 = vmatpush1.msra.mxu0 %v466
    %710 = vmatprep.subr.mxu0 %v469
    %711 = vmatpush1.msra.mxu0 %v468
    %712 = vmatprep.subr.mxu0 %v471
    %713 = vmatpush1.msra.mxu0 %v470
    %714 = vmatprep.subr.mxu0 %v473
    %715 = vmatpush1.msra.mxu0 %v472
    %716 = vmatprep.subr.mxu0 %v475
    %717 = vmatpush1.msra.mxu0 %v474
    %718 = vmatprep.subr.mxu0 %v477
    %719 = vmatpush1.msra.mxu0 %v476
    %720 = vmatprep.subr.mxu0 %v479
    %721 = vmatpush1.msra.mxu0 %v478
    %722 = vmatprep.subr.mxu0 %v481
    %723 = vmatpush1.msra.mxu0 %v480
    %724 = vmatprep.subr.mxu0 %v483
    %725 = vmatpush1.msra.mxu0 %v482
    %726 = vmatprep.subr.mxu0 %v485
    %727 = vmatpush1.msra.mxu0 %v484
    %728 = vmatprep.subr.mxu0 %v487
    %729 = vmatpush1.msra.mxu0 %v486
    %730 = vmatprep.subr.mxu0 %v489
    %731 = vmatpush1.msra.mxu0 %v488
    %732 = vmatprep.subr.mxu0 %v491
    %733 = vmatpush1.msra.mxu0 %v490
    %734 = vmatprep.subr.mxu0 %v493
    %735 = vmatpush1.msra.mxu0 %v492
    %736 = vmatprep.subr.mxu0 %v495
    %737 = vmatpush1.msra.mxu0 %v494
    %738 = vmatprep.subr.mxu0 %v497
    %739 = vmatpush1.msra.mxu0 %v496
    %740 = vmatprep.subr.mxu0 %v499
    %741 = vmatpush1.msra.mxu0 %v498
    %742 = vmatprep.subr.mxu0 %v501
    %743 = vmatpush1.msra.mxu0 %v500
    %744 = vmatprep.subr.mxu0 %v503
    %745 = vmatpush1.msra.mxu0 %v502
    %746 = vmatprep.subr.mxu0 %v505
    %747 = vmatpush1.msra.mxu0 %v504
    %748 = vmatprep.subr.mxu0 %v507
    %749 = vmatpush1.msra.mxu0 %v506
    %750 = vmatprep.mubr.f32.mxu0 %v685
    %751 = vmatmul.mubr.f32.gmra.mrb[0].mxu0 %v684
    %v752 = vpop.f32.mrb[0].mxu0
    %v753 = vadd.f32 0.0, %v752
    %v754 = vpop.f32.mrb[0].mxu0
    %v755 = vadd.f32 0.0, %v754
    %756 = vdwg.mxu0
    %v757 = vadd.f32 %v681, %v753
    %v758 = vadd.f32 %v683, %v755
    %v759 = vtanh.pop %v757
    %v760 = vtanh.pop %v758
    %761 = vst [vmem:[#allocation2] sm:$0xff] %v759
    %762 = vst [vmem:[#allocation2 + $0x8] sm:$0xff] %v760
    %s763 = scalar_lea.vmem %s7, 16
    %764 = vst [vmem:[%s763] sm:$0xff] %v759
    %s765 = scalar_lea.vmem %s97, 40
    %766 = vst [vmem:[%s765] sm:$0xff] %v760
    %s767 = scalar_lea.vmem [#allocation3], 24
    %v768 = vld [vmem:[%s767] sm:$0xff]
    %s769 = scalar_lea.vmem [#allocation4], 32
    %v770 = vld [vmem:[%s769] sm:$0xff]
    %v771 = vld [vmem:[#allocation2] sm:$0xff]
    %v772 = vld [vmem:[#allocation2 + $0x8] sm:$0xff]
    %773 = vmatprep.subr.mxu0 %v445
    %774 = vmatpush1.msra.mxu0 %v444
    %775 = vmatprep.subr.mxu0 %v447
    %776 = vmatpush1.msra.mxu0 %v446
    %777 = vmatprep.subr.mxu0 %v449
    %778 = vmatpush1.msra.mxu0 %v448
    %779 = vmatprep.subr.mxu0 %v451
    %780 = vmatpush1.msra.mxu0 %v450
    %781 = vmatprep.subr.mxu0 %v453
    %782 = vmatpush1.msra.mxu0 %v452
    %783 = vmatprep.subr.mxu0 %v455
    %784 = vmatpush1.msra.mxu0 %v454
    %785 = vmatprep.subr.mxu0 %v457
    %786 = vmatpush1.msra.mxu0 %v456
    %787 = vmatprep.subr.mxu0 %v459
    %788 = vmatpush1.msra.mxu0 %v458
    %789 = vmatprep.subr.mxu0 %v461
    %790 = vmatpush1.msra.mxu0 %v460
    %791 = vmatprep.subr.mxu0 %v463
    %792 = vmatpush1.msra.mxu0 %v462
    %793 = vmatprep.subr.mxu0 %v465
    %794 = vmatpush1.msra.mxu0 %v464
    %795 = vmatprep.subr.mxu0 %v467
    %796 = vmatpush1.msra.mxu0 %v466
    %797 = vmatprep.subr.mxu0 %v469
    %798 = vmatpush1.msra.mxu0 %v468
    %799 = vmatprep.subr.mxu0 %v471
    %800 = vmatpush1.msra.mxu0 %v470
    %801 = vmatprep.subr.mxu0 %v473
    %802 = vmatpush1.msra.mxu0 %v472
    %803 = vmatprep.subr.mxu0 %v475
    %804 = vmatpush1.msra.mxu0 %v474
    %805 = vmatprep.subr.mxu0 %v477
    %806 = vmatpush1.msra.mxu0 %v476
    %807 = vmatprep.subr.mxu0 %v479
    %808 = vmatpush1.msra.mxu0 %v478
    %809 = vmatprep.subr.mxu0 %v481
    %810 = vmatpush1.msra.mxu0 %v480
    %811 = vmatprep.subr.mxu0 %v483
    %812 = vmatpush1.msra.mxu0 %v482
    %813 = vmatprep.subr.mxu0 %v485
    %814 = vmatpush1.msra.mxu0 %v484
    %815 = vmatprep.subr.mxu0 %v487
    %816 = vmatpush1.msra.mxu0 %v486
    %817 = vmatprep.subr.mxu0 %v489
    %818 = vmatpush1.msra.mxu0 %v488
    %819 = vmatprep.subr.mxu0 %v491
    %820 = vmatpush1.msra.mxu0 %v490
    %821 = vmatprep.subr.mxu0 %v493
    %822 = vmatpush1.msra.mxu0 %v492
    %823 = vmatprep.subr.mxu0 %v495
    %824 = vmatpush1.msra.mxu0 %v494
    %825 = vmatprep.subr.mxu0 %v497
    %826 = vmatpush1.msra.mxu0 %v496
    %827 = vmatprep.subr.mxu0 %v499
    %828 = vmatpush1.msra.mxu0 %v498
    %829 = vmatprep.subr.mxu0 %v501
    %830 = vmatpush1.msra.mxu0 %v500
    %831 = vmatprep.subr.mxu0 %v503
    %832 = vmatpush1.msra.mxu0 %v502
    %833 = vmatprep.subr.mxu0 %v505
    %834 = vmatpush1.msra.mxu0 %v504
    %835 = vmatprep.subr.mxu0 %v507
    %836 = vmatpush1.msra.mxu0 %v506
    %837 = vmatprep.mubr.f32.mxu0 %v772
    %838 = vmatmul.mubr.f32.gmra.mrb[0].mxu0 %v771
    %v839 = vpop.f32.mrb[0].mxu0
    %v840 = vadd.f32 0.0, %v839
    %v841 = vpop.f32.mrb[0].mxu0
    %v842 = vadd.f32 0.0, %v841
    %843 = vdwg.mxu0
    %v844 = vadd.f32 %v768, %v840
    %v845 = vadd.f32 %v770, %v842
    %v846 = vtanh.pop %v844
    %v847 = vtanh.pop %v845
    %848 = vst [vmem:[#allocation2] sm:$0xff] %v846
    %849 = vst [vmem:[#allocation2 + $0x8] sm:$0xff] %v847
    %s850 = scalar_lea.vmem %s7, 24
    %851 = vst [vmem:[%s850] sm:$0xff] %v846
    %s852 = scalar_lea.vmem %s97, 32
    %853 = vst [vmem:[%s852] sm:$0xff] %v847
    %s854 = scalar_lea.vmem [#allocation3], 32
    %v855 = vld [vmem:[%s854] sm:$0xff]
    %s856 = scalar_lea.vmem [#allocation4], 24
    %v857 = vld [vmem:[%s856] sm:$0xff]
    %v858 = vld [vmem:[#allocation2] sm:$0xff]
    %v859 = vld [vmem:[#allocation2 + $0x8] sm:$0xff]
    %860 = vmatprep.subr.mxu0 %v445
    %861 = vmatpush1.msra.mxu0 %v444
    %862 = vmatprep.subr.mxu0 %v447
    %863 = vmatpush1.msra.mxu0 %v446
    %864 = vmatprep.subr.mxu0 %v449
    %865 = vmatpush1.msra.mxu0 %v448
    %866 = vmatprep.subr.mxu0 %v451
    %867 = vmatpush1.msra.mxu0 %v450
    %868 = vmatprep.subr.mxu0 %v453
    %869 = vmatpush1.msra.mxu0 %v452
    %870 = vmatprep.subr.mxu0 %v455
    %871 = vmatpush1.msra.mxu0 %v454
    %872 = vmatprep.subr.mxu0 %v457
    %873 = vmatpush1.msra.mxu0 %v456
    %874 = vmatprep.subr.mxu0 %v459
    %875 = vmatpush1.msra.mxu0 %v458
    %876 = vmatprep.subr.mxu0 %v461
    %877 = vmatpush1.msra.mxu0 %v460
    %878 = vmatprep.subr.mxu0 %v463
    %879 = vmatpush1.msra.mxu0 %v462
    %880 = vmatprep.subr.mxu0 %v465
    %881 = vmatpush1.msra.mxu0 %v464
    %882 = vmatprep.subr.mxu0 %v467
    %883 = vmatpush1.msra.mxu0 %v466
    %884 = vmatprep.subr.mxu0 %v469
    %885 = vmatpush1.msra.mxu0 %v468
    %886 = vmatprep.subr.mxu0 %v471
    %887 = vmatpush1.msra.mxu0 %v470
    %888 = vmatprep.subr.mxu0 %v473
    %889 = vmatpush1.msra.mxu0 %v472
    %890 = vmatprep.subr.mxu0 %v475
    %891 = vmatpush1.msra.mxu0 %v474
    %892 = vmatprep.subr.mxu0 %v477
    %893 = vmatpush1.msra.mxu0 %v476
    %894 = vmatprep.subr.mxu0 %v479
    %895 = vmatpush1.msra.mxu0 %v478
    %896 = vmatprep.subr.mxu0 %v481
    %897 = vmatpush1.msra.mxu0 %v480
    %898 = vmatprep.subr.mxu0 %v483
    %899 = vmatpush1.msra.mxu0 %v482
    %900 = vmatprep.subr.mxu0 %v485
    %901 = vmatpush1.msra.mxu0 %v484
    %902 = vmatprep.subr.mxu0 %v487
    %903 = vmatpush1.msra.mxu0 %v486
    %904 = vmatprep.subr.mxu0 %v489
    %905 = vmatpush1.msra.mxu0 %v488
    %906 = vmatprep.subr.mxu0 %v491
    %907 = vmatpush1.msra.mxu0 %v490
    %908 = vmatprep.subr.mxu0 %v493
    %909 = vmatpush1.msra.mxu0 %v492
    %910 = vmatprep.subr.mxu0 %v495
    %911 = vmatpush1.msra.mxu0 %v494
    %912 = vmatprep.subr.mxu0 %v497
    %913 = vmatpush1.msra.mxu0 %v496
    %914 = vmatprep.subr.mxu0 %v499
    %915 = vmatpush1.msra.mxu0 %v498
    %916 = vmatprep.subr.mxu0 %v501
    %917 = vmatpush1.msra.mxu0 %v500
    %918 = vmatprep.subr.mxu0 %v503
    %919 = vmatpush1.msra.mxu0 %v502
    %920 = vmatprep.subr.mxu0 %v505
    %921 = vmatpush1.msra.mxu0 %v504
    %922 = vmatprep.subr.mxu0 %v507
    %923 = vmatpush1.msra.mxu0 %v506
    %924 = vmatprep.mubr.f32.mxu0 %v859
    %925 = vmatmul.mubr.f32.gmra.mrb[0].mxu0 %v858
    %v926 = vpop.f32.mrb[0].mxu0
    %v927 = vadd.f32 0.0, %v926
    %v928 = vpop.f32.mrb[0].mxu0
    %v929 = vadd.f32 0.0, %v928
    %930 = vdwg.mxu0
    %v931 = vadd.f32 %v855, %v927
    %v932 = vadd.f32 %v857, %v929
    %v933 = vtanh.pop %v931
    %v934 = vtanh.pop %v932
    %935 = vst [vmem:[#allocation2] sm:$0xff] %v933
    %936 = vst [vmem:[#allocation2 + $0x8] sm:$0xff] %v934
    %s937 = scalar_lea.vmem %s7, 32
    %938 = vst [vmem:[%s937] sm:$0xff] %v933
    %s939 = scalar_lea.vmem %s97, 24
    %940 = vst [vmem:[%s939] sm:$0xff] %v934
    %s941 = scalar_lea.vmem [#allocation3], 40
    %v942 = vld [vmem:[%s941] sm:$0xff]
    %s943 = scalar_lea.vmem [#allocation4], 16
    %v944 = vld [vmem:[%s943] sm:$0xff]
    %v945 = vld [vmem:[#allocation2] sm:$0xff]
    %v946 = vld [vmem:[#allocation2 + $0x8] sm:$0xff]
    %947 = vmatprep.subr.mxu0 %v445
    %948 = vmatpush1.msra.mxu0 %v444
    %949 = vmatprep.subr.mxu0 %v447
    %950 = vmatpush1.msra.mxu0 %v446
    %951 = vmatprep.subr.mxu0 %v449
    %952 = vmatpush1.msra.mxu0 %v448
    %953 = vmatprep.subr.mxu0 %v451
    %954 = vmatpush1.msra.mxu0 %v450
    %955 = vmatprep.subr.mxu0 %v453
    %956 = vmatpush1.msra.mxu0 %v452
    %957 = vmatprep.subr.mxu0 %v455
    %958 = vmatpush1.msra.mxu0 %v454
    %959 = vmatprep.subr.mxu0 %v457
    %960 = vmatpush1.msra.mxu0 %v456
    %961 = vmatprep.subr.mxu0 %v459
    %962 = vmatpush1.msra.mxu0 %v458
    %963 = vmatprep.subr.mxu0 %v461
    %964 = vmatpush1.msra.mxu0 %v460
    %965 = vmatprep.subr.mxu0 %v463
    %966 = vmatpush1.msra.mxu0 %v462
    %967 = vmatprep.subr.mxu0 %v465
    %968 = vmatpush1.msra.mxu0 %v464
    %969 = vmatprep.subr.mxu0 %v467
    %970 = vmatpush1.msra.mxu0 %v466
    %971 = vmatprep.subr.mxu0 %v469
    %972 = vmatpush1.msra.mxu0 %v468
    %973 = vmatprep.subr.mxu0 %v471
    %974 = vmatpush1.msra.mxu0 %v470
    %975 = vmatprep.subr.mxu0 %v473
    %976 = vmatpush1.msra.mxu0 %v472
    %977 = vmatprep.subr.mxu0 %v475
    %978 = vmatpush1.msra.mxu0 %v474
    %979 = vmatprep.subr.mxu0 %v477
    %980 = vmatpush1.msra.mxu0 %v476
    %981 = vmatprep.subr.mxu0 %v479
    %982 = vmatpush1.msra.mxu0 %v478
    %983 = vmatprep.subr.mxu0 %v481
    %984 = vmatpush1.msra.mxu0 %v480
    %985 = vmatprep.subr.mxu0 %v483
    %986 = vmatpush1.msra.mxu0 %v482
    %987 = vmatprep.subr.mxu0 %v485
    %988 = vmatpush1.msra.mxu0 %v484
    %989 = vmatprep.subr.mxu0 %v487
    %990 = vmatpush1.msra.mxu0 %v486
    %991 = vmatprep.subr.mxu0 %v489
    %992 = vmatpush1.msra.mxu0 %v488
    %993 = vmatprep.subr.mxu0 %v491
    %994 = vmatpush1.msra.mxu0 %v490
    %995 = vmatprep.subr.mxu0 %v493
    %996 = vmatpush1.msra.mxu0 %v492
    %997 = vmatprep.subr.mxu0 %v495
    %998 = vmatpush1.msra.mxu0 %v494
    %999 = vmatprep.subr.mxu0 %v497
    %1000 = vmatpush1.msra.mxu0 %v496
    %1001 = vmatprep.subr.mxu0 %v499
    %1002 = vmatpush1.msra.mxu0 %v498
    %1003 = vmatprep.subr.mxu0 %v501
    %1004 = vmatpush1.msra.mxu0 %v500
    %1005 = vmatprep.subr.mxu0 %v503
    %1006 = vmatpush1.msra.mxu0 %v502
    %1007 = vmatprep.subr.mxu0 %v505
    %1008 = vmatpush1.msra.mxu0 %v504
    %1009 = vmatprep.subr.mxu0 %v507
    %1010 = vmatpush1.msra.mxu0 %v506
    %1011 = vmatprep.mubr.f32.mxu0 %v946
    %1012 = vmatmul.mubr.f32.gmra.mrb[0].mxu0 %v945
    %v1013 = vpop.f32.mrb[0].mxu0
    %v1014 = vadd.f32 0.0, %v1013
    %v1015 = vpop.f32.mrb[0].mxu0
    %v1016 = vadd.f32 0.0, %v1015
    %1017 = vdwg.mxu0
    %v1018 = vadd.f32 %v942, %v1014
    %v1019 = vadd.f32 %v944, %v1016
    %v1020 = vtanh.pop %v1018
    %v1021 = vtanh.pop %v1019
    %1022 = vst [vmem:[#allocation2] sm:$0xff] %v1020
    %1023 = vst [vmem:[#allocation2 + $0x8] sm:$0xff] %v1021
    %s1024 = scalar_lea.vmem %s7, 40
    %1025 = vst [vmem:[%s1024] sm:$0xff] %v1020
    %s1026 = scalar_lea.vmem %s97, 16
    %1027 = vst [vmem:[%s1026] sm:$0xff] %v1021
    %s1028 = scalar_lea.vmem [#allocation3], 48
    %v1029 = vld [vmem:[%s1028] sm:$0xff]
    %s1030 = scalar_lea.vmem [#allocation4], 8
    %v1031 = vld [vmem:[%s1030] sm:$0xff]
    %v1032 = vld [vmem:[#allocation2] sm:$0xff]
    %v1033 = vld [vmem:[#allocation2 + $0x8] sm:$0xff]
    %1034 = vmatprep.subr.mxu0 %v445
    %1035 = vmatpush1.msra.mxu0 %v444
    %1036 = vmatprep.subr.mxu0 %v447
    %1037 = vmatpush1.msra.mxu0 %v446
    %1038 = vmatprep.subr.mxu0 %v449
    %1039 = vmatpush1.msra.mxu0 %v448
    %1040 = vmatprep.subr.mxu0 %v451
    %1041 = vmatpush1.msra.mxu0 %v450
    %1042 = vmatprep.subr.mxu0 %v453
    %1043 = vmatpush1.msra.mxu0 %v452
    %1044 = vmatprep.subr.mxu0 %v455
    %1045 = vmatpush1.msra.mxu0 %v454
    %1046 = vmatprep.subr.mxu0 %v457
    %1047 = vmatpush1.msra.mxu0 %v456
    %1048 = vmatprep.subr.mxu0 %v459
    %1049 = vmatpush1.msra.mxu0 %v458
    %1050 = vmatprep.subr.mxu0 %v461
    %1051 = vmatpush1.msra.mxu0 %v460
    %1052 = vmatprep.subr.mxu0 %v463
    %1053 = vmatpush1.msra.mxu0 %v462
    %1054 = vmatprep.subr.mxu0 %v465
    %1055 = vmatpush1.msra.mxu0 %v464
    %1056 = vmatprep.subr.mxu0 %v467
    %1057 = vmatpush1.msra.mxu0 %v466
    %1058 = vmatprep.subr.mxu0 %v469
    %1059 = vmatpush1.msra.mxu0 %v468
    %1060 = vmatprep.subr.mxu0 %v471
    %1061 = vmatpush1.msra.mxu0 %v470
    %1062 = vmatprep.subr.mxu0 %v473
    %1063 = vmatpush1.msra.mxu0 %v472
    %1064 = vmatprep.subr.mxu0 %v475
    %1065 = vmatpush1.msra.mxu0 %v474
    %1066 = vmatprep.subr.mxu0 %v477
    %1067 = vmatpush1.msra.mxu0 %v476
    %1068 = vmatprep.subr.mxu0 %v479
    %1069 = vmatpush1.msra.mxu0 %v478
    %1070 = vmatprep.subr.mxu0 %v481
    %1071 = vmatpush1.msra.mxu0 %v480
    %1072 = vmatprep.subr.mxu0 %v483
    %1073 = vmatpush1.msra.mxu0 %v482
    %1074 = vmatprep.subr.mxu0 %v485
    %1075 = vmatpush1.msra.mxu0 %v484
    %1076 = vmatprep.subr.mxu0 %v487
    %1077 = vmatpush1.msra.mxu0 %v486
    %1078 = vmatprep.subr.mxu0 %v489
    %1079 = vmatpush1.msra.mxu0 %v488
    %1080 = vmatprep.subr.mxu0 %v491
    %1081 = vmatpush1.msra.mxu0 %v490
    %1082 = vmatprep.subr.mxu0 %v493
    %1083 = vmatpush1.msra.mxu0 %v492
    %1084 = vmatprep.subr.mxu0 %v495
    %1085 = vmatpush1.msra.mxu0 %v494
    %1086 = vmatprep.subr.mxu0 %v497
    %1087 = vmatpush1.msra.mxu0 %v496
    %1088 = vmatprep.subr.mxu0 %v499
    %1089 = vmatpush1.msra.mxu0 %v498
    %1090 = vmatprep.subr.mxu0 %v501
    %1091 = vmatpush1.msra.mxu0 %v500
    %1092 = vmatprep.subr.mxu0 %v503
    %1093 = vmatpush1.msra.mxu0 %v502
    %1094 = vmatprep.subr.mxu0 %v505
    %1095 = vmatpush1.msra.mxu0 %v504
    %1096 = vmatprep.subr.mxu0 %v507
    %1097 = vmatpush1.msra.mxu0 %v506
    %1098 = vmatprep.mubr.f32.mxu0 %v1033
    %1099 = vmatmul.mubr.f32.gmra.mrb[0].mxu0 %v1032
    %v1100 = vpop.f32.mrb[0].mxu0
    %v1101 = vadd.f32 0.0, %v1100
    %v1102 = vpop.f32.mrb[0].mxu0
    %v1103 = vadd.f32 0.0, %v1102
    %1104 = vdwg.mxu0
    %v1105 = vadd.f32 %v1029, %v1101
    %v1106 = vadd.f32 %v1031, %v1103
    %v1107 = vtanh.pop %v1105
    %v1108 = vtanh.pop %v1106
    %1109 = vst [vmem:[#allocation2] sm:$0xff] %v1107
    %1110 = vst [vmem:[#allocation2 + $0x8] sm:$0xff] %v1108
    %s1111 = scalar_lea.vmem %s7, 48
    %1112 = vst [vmem:[%s1111] sm:$0xff] %v1107
    %s1113 = scalar_lea.vmem %s97, 8
    %1114 = vst [vmem:[%s1113] sm:$0xff] %v1108
    %s1115 = scalar_lea.vmem [#allocation3], 56
    %v1116 = vld [vmem:[%s1115] sm:$0xff]
    %v1117 = vld [vmem:[#allocation4] sm:$0xff]
    %v1118 = vld [vmem:[#allocation2] sm:$0xff]
    %v1119 = vld [vmem:[#allocation2 + $0x8] sm:$0xff]
    %1120 = vmatprep.subr.mxu0 %v445
    %1121 = vmatpush1.msra.mxu0 %v444
    %1122 = vmatprep.subr.mxu0 %v447
    %1123 = vmatpush1.msra.mxu0 %v446
    %1124 = vmatprep.subr.mxu0 %v449
    %1125 = vmatpush1.msra.mxu0 %v448
    %1126 = vmatprep.subr.mxu0 %v451
    %1127 = vmatpush1.msra.mxu0 %v450
    %1128 = vmatprep.subr.mxu0 %v453
    %1129 = vmatpush1.msra.mxu0 %v452
    %1130 = vmatprep.subr.mxu0 %v455
    %1131 = vmatpush1.msra.mxu0 %v454
    %1132 = vmatprep.subr.mxu0 %v457
    %1133 = vmatpush1.msra.mxu0 %v456
    %1134 = vmatprep.subr.mxu0 %v459
    %1135 = vmatpush1.msra.mxu0 %v458
    %1136 = vmatprep.subr.mxu0 %v461
    %1137 = vmatpush1.msra.mxu0 %v460
    %1138 = vmatprep.subr.mxu0 %v463
    %1139 = vmatpush1.msra.mxu0 %v462
    %1140 = vmatprep.subr.mxu0 %v465
    %1141 = vmatpush1.msra.mxu0 %v464
    %1142 = vmatprep.subr.mxu0 %v467
    %1143 = vmatpush1.msra.mxu0 %v466
    %1144 = vmatprep.subr.mxu0 %v469
    %1145 = vmatpush1.msra.mxu0 %v468
    %1146 = vmatprep.subr.mxu0 %v471
    %1147 = vmatpush1.msra.mxu0 %v470
    %1148 = vmatprep.subr.mxu0 %v473
    %1149 = vmatpush1.msra.mxu0 %v472
    %1150 = vmatprep.subr.mxu0 %v475
    %1151 = vmatpush1.msra.mxu0 %v474
    %1152 = vmatprep.subr.mxu0 %v477
    %1153 = vmatpush1.msra.mxu0 %v476
    %1154 = vmatprep.subr.mxu0 %v479
    %1155 = vmatpush1.msra.mxu0 %v478
    %1156 = vmatprep.subr.mxu0 %v481
    %1157 = vmatpush1.msra.mxu0 %v480
    %1158 = vmatprep.subr.mxu0 %v483
    %1159 = vmatpush1.msra.mxu0 %v482
    %1160 = vmatprep.subr.mxu0 %v485
    %1161 = vmatpush1.msra.mxu0 %v484
    %1162 = vmatprep.subr.mxu0 %v487
    %1163 = vmatpush1.msra.mxu0 %v486
    %1164 = vmatprep.subr.mxu0 %v489
    %1165 = vmatpush1.msra.mxu0 %v488
    %1166 = vmatprep.subr.mxu0 %v491
    %1167 = vmatpush1.msra.mxu0 %v490
    %1168 = vmatprep.subr.mxu0 %v493
    %1169 = vmatpush1.msra.mxu0 %v492
    %1170 = vmatprep.subr.mxu0 %v495
    %1171 = vmatpush1.msra.mxu0 %v494
    %1172 = vmatprep.subr.mxu0 %v497
    %1173 = vmatpush1.msra.mxu0 %v496
    %1174 = vmatprep.subr.mxu0 %v499
    %1175 = vmatpush1.msra.mxu0 %v498
    %1176 = vmatprep.subr.mxu0 %v501
    %1177 = vmatpush1.msra.mxu0 %v500
    %1178 = vmatprep.subr.mxu0 %v503
    %1179 = vmatpush1.msra.mxu0 %v502
    %1180 = vmatprep.subr.mxu0 %v505
    %1181 = vmatpush1.msra.mxu0 %v504
    %1182 = vmatprep.subr.mxu0 %v507
    %1183 = vmatpush1.msra.mxu0 %v506
    %1184 = vmatprep.mubr.f32.mxu0 %v1119
    %1185 = vmatmul.mubr.f32.gmra.mrb[0].mxu0 %v1118
    %v1186 = vpop.f32.mrb[0].mxu0
    %v1187 = vadd.f32 0.0, %v1186
    %v1188 = vpop.f32.mrb[0].mxu0
    %v1189 = vadd.f32 0.0, %v1188
    %1190 = vdwg.mxu0
    %v1191 = vadd.f32 %v1116, %v1187
    %v1192 = vadd.f32 %v1117, %v1189
    %v1193 = vtanh.pop %v1191
    %v1194 = vtanh.pop %v1192
    %1195 = vst [vmem:[#allocation2] sm:$0xff] %v1193
    %1196 = vst [vmem:[#allocation2 + $0x8] sm:$0xff] %v1194
    %s1197 = scalar_lea.vmem %s7, 56
    %1198 = vst [vmem:[%s1197] sm:$0xff] %v1193
    %1199 = vst [vmem:[%s97] sm:$0xff] %v1194
    %s1200 = ssub.s32 0, 0
    %s1201 = smul.u32 8, %s1200
    %p1202 = scmp.lt.s32.totalorder %s1201, 7
    %s1203 = scalar_select %p1202, %s1201, 7
    %s1204 = smul.addr %s1203, 8
    %s1205 = scalar_lea.vmem %s8, %s1204
    // Predicated region
    $region38: #{_lambda_.4} parent=1 // pred_check
      _
    $region39: #{_lambda_.4} parent=1 // pred_check_branch
      %1207 = sbr.rel (0) target = $region41
    $region40: #{_lambda_.4} parent=1 // pred_region
      _
    $region41: #{_lambda_.4} parent=1 // pred_fallthru
      _
    // Predicated region
    $region42: #{_lambda_.4} parent=1 // pred_check
      _
    $region43: #{_lambda_.4} parent=1 // pred_check_branch
      %1209 = sbr.rel (0) target = $region45
    $region44: #{_lambda_.4} parent=1 // pred_region
      %s1210 = ssub.s32 0, 0
      %s1211 = smul.u32 8, %s1210
    $region45: #{_lambda_.4} parent=1 // pred_fallthru
      _
    // Predicated region
    $region46: #{_lambda_.4} parent=1 // pred_check
      _
    $region47: #{_lambda_.4} parent=1 // pred_check_branch
      %1213 = sbr.rel (0) target = $region49
    $region48: #{_lambda_.4} parent=1 // pred_region
      _
    $region49: #{_lambda_.4} parent=1 // pred_fallthru
      _
    // Predicated region
    $region50: #{_lambda_.4} parent=1 // pred_check
      _
    $region51: #{_lambda_.4} parent=1 // pred_check_branch
      %1215 = sbr.rel (0) target = $region53
    $region52: #{_lambda_.4} parent=1 // pred_region
      %s1216 = ssub.s32 0, 0
      %s1217 = smul.u32 8, %s1216
      %p1218 = scmp.lt.s32.totalorder %s1217, 7
      %s1219 = scalar_select %p1218, %s1217, 7
      %s1220 = smul.addr %s1219, 8
      %s1221 = scalar_lea.vmem %s8, %s1220
    $region53: #{_lambda_.4} parent=1 // pred_fallthru
      _
    %1222 = vsyncpa [#allocation6], 1

// kernel: _lambda_.3
$region0: #{_lambda_.3}
  #allocation0 [shape = 'u32[]', space=smem, size = 0x4, offset = 0x4, fixed_abs, tag = 'smem constant byte address 0x4 - core index']
  #allocation1 [shape = 'u32[144,128]{1,0:T(1,128)}', space=vmem, size = 0x12000, scoped, tag = 'internal scratch']
  #allocation2 [shape = 'f32[8,256]{1,0:T(8,128)}', space=vmem, size = 0x2000, scoped, tag = 'scratch operand']
  #allocation3 [shape = 'f32[8,8,128]{2,1,0:T(8,128)}', space=vmem, size = 0x8000, scoped, tag = 'scratch operand']
  #allocation4 [shape = 'f32[8,8,128]{2,1,0:T(8,128)}', space=vmem, size = 0x8000, scoped, tag = 'scratch operand']
  %s0 = inlined_call_operand.vmem [shape: f32[8,8,128], index: 0, kind: input, shape index: {}, may-alias: {0,1}]
  %s1 = inlined_call_operand.vmem [shape: f32[8,8,128], index: 1, kind: input, shape index: {}, may-alias: {0,1}]
  %s2 = inlined_call_operand.hbm [shape: f32[2,128,128], index: 2, kind: input, shape index: {}]
  %s3 = inlined_call_operand.hbm [shape: f32[256,256], index: 3, kind: input, shape index: {}]
  %s4 = inlined_call_operand.vmem [shape: f32[2,1,128], index: 4, kind: input, shape index: {}]
  %s5 = inlined_call_operand.vmem [shape: f32[8,8,128], index: 5, kind: output, shape index: {0}]
  %s6 = inlined_call_operand.vmem [shape: f32[8,8,128], index: 6, kind: output, shape index: {1}]
  %7 = xla_tuple %s5, %s6
  %s8 = sld [smem:[#allocation0]]
  $region50: #{_lambda_.3} parent=0
    _
  %s10 = ssub.s32 1, %s8
  %s11 = scalar_select 0, %s10, %s8
  $region1: #{_lambda_.3} parent=0
    #allocation5 [shape = 'u8[131072]{0}', space=vmem, size = 0x20000, scoped, tag = 'input window, operand 2, single buffered']
    #allocation6 [shape = 's32[1]{0}', space=sflag, size = 0x4, scoped, tag = 'scoped memory for _lambda_.3']
    #allocation7 [shape = 'u8[262144]{0}', space=vmem, size = 0x40000, scoped, tag = 'input window, operand 3, single buffered']
    #allocation8 [shape = 's32[1]{0}', space=sflag, size = 0x4, scoped, tag = 'scoped memory for _lambda_.3']
    %12 = vsyncpa [#allocation6], 0
    %13 = vsyncpa [#allocation8], 0
    // Predicated region
    $region2: #{_lambda_.3} parent=1 // pred_check
      _
    $region3: #{_lambda_.3} parent=1 // pred_check_branch
      %15 = sbr.rel (0) target = $region5
    $region4: #{_lambda_.3} parent=1 // pred_region
      _
    $region5: #{_lambda_.3} parent=1 // pred_fallthru
      _
    // Predicated region
    $region6: #{_lambda_.3} parent=1 // pred_check
      _
    $region7: #{_lambda_.3} parent=1 // pred_check_branch
      %17 = sbr.rel (0) target = $region9
    $region8: #{_lambda_.3} parent=1 // pred_region
      %s18 = ssub.s32 0, 0
      %s19 = smul.u32 8, %s18
      %p20 = scmp.lt.s32.totalorder %s19, 7
      %s21 = scalar_select %p20, %s19, 7
      %s22 = smul.addr %s21, 8
      %s23 = scalar_lea.vmem %s1, %s22
      %s24 = ssub.s32 0, 0
      %s25 = smul.u32 8, %s24
    $region9: #{_lambda_.3} parent=1 // pred_fallthru
      _
    // Predicated region
    $region10: #{_lambda_.3} parent=1 // pred_check
      _
    $region11: #{_lambda_.3} parent=1 // pred_check_branch
      %27 = sbr.rel (0) target = $region13
    $region12: #{_lambda_.3} parent=1 // pred_region
      %s29 = ssub.s32 4096, 4096
      %30 = vsyncadd [#allocation6], %s29
      %s31 = sshll.u32 [#allocation5], 4
      %s32 = int_to_ptr.vmem [resolvable:$true] %s31
      %37 = dma.hbm_to_vmem [thread:$0]  %s2, 4096, %s32, [#allocation6], 128, 128, 8
    $region13: #{_lambda_.3} parent=1 // pred_fallthru
      _
    // Predicated region
    $region14: #{_lambda_.3} parent=1 // pred_check
      _
    $region15: #{_lambda_.3} parent=1 // pred_check_branch
      %39 = sbr.rel (0) target = $region17
    $region16: #{_lambda_.3} parent=1 // pred_region
      %s41 = ssub.s32 8192, 8192
      %42 = vsyncadd [#allocation8], %s41
      %s43 = sshll.u32 [#allocation7], 4
      %s44 = int_to_ptr.vmem [resolvable:$true] %s43
      %49 = dma.hbm_to_vmem [thread:$0]  %s3, 8192, %s44, [#allocation8], 256, 256, 16
    $region17: #{_lambda_.3} parent=1 // pred_fallthru
      _
    // Predicated region
    $region18: #{_lambda_.3} parent=1 // pred_check
      _
    $region19: #{_lambda_.3} parent=1 // pred_check_branch
      %51 = sbr.rel (0) target = $region21
    $region20: #{_lambda_.3} parent=1 // pred_region
      _
    $region21: #{_lambda_.3} parent=1 // pred_fallthru
      _
    // Predicated region
    $region22: #{_lambda_.3} parent=1 // pred_check
      _
    $region23: #{_lambda_.3} parent=1 // pred_check_branch
      %53 = sbr.rel (0) target = $region25
    $region24: #{_lambda_.3} parent=1 // pred_region
      %54 = dma.done [#allocation6], 4096
    $region25: #{_lambda_.3} parent=1 // pred_fallthru
      _
    // Predicated region
    $region26: #{_lambda_.3} parent=1 // pred_check
      _
    $region27: #{_lambda_.3} parent=1 // pred_check_branch
      %56 = sbr.rel (0) target = $region29
    $region28: #{_lambda_.3} parent=1 // pred_region
      %57 = dma.done [#allocation8], 8192
    $region29: #{_lambda_.3} parent=1 // pred_fallthru
      _
    %s58 = ssub.s32 0, 0
    %s59 = smul.u32 8, %s58
    %p60 = scmp.lt.s32.totalorder %s59, 7
    %s61 = scalar_select %p60, %s59, 7
    %s62 = smul.addr %s61, 8
    %s63 = scalar_lea.vmem %s1, %s62
    %s64 = ssub.s32 0, 0
    %s65 = smul.u32 8, %s64
    %p66 = scmp.lt.s32.totalorder %s65, 7
    %s67 = scalar_select %p66, %s65, 7
    %s68 = smul.addr %s67, 8
    %s69 = scalar_lea.vmem %s6, %s68
    %s70 = ssub.s32 0, 0
    %s71 = smul.u32 8, %s70
    %p72 = scmp.lt.s32.totalorder %s71, 7
    %s73 = scalar_select %p72, %s71, 7
    %s74 = smul.addr %s73, 8
    %s75 = scalar_lea.vmem %s1, %s74
    %s76 = ssub.s32 0, 0
    %s77 = smul.u32 8, %s76
    %s78 = ssub.s32 0, 0
    %s79 = smul.u32 8, %s78
    %p80 = scmp.lt.s32.totalorder %s79, 7
    %s81 = scalar_select %p80, %s79, 7
    %s82 = smul.addr %s81, 8
    %s83 = scalar_lea.vmem %s6, %s82
    %s84 = ssub.s32 0, 0
    %s85 = smul.u32 8, %s84
    %p86 = scmp.eq.s32.totalorder 0, 0
    // Predicated region
    $region30: #{_lambda_.3} parent=1 // pred_check
      %p87 = pneg %p86
    $region31: #{_lambda_.3} parent=1 // pred_check_branch
      %89 = sbr.rel (%p87) target = $region33
    $region32: #{_lambda_.3} parent=1 // pred_region
      %90 = vst [vmem:[#allocation2] sm:$0xff] 0.0
      %91 = vst [vmem:[#allocation2 + $0x8] sm:$0xff] 0.0
    $region33: #{_lambda_.3} parent=1 // pred_fallthru
      _
    %v92 = vld [vmem:[%s0] sm:$0xff]
    %v93 = vld [vmem:[%s0 + $0x8] sm:$0xff]
    %v94 = vld [vmem:[%s0 + $0x10] sm:$0xff]
    %v95 = vld [vmem:[%s0 + $0x18] sm:$0xff]
    %v96 = vld [vmem:[%s0 + $0x20] sm:$0xff]
    %v97 = vld [vmem:[%s0 + $0x28] sm:$0xff]
    %v98 = vld [vmem:[%s0 + $0x30] sm:$0xff]
    %v99 = vld [vmem:[%s0 + $0x38] sm:$0xff]
    %v100 = vld [vmem:[%s75] sm:$0xff]
    %v101 = vld [vmem:[%s75 + $0x8] sm:$0xff]
    %v102 = vld [vmem:[%s75 + $0x10] sm:$0xff]
    %v103 = vld [vmem:[%s75 + $0x18] sm:$0xff]
    %v104 = vld [vmem:[%s75 + $0x20] sm:$0xff]
    %v105 = vld [vmem:[%s75 + $0x28] sm:$0xff]
    %v106 = vld [vmem:[%s75 + $0x30] sm:$0xff]
    %v107 = vld [vmem:[%s75 + $0x38] sm:$0xff]
    %v108 = vld [vmem:[#allocation5] sm:$0xff]
    %v109 = vld [vmem:[#allocation5 + $0x8] sm:$0xff]
    %v110 = vld [vmem:[#allocation5 + $0x10] sm:$0xff]
    %v111 = vld [vmem:[#allocation5 + $0x18] sm:$0xff]
    %v112 = vld [vmem:[#allocation5 + $0x20] sm:$0xff]
    %v113 = vld [vmem:[#allocation5 + $0x28] sm:$0xff]
    %v114 = vld [vmem:[#allocation5 + $0x30] sm:$0xff]
    %v115 = vld [vmem:[#allocation5 + $0x38] sm:$0xff]
    %v116 = vld [vmem:[#allocation5 + $0x40] sm:$0xff]
    %v117 = vld [vmem:[#allocation5 + $0x48] sm:$0xff]
    %v118 = vld [vmem:[#allocation5 + $0x50] sm:$0xff]
    %v119 = vld [vmem:[#allocation5 + $0x58] sm:$0xff]
    %v120 = vld [vmem:[#allocation5 + $0x60] sm:$0xff]
    %v121 = vld [vmem:[#allocation5 + $0x68] sm:$0xff]
    %v122 = vld [vmem:[#allocation5 + $0x70] sm:$0xff]
    %v123 = vld [vmem:[#allocation5 + $0x78] sm:$0xff]
    %v124 = vld [vmem:[%s4] sm:$0x1]
    %v126 = vlaneseq
    %v127 = vshrl.u32 %v126, 7
    %v128 = vsub.s32 0, %v127
    %v129 = vrot.slane %v124, %v128
    %131 = vmatprep.subr.mxu0 0.0
    %132 = vmatpush1.msra.mxu0 %v108
    %133 = vmatprep.subr.mxu0 0.0
    %134 = vmatpush1.msra.mxu0 %v109
    %135 = vmatprep.subr.mxu0 0.0
    %136 = vmatpush1.msra.mxu0 %v110
    %137 = vmatprep.subr.mxu0 0.0
    %138 = vmatpush1.msra.mxu0 %v111
    %139 = vmatprep.subr.mxu0 0.0
    %140 = vmatpush1.msra.mxu0 %v112
    %141 = vmatprep.subr.mxu0 0.0
    %142 = vmatpush1.msra.mxu0 %v113
    %143 = vmatprep.subr.mxu0 0.0
    %144 = vmatpush1.msra.mxu0 %v114
    %145 = vmatprep.subr.mxu0 0.0
    %146 = vmatpush1.msra.mxu0 %v115
    %147 = vmatprep.subr.mxu0 0.0
    %148 = vmatpush1.msra.mxu0 %v116
    %149 = vmatprep.subr.mxu0 0.0
    %150 = vmatpush1.msra.mxu0 %v117
    %151 = vmatprep.subr.mxu0 0.0
    %152 = vmatpush1.msra.mxu0 %v118
    %153 = vmatprep.subr.mxu0 0.0
    %154 = vmatpush1.msra.mxu0 %v119
    %155 = vmatprep.subr.mxu0 0.0
    %156 = vmatpush1.msra.mxu0 %v120
    %157 = vmatprep.subr.mxu0 0.0
    %158 = vmatpush1.msra.mxu0 %v121
    %159 = vmatprep.subr.mxu0 0.0
    %160 = vmatpush1.msra.mxu0 %v122
    %161 = vmatprep.subr.mxu0 0.0
    %162 = vmatpush1.msra.mxu0 %v123
    %163 = vmatprep.subr.mxu0 0.0
    %164 = vmatpush1.msra.mxu0 0.0
    %165 = vmatprep.subr.mxu0 0.0
    %166 = vmatpush1.msra.mxu0 0.0
    %167 = vmatprep.subr.mxu0 0.0
    %168 = vmatpush1.msra.mxu0 0.0
    %169 = vmatprep.subr.mxu0 0.0
    %170 = vmatpush1.msra.mxu0 0.0
    %171 = vmatprep.subr.mxu0 0.0
    %172 = vmatpush1.msra.mxu0 0.0
    %173 = vmatprep.subr.mxu0 0.0
    %174 = vmatpush1.msra.mxu0 0.0
    %175 = vmatprep.subr.mxu0 0.0
    %176 = vmatpush1.msra.mxu0 0.0
    %177 = vmatprep.subr.mxu0 0.0
    %178 = vmatpush1.msra.mxu0 0.0
    %179 = vmatprep.subr.mxu0 0.0
    %180 = vmatpush1.msra.mxu0 0.0
    %181 = vmatprep.subr.mxu0 0.0
    %182 = vmatpush1.msra.mxu0 0.0
    %183 = vmatprep.subr.mxu0 0.0
    %184 = vmatpush1.msra.mxu0 0.0
    %185 = vmatprep.subr.mxu0 0.0
    %186 = vmatpush1.msra.mxu0 0.0
    %187 = vmatprep.subr.mxu0 0.0
    %188 = vmatpush1.msra.mxu0 0.0
    %189 = vmatprep.subr.mxu0 0.0
    %190 = vmatpush1.msra.mxu0 0.0
    %191 = vmatprep.subr.mxu0 0.0
    %192 = vmatpush1.msra.mxu0 0.0
    %193 = vmatprep.subr.mxu0 0.0
    %194 = vmatpush1.msra.mxu0 0.0
    %195 = vmatprep.mubr.f32.mxu0 0.0
    %196 = vmatmul.mubr.f32.gmra.mrb[0].mxu0 %v92
    %v197 = vpop.f32.mrb[0].mxu0
    %v198 = vadd.f32 %v129, %v197
    %v199 = vpop.f32.mrb[0].mxu0
    %200 = vmatprep.mubr.f32.mxu0 0.0
    %201 = vmatmul.mubr.f32.gmra.mrb[0].mxu0 %v93
    %v202 = vpop.f32.mrb[0].mxu0
    %v203 = vadd.f32 %v129, %v202
    %v204 = vpop.f32.mrb[0].mxu0
    %205 = vmatprep.mubr.f32.mxu0 0.0
    %206 = vmatmul.mubr.f32.gmra.mrb[0].mxu0 %v94
    %v207 = vpop.f32.mrb[0].mxu0
    %v208 = vadd.f32 %v129, %v207
    %v209 = vpop.f32.mrb[0].mxu0
    %210 = vmatprep.mubr.f32.mxu0 0.0
    %211 = vmatmul.mubr.f32.gmra.mrb[0].mxu0 %v95
    %v212 = vpop.f32.mrb[0].mxu0
    %v213 = vadd.f32 %v129, %v212
    %v214 = vpop.f32.mrb[0].mxu0
    %215 = vmatprep.mubr.f32.mxu0 0.0
    %216 = vmatmul.mubr.f32.gmra.mrb[0].mxu0 %v96
    %v217 = vpop.f32.mrb[0].mxu0
    %v218 = vadd.f32 %v129, %v217
    %v219 = vpop.f32.mrb[0].mxu0
    %220 = vmatprep.mubr.f32.mxu0 0.0
    %221 = vmatmul.mubr.f32.gmra.mrb[0].mxu0 %v97
    %v222 = vpop.f32.mrb[0].mxu0
    %v223 = vadd.f32 %v129, %v222
    %v224 = vpop.f32.mrb[0].mxu0
    %225 = vmatprep.mubr.f32.mxu0 0.0
    %226 = vmatmul.mubr.f32.gmra.mrb[0].mxu0 %v98
    %v227 = vpop.f32.mrb[0].mxu0
    %v228 = vadd.f32 %v129, %v227
    %v229 = vpop.f32.mrb[0].mxu0
    %230 = vmatprep.mubr.f32.mxu0 0.0
    %231 = vmatmul.mubr.f32.gmra.mrb[0].mxu0 %v99
    %v232 = vpop.f32.mrb[0].mxu0
    %v233 = vadd.f32 %v129, %v232
    %v234 = vpop.f32.mrb[0].mxu0
    %235 = vdwg.mxu0
    %236 = vst [vmem:[#allocation3] sm:$0xff] %v198
    %237 = vst [vmem:[#allocation3 + $0x8] sm:$0xff] %v203
    %238 = vst [vmem:[#allocation3 + $0x10] sm:$0xff] %v208
    %239 = vst [vmem:[#allocation3 + $0x18] sm:$0xff] %v213
    %240 = vst [vmem:[#allocation3 + $0x20] sm:$0xff] %v218
    %241 = vst [vmem:[#allocation3 + $0x28] sm:$0xff] %v223
    %242 = vst [vmem:[#allocation3 + $0x30] sm:$0xff] %v228
    %243 = vst [vmem:[#allocation3 + $0x38] sm:$0xff] %v233
    %s244 = scalar_lea.vmem [#allocation5], 128
    %v245 = vld [vmem:[%s244] sm:$0xff]
    %v246 = vld [vmem:[%s244 + $0x8] sm:$0xff]
    %v247 = vld [vmem:[%s244 + $0x10] sm:$0xff]
    %v248 = vld [vmem:[%s244 + $0x18] sm:$0xff]
    %v249 = vld [vmem:[%s244 + $0x20] sm:$0xff]
    %v250 = vld [vmem:[%s244 + $0x28] sm:$0xff]
    %v251 = vld [vmem:[%s244 + $0x30] sm:$0xff]
    %v252 = vld [vmem:[%s244 + $0x38] sm:$0xff]
    %v253 = vld [vmem:[%s244 + $0x40] sm:$0xff]
    %v254 = vld [vmem:[%s244 + $0x48] sm:$0xff]
    %v255 = vld [vmem:[%s244 + $0x50] sm:$0xff]
    %v256 = vld [vmem:[%s244 + $0x58] sm:$0xff]
    %v257 = vld [vmem:[%s244 + $0x60] sm:$0xff]
    %v258 = vld [vmem:[%s244 + $0x68] sm:$0xff]
    %v259 = vld [vmem:[%s244 + $0x70] sm:$0xff]
    %v260 = vld [vmem:[%s244 + $0x78] sm:$0xff]
    %s261 = scalar_lea.vmem %s4, 1
    %v262 = vld [vmem:[%s261] sm:$0x1]
    %v264 = vlaneseq
    %v265 = vshrl.u32 %v264, 7
    %v266 = vsub.s32 0, %v265
    %v267 = vrot.slane %v262, %v266
    %269 = vmatprep.subr.mxu0 0.0
    %270 = vmatpush1.msra.mxu0 %v245
    %271 = vmatprep.subr.mxu0 0.0
    %272 = vmatpush1.msra.mxu0 %v246
    %273 = vmatprep.subr.mxu0 0.0
    %274 = vmatpush1.msra.mxu0 %v247
    %275 = vmatprep.subr.mxu0 0.0
    %276 = vmatpush1.msra.mxu0 %v248
    %277 = vmatprep.subr.mxu0 0.0
    %278 = vmatpush1.msra.mxu0 %v249
    %279 = vmatprep.subr.mxu0 0.0
    %280 = vmatpush1.msra.mxu0 %v250
    %281 = vmatprep.subr.mxu0 0.0
    %282 = vmatpush1.msra.mxu0 %v251
    %283 = vmatprep.subr.mxu0 0.0
    %284 = vmatpush1.msra.mxu0 %v252
    %285 = vmatprep.subr.mxu0 0.0
    %286 = vmatpush1.msra.mxu0 %v253
    %287 = vmatprep.subr.mxu0 0.0
    %288 = vmatpush1.msra.mxu0 %v254
    %289 = vmatprep.subr.mxu0 0.0
    %290 = vmatpush1.msra.mxu0 %v255
    %291 = vmatprep.subr.mxu0 0.0
    %292 = vmatpush1.msra.mxu0 %v256
    %293 = vmatprep.subr.mxu0 0.0
    %294 = vmatpush1.msra.mxu0 %v257
    %295 = vmatprep.subr.mxu0 0.0
    %296 = vmatpush1.msra.mxu0 %v258
    %297 = vmatprep.subr.mxu0 0.0
    %298 = vmatpush1.msra.mxu0 %v259
    %299 = vmatprep.subr.mxu0 0.0
    %300 = vmatpush1.msra.mxu0 %v260
    %301 = vmatprep.subr.mxu0 0.0
    %302 = vmatpush1.msra.mxu0 0.0
    %303 = vmatprep.subr.mxu0 0.0
    %304 = vmatpush1.msra.mxu0 0.0
    %305 = vmatprep.subr.mxu0 0.0
    %306 = vmatpush1.msra.mxu0 0.0
    %307 = vmatprep.subr.mxu0 0.0
    %308 = vmatpush1.msra.mxu0 0.0
    %309 = vmatprep.subr.mxu0 0.0
    %310 = vmatpush1.msra.mxu0 0.0
    %311 = vmatprep.subr.mxu0 0.0
    %312 = vmatpush1.msra.mxu0 0.0
    %313 = vmatprep.subr.mxu0 0.0
    %314 = vmatpush1.msra.mxu0 0.0
    %315 = vmatprep.subr.mxu0 0.0
    %316 = vmatpush1.msra.mxu0 0.0
    %317 = vmatprep.subr.mxu0 0.0
    %318 = vmatpush1.msra.mxu0 0.0
    %319 = vmatprep.subr.mxu0 0.0
    %320 = vmatpush1.msra.mxu0 0.0
    %321 = vmatprep.subr.mxu0 0.0
    %322 = vmatpush1.msra.mxu0 0.0
    %323 = vmatprep.subr.mxu0 0.0
    %324 = vmatpush1.msra.mxu0 0.0
    %325 = vmatprep.subr.mxu0 0.0
    %326 = vmatpush1.msra.mxu0 0.0
    %327 = vmatprep.subr.mxu0 0.0
    %328 = vmatpush1.msra.mxu0 0.0
    %329 = vmatprep.subr.mxu0 0.0
    %330 = vmatpush1.msra.mxu0 0.0
    %331 = vmatprep.subr.mxu0 0.0
    %332 = vmatpush1.msra.mxu0 0.0
    %333 = vmatprep.mubr.f32.mxu0 0.0
    %334 = vmatmul.mubr.f32.gmra.mrb[0].mxu0 %v100
    %v335 = vpop.f32.mrb[0].mxu0
    %v336 = vadd.f32 %v267, %v335
    %v337 = vpop.f32.mrb[0].mxu0
    %338 = vmatprep.mubr.f32.mxu0 0.0
    %339 = vmatmul.mubr.f32.gmra.mrb[0].mxu0 %v101
    %v340 = vpop.f32.mrb[0].mxu0
    %v341 = vadd.f32 %v267, %v340
    %v342 = vpop.f32.mrb[0].mxu0
    %343 = vmatprep.mubr.f32.mxu0 0.0
    %344 = vmatmul.mubr.f32.gmra.mrb[0].mxu0 %v102
    %v345 = vpop.f32.mrb[0].mxu0
    %v346 = vadd.f32 %v267, %v345
    %v347 = vpop.f32.mrb[0].mxu0
    %348 = vmatprep.mubr.f32.mxu0 0.0
    %349 = vmatmul.mubr.f32.gmra.mrb[0].mxu0 %v103
    %v350 = vpop.f32.mrb[0].mxu0
    %v351 = vadd.f32 %v267, %v350
    %v352 = vpop.f32.mrb[0].mxu0
    %353 = vmatprep.mubr.f32.mxu0 0.0
    %354 = vmatmul.mubr.f32.gmra.mrb[0].mxu0 %v104
    %v355 = vpop.f32.mrb[0].mxu0
    %v356 = vadd.f32 %v267, %v355
    %v357 = vpop.f32.mrb[0].mxu0
    %358 = vmatprep.mubr.f32.mxu0 0.0
    %359 = vmatmul.mubr.f32.gmra.mrb[0].mxu0 %v105
    %v360 = vpop.f32.mrb[0].mxu0
    %v361 = vadd.f32 %v267, %v360
    %v362 = vpop.f32.mrb[0].mxu0
    %363 = vmatprep.mubr.f32.mxu0 0.0
    %364 = vmatmul.mubr.f32.gmra.mrb[0].mxu0 %v106
    %v365 = vpop.f32.mrb[0].mxu0
    %v366 = vadd.f32 %v267, %v365
    %v367 = vpop.f32.mrb[0].mxu0
    %368 = vmatprep.mubr.f32.mxu0 0.0
    %369 = vmatmul.mubr.f32.gmra.mrb[0].mxu0 %v107
    %v370 = vpop.f32.mrb[0].mxu0
    %v371 = vadd.f32 %v267, %v370
    %v372 = vpop.f32.mrb[0].mxu0
    %373 = vdwg.mxu0
    %374 = vst [vmem:[#allocation4] sm:$0xff] %v336
    %375 = vst [vmem:[#allocation4 + $0x8] sm:$0xff] %v341
    %376 = vst [vmem:[#allocation4 + $0x10] sm:$0xff] %v346
    %377 = vst [vmem:[#allocation4 + $0x18] sm:$0xff] %v351
    %378 = vst [vmem:[#allocation4 + $0x20] sm:$0xff] %v356
    %379 = vst [vmem:[#allocation4 + $0x28] sm:$0xff] %v361
    %380 = vst [vmem:[#allocation4 + $0x30] sm:$0xff] %v366
    %381 = vst [vmem:[#allocation4 + $0x38] sm:$0xff] %v371
    %v382 = vld [vmem:[#allocation7] sm:$0xff]
    %v383 = vld [vmem:[#allocation7 + $0x8] sm:$0xff]
    %v384 = vld [vmem:[#allocation7 + $0x10] sm:$0xff]
    %v385 = vld [vmem:[#allocation7 + $0x18] sm:$0xff]
    %v386 = vld [vmem:[#allocation7 + $0x20] sm:$0xff]
    %v387 = vld [vmem:[#allocation7 + $0x28] sm:$0xff]
    %v388 = vld [vmem:[#allocation7 + $0x30] sm:$0xff]
    %v389 = vld [vmem:[#allocation7 + $0x38] sm:$0xff]
    %v390 = vld [vmem:[#allocation7 + $0x40] sm:$0xff]
    %v391 = vld [vmem:[#allocation7 + $0x48] sm:$0xff]
    %v392 = vld [vmem:[#allocation7 + $0x50] sm:$0xff]
    %v393 = vld [vmem:[#allocation7 + $0x58] sm:$0xff]
    %v394 = vld [vmem:[#allocation7 + $0x60] sm:$0xff]
    %v395 = vld [vmem:[#allocation7 + $0x68] sm:$0xff]
    %v396 = vld [vmem:[#allocation7 + $0x70] sm:$0xff]
    %v397 = vld [vmem:[#allocation7 + $0x78] sm:$0xff]
    %v398 = vld [vmem:[#allocation7 + $0x80] sm:$0xff]
    %v399 = vld [vmem:[#allocation7 + $0x88] sm:$0xff]
    %v400 = vld [vmem:[#allocation7 + $0x90] sm:$0xff]
    %v401 = vld [vmem:[#allocation7 + $0x98] sm:$0xff]
    %v402 = vld [vmem:[#allocation7 + $0xa0] sm:$0xff]
    %v403 = vld [vmem:[#allocation7 + $0xa8] sm:$0xff]
    %v404 = vld [vmem:[#allocation7 + $0xb0] sm:$0xff]
    %v405 = vld [vmem:[#allocation7 + $0xb8] sm:$0xff]
    %v406 = vld [vmem:[#allocation7 + $0xc0] sm:$0xff]
    %v407 = vld [vmem:[#allocation7 + $0xc8] sm:$0xff]
    %v408 = vld [vmem:[#allocation7 + $0xd0] sm:$0xff]
    %v409 = vld [vmem:[#allocation7 + $0xd8] sm:$0xff]
    %v410 = vld [vmem:[#allocation7 + $0xe0] sm:$0xff]
    %v411 = vld [vmem:[#allocation7 + $0xe8] sm:$0xff]
    %v412 = vld [vmem:[#allocation7 + $0xf0] sm:$0xff]
    %v413 = vld [vmem:[#allocation7 + $0xf8] sm:$0xff]
    %v414 = vld [vmem:[#allocation7 + $0x100] sm:$0xff]
    %v415 = vld [vmem:[#allocation7 + $0x108] sm:$0xff]
    %v416 = vld [vmem:[#allocation7 + $0x110] sm:$0xff]
    %v417 = vld [vmem:[#allocation7 + $0x118] sm:$0xff]
    %v418 = vld [vmem:[#allocation7 + $0x120] sm:$0xff]
    %v419 = vld [vmem:[#allocation7 + $0x128] sm:$0xff]
    %v420 = vld [vmem:[#allocation7 + $0x130] sm:$0xff]
    %v421 = vld [vmem:[#allocation7 + $0x138] sm:$0xff]
    %v422 = vld [vmem:[#allocation7 + $0x140] sm:$0xff]
    %v423 = vld [vmem:[#allocation7 + $0x148] sm:$0xff]
    %v424 = vld [vmem:[#allocation7 + $0x150] sm:$0xff]
    %v425 = vld [vmem:[#allocation7 + $0x158] sm:$0xff]
    %v426 = vld [vmem:[#allocation7 + $0x160] sm:$0xff]
    %v427 = vld [vmem:[#allocation7 + $0x168] sm:$0xff]
    %v428 = vld [vmem:[#allocation7 + $0x170] sm:$0xff]
    %v429 = vld [vmem:[#allocation7 + $0x178] sm:$0xff]
    %v430 = vld [vmem:[#allocation7 + $0x180] sm:$0xff]
    %v431 = vld [vmem:[#allocation7 + $0x188] sm:$0xff]
    %v432 = vld [vmem:[#allocation7 + $0x190] sm:$0xff]
    %v433 = vld [vmem:[#allocation7 + $0x198] sm:$0xff]
    %v434 = vld [vmem:[#allocation7 + $0x1a0] sm:$0xff]
    %v435 = vld [vmem:[#allocation7 + $0x1a8] sm:$0xff]
    %v436 = vld [vmem:[#allocation7 + $0x1b0] sm:$0xff]
    %v437 = vld [vmem:[#allocation7 + $0x1b8] sm:$0xff]
    %v438 = vld [vmem:[#allocation7 + $0x1c0] sm:$0xff]
    %v439 = vld [vmem:[#allocation7 + $0x1c8] sm:$0xff]
    %v440 = vld [vmem:[#allocation7 + $0x1d0] sm:$0xff]
    %v441 = vld [vmem:[#allocation7 + $0x1d8] sm:$0xff]
    %v442 = vld [vmem:[#allocation7 + $0x1e0] sm:$0xff]
    %v443 = vld [vmem:[#allocation7 + $0x1e8] sm:$0xff]
    %v444 = vld [vmem:[#allocation7 + $0x1f0] sm:$0xff]
    %v445 = vld [vmem:[#allocation7 + $0x1f8] sm:$0xff]
    %v446 = vld [vmem:[#allocation3] sm:$0xff]
    %s447 = scalar_lea.vmem [#allocation4], 56
    %v448 = vld [vmem:[%s447] sm:$0xff]
    %v449 = vld [vmem:[#allocation2] sm:$0xff]
    %v450 = vld [vmem:[#allocation2 + $0x8] sm:$0xff]
    %451 = vmatprep.subr.mxu0 %v383
    %452 = vmatpush1.msra.mxu0 %v382
    %453 = vmatprep.subr.mxu0 %v385
    %454 = vmatpush1.msra.mxu0 %v384
    %455 = vmatprep.subr.mxu0 %v387
    %456 = vmatpush1.msra.mxu0 %v386
    %457 = vmatprep.subr.mxu0 %v389
    %458 = vmatpush1.msra.mxu0 %v388
    %459 = vmatprep.subr.mxu0 %v391
    %460 = vmatpush1.msra.mxu0 %v390
    %461 = vmatprep.subr.mxu0 %v393
    %462 = vmatpush1.msra.mxu0 %v392
    %463 = vmatprep.subr.mxu0 %v395
    %464 = vmatpush1.msra.mxu0 %v394
    %465 = vmatprep.subr.mxu0 %v397
    %466 = vmatpush1.msra.mxu0 %v396
    %467 = vmatprep.subr.mxu0 %v399
    %468 = vmatpush1.msra.mxu0 %v398
    %469 = vmatprep.subr.mxu0 %v401
    %470 = vmatpush1.msra.mxu0 %v400
    %471 = vmatprep.subr.mxu0 %v403
    %472 = vmatpush1.msra.mxu0 %v402
    %473 = vmatprep.subr.mxu0 %v405
    %474 = vmatpush1.msra.mxu0 %v404
    %475 = vmatprep.subr.mxu0 %v407
    %476 = vmatpush1.msra.mxu0 %v406
    %477 = vmatprep.subr.mxu0 %v409
    %478 = vmatpush1.msra.mxu0 %v408
    %479 = vmatprep.subr.mxu0 %v411
    %480 = vmatpush1.msra.mxu0 %v410
    %481 = vmatprep.subr.mxu0 %v413
    %482 = vmatpush1.msra.mxu0 %v412
    %483 = vmatprep.subr.mxu0 %v415
    %484 = vmatpush1.msra.mxu0 %v414
    %485 = vmatprep.subr.mxu0 %v417
    %486 = vmatpush1.msra.mxu0 %v416
    %487 = vmatprep.subr.mxu0 %v419
    %488 = vmatpush1.msra.mxu0 %v418
    %489 = vmatprep.subr.mxu0 %v421
    %490 = vmatpush1.msra.mxu0 %v420
    %491 = vmatprep.subr.mxu0 %v423
    %492 = vmatpush1.msra.mxu0 %v422
    %493 = vmatprep.subr.mxu0 %v425
    %494 = vmatpush1.msra.mxu0 %v424
    %495 = vmatprep.subr.mxu0 %v427
    %496 = vmatpush1.msra.mxu0 %v426
    %497 = vmatprep.subr.mxu0 %v429
    %498 = vmatpush1.msra.mxu0 %v428
    %499 = vmatprep.subr.mxu0 %v431
    %500 = vmatpush1.msra.mxu0 %v430
    %501 = vmatprep.subr.mxu0 %v433
    %502 = vmatpush1.msra.mxu0 %v432
    %503 = vmatprep.subr.mxu0 %v435
    %504 = vmatpush1.msra.mxu0 %v434
    %505 = vmatprep.subr.mxu0 %v437
    %506 = vmatpush1.msra.mxu0 %v436
    %507 = vmatprep.subr.mxu0 %v439
    %508 = vmatpush1.msra.mxu0 %v438
    %509 = vmatprep.subr.mxu0 %v441
    %510 = vmatpush1.msra.mxu0 %v440
    %511 = vmatprep.subr.mxu0 %v443
    %512 = vmatpush1.msra.mxu0 %v442
    %513 = vmatprep.subr.mxu0 %v445
    %514 = vmatpush1.msra.mxu0 %v444
    %515 = vmatprep.mubr.f32.mxu0 %v450
    %516 = vmatmul.mubr.f32.gmra.mrb[0].mxu0 %v449
    %v517 = vpop.f32.mrb[0].mxu0
    %v518 = vadd.f32 0.0, %v517
    %v519 = vpop.f32.mrb[0].mxu0
    %v520 = vadd.f32 0.0, %v519
    %521 = vdwg.mxu0
    %v522 = vadd.f32 %v446, %v518
    %v523 = vadd.f32 %v448, %v520
    %v524 = vtanh.pop %v522
    %v525 = vtanh.pop %v523
    %526 = vst [vmem:[#allocation2] sm:$0xff] %v524
    %527 = vst [vmem:[#allocation2 + $0x8] sm:$0xff] %v525
    %528 = vst [vmem:[%s5] sm:$0xff] %v524
    %s529 = scalar_lea.vmem %s83, 56
    %530 = vst [vmem:[%s529] sm:$0xff] %v525
    %s531 = scalar_lea.vmem [#allocation3], 8
    %v532 = vld [vmem:[%s531] sm:$0xff]
    %s533 = scalar_lea.vmem [#allocation4], 48
    %v534 = vld [vmem:[%s533] sm:$0xff]
    %v535 = vld [vmem:[#allocation2] sm:$0xff]
    %v536 = vld [vmem:[#allocation2 + $0x8] sm:$0xff]
    %537 = vmatprep.subr.mxu0 %v383
    %538 = vmatpush1.msra.mxu0 %v382
    %539 = vmatprep.subr.mxu0 %v385
    %540 = vmatpush1.msra.mxu0 %v384
    %541 = vmatprep.subr.mxu0 %v387
    %542 = vmatpush1.msra.mxu0 %v386
    %543 = vmatprep.subr.mxu0 %v389
    %544 = vmatpush1.msra.mxu0 %v388
    %545 = vmatprep.subr.mxu0 %v391
    %546 = vmatpush1.msra.mxu0 %v390
    %547 = vmatprep.subr.mxu0 %v393
    %548 = vmatpush1.msra.mxu0 %v392
    %549 = vmatprep.subr.mxu0 %v395
    %550 = vmatpush1.msra.mxu0 %v394
    %551 = vmatprep.subr.mxu0 %v397
    %552 = vmatpush1.msra.mxu0 %v396
    %553 = vmatprep.subr.mxu0 %v399
    %554 = vmatpush1.msra.mxu0 %v398
    %555 = vmatprep.subr.mxu0 %v401
    %556 = vmatpush1.msra.mxu0 %v400
    %557 = vmatprep.subr.mxu0 %v403
    %558 = vmatpush1.msra.mxu0 %v402
    %559 = vmatprep.subr.mxu0 %v405
    %560 = vmatpush1.msra.mxu0 %v404
    %561 = vmatprep.subr.mxu0 %v407
    %562 = vmatpush1.msra.mxu0 %v406
    %563 = vmatprep.subr.mxu0 %v409
    %564 = vmatpush1.msra.mxu0 %v408
    %565 = vmatprep.subr.mxu0 %v411
    %566 = vmatpush1.msra.mxu0 %v410
    %567 = vmatprep.subr.mxu0 %v413
    %568 = vmatpush1.msra.mxu0 %v412
    %569 = vmatprep.subr.mxu0 %v415
    %570 = vmatpush1.msra.mxu0 %v414
    %571 = vmatprep.subr.mxu0 %v417
    %572 = vmatpush1.msra.mxu0 %v416
    %573 = vmatprep.subr.mxu0 %v419
    %574 = vmatpush1.msra.mxu0 %v418
    %575 = vmatprep.subr.mxu0 %v421
    %576 = vmatpush1.msra.mxu0 %v420
    %577 = vmatprep.subr.mxu0 %v423
    %578 = vmatpush1.msra.mxu0 %v422
    %579 = vmatprep.subr.mxu0 %v425
    %580 = vmatpush1.msra.mxu0 %v424
    %581 = vmatprep.subr.mxu0 %v427
    %582 = vmatpush1.msra.mxu0 %v426
    %583 = vmatprep.subr.mxu0 %v429
    %584 = vmatpush1.msra.mxu0 %v428
    %585 = vmatprep.subr.mxu0 %v431
    %586 = vmatpush1.msra.mxu0 %v430
    %587 = vmatprep.subr.mxu0 %v433
    %588 = vmatpush1.msra.mxu0 %v432
    %589 = vmatprep.subr.mxu0 %v435
    %590 = vmatpush1.msra.mxu0 %v434
    %591 = vmatprep.subr.mxu0 %v437
    %592 = vmatpush1.msra.mxu0 %v436
    %593 = vmatprep.subr.mxu0 %v439
    %594 = vmatpush1.msra.mxu0 %v438
    %595 = vmatprep.subr.mxu0 %v441
    %596 = vmatpush1.msra.mxu0 %v440
    %597 = vmatprep.subr.mxu0 %v443
    %598 = vmatpush1.msra.mxu0 %v442
    %599 = vmatprep.subr.mxu0 %v445
    %600 = vmatpush1.msra.mxu0 %v444
    %601 = vmatprep.mubr.f32.mxu0 %v536
    %602 = vmatmul.mubr.f32.gmra.mrb[0].mxu0 %v535
    %v603 = vpop.f32.mrb[0].mxu0
    %v604 = vadd.f32 0.0, %v603
    %v605 = vpop.f32.mrb[0].mxu0
    %v606 = vadd.f32 0.0, %v605
    %607 = vdwg.mxu0
    %v608 = vadd.f32 %v532, %v604
    %v609 = vadd.f32 %v534, %v606
    %v610 = vtanh.pop %v608
    %v611 = vtanh.pop %v609
    %612 = vst [vmem:[#allocation2] sm:$0xff] %v610
    %613 = vst [vmem:[#allocation2 + $0x8] sm:$0xff] %v611
    %s614 = scalar_lea.vmem %s5, 8
    %615 = vst [vmem:[%s614] sm:$0xff] %v610
    %s616 = scalar_lea.vmem %s83, 48
    %617 = vst [vmem:[%s616] sm:$0xff] %v611
    %s618 = scalar_lea.vmem [#allocation3], 16
    %v619 = vld [vmem:[%s618] sm:$0xff]
    %s620 = scalar_lea.vmem [#allocation4], 40
    %v621 = vld [vmem:[%s620] sm:$0xff]
    %v622 = vld [vmem:[#allocation2] sm:$0xff]
    %v623 = vld [vmem:[#allocation2 + $0x8] sm:$0xff]
    %624 = vmatprep.subr.mxu0 %v383
    %625 = vmatpush1.msra.mxu0 %v382
    %626 = vmatprep.subr.mxu0 %v385
    %627 = vmatpush1.msra.mxu0 %v384
    %628 = vmatprep.subr.mxu0 %v387
    %629 = vmatpush1.msra.mxu0 %v386
    %630 = vmatprep.subr.mxu0 %v389
    %631 = vmatpush1.msra.mxu0 %v388
    %632 = vmatprep.subr.mxu0 %v391
    %633 = vmatpush1.msra.mxu0 %v390
    %634 = vmatprep.subr.mxu0 %v393
    %635 = vmatpush1.msra.mxu0 %v392
    %636 = vmatprep.subr.mxu0 %v395
    %637 = vmatpush1.msra.mxu0 %v394
    %638 = vmatprep.subr.mxu0 %v397
    %639 = vmatpush1.msra.mxu0 %v396
    %640 = vmatprep.subr.mxu0 %v399
    %641 = vmatpush1.msra.mxu0 %v398
    %642 = vmatprep.subr.mxu0 %v401
    %643 = vmatpush1.msra.mxu0 %v400
    %644 = vmatprep.subr.mxu0 %v403
    %645 = vmatpush1.msra.mxu0 %v402
    %646 = vmatprep.subr.mxu0 %v405
    %647 = vmatpush1.msra.mxu0 %v404
    %648 = vmatprep.subr.mxu0 %v407
    %649 = vmatpush1.msra.mxu0 %v406
    %650 = vmatprep.subr.mxu0 %v409
    %651 = vmatpush1.msra.mxu0 %v408
    %652 = vmatprep.subr.mxu0 %v411
    %653 = vmatpush1.msra.mxu0 %v410
    %654 = vmatprep.subr.mxu0 %v413
    %655 = vmatpush1.msra.mxu0 %v412
    %656 = vmatprep.subr.mxu0 %v415
    %657 = vmatpush1.msra.mxu0 %v414
    %658 = vmatprep.subr.mxu0 %v417
    %659 = vmatpush1.msra.mxu0 %v416
    %660 = vmatprep.subr.mxu0 %v419
    %661 = vmatpush1.msra.mxu0 %v418
    %662 = vmatprep.subr.mxu0 %v421
    %663 = vmatpush1.msra.mxu0 %v420
    %664 = vmatprep.subr.mxu0 %v423
    %665 = vmatpush1.msra.mxu0 %v422
    %666 = vmatprep.subr.mxu0 %v425
    %667 = vmatpush1.msra.mxu0 %v424
    %668 = vmatprep.subr.mxu0 %v427
    %669 = vmatpush1.msra.mxu0 %v426
    %670 = vmatprep.subr.mxu0 %v429
    %671 = vmatpush1.msra.mxu0 %v428
    %672 = vmatprep.subr.mxu0 %v431
    %673 = vmatpush1.msra.mxu0 %v430
    %674 = vmatprep.subr.mxu0 %v433
    %675 = vmatpush1.msra.mxu0 %v432
    %676 = vmatprep.subr.mxu0 %v435
    %677 = vmatpush1.msra.mxu0 %v434
    %678 = vmatprep.subr.mxu0 %v437
    %679 = vmatpush1.msra.mxu0 %v436
    %680 = vmatprep.subr.mxu0 %v439
    %681 = vmatpush1.msra.mxu0 %v438
    %682 = vmatprep.subr.mxu0 %v441
    %683 = vmatpush1.msra.mxu0 %v440
    %684 = vmatprep.subr.mxu0 %v443
    %685 = vmatpush1.msra.mxu0 %v442
    %686 = vmatprep.subr.mxu0 %v445
    %687 = vmatpush1.msra.mxu0 %v444
    %688 = vmatprep.mubr.f32.mxu0 %v623
    %689 = vmatmul.mubr.f32.gmra.mrb[0].mxu0 %v622
    %v690 = vpop.f32.mrb[0].mxu0
    %v691 = vadd.f32 0.0, %v690
    %v692 = vpop.f32.mrb[0].mxu0
    %v693 = vadd.f32 0.0, %v692
    %694 = vdwg.mxu0
    %v695 = vadd.f32 %v619, %v691
    %v696 = vadd.f32 %v621, %v693
    %v697 = vtanh.pop %v695
    %v698 = vtanh.pop %v696
    %699 = vst [vmem:[#allocation2] sm:$0xff] %v697
    %700 = vst [vmem:[#allocation2 + $0x8] sm:$0xff] %v698
    %s701 = scalar_lea.vmem %s5, 16
    %702 = vst [vmem:[%s701] sm:$0xff] %v697
    %s703 = scalar_lea.vmem %s83, 40
    %704 = vst [vmem:[%s703] sm:$0xff] %v698
    %s705 = scalar_lea.vmem [#allocation3], 24
    %v706 = vld [vmem:[%s705] sm:$0xff]
    %s707 = scalar_lea.vmem [#allocation4], 32
    %v708 = vld [vmem:[%s707] sm:$0xff]
    %v709 = vld [vmem:[#allocation2] sm:$0xff]
    %v710 = vld [vmem:[#allocation2 + $0x8] sm:$0xff]
    %711 = vmatprep.subr.mxu0 %v383
    %712 = vmatpush1.msra.mxu0 %v382
    %713 = vmatprep.subr.mxu0 %v385
    %714 = vmatpush1.msra.mxu0 %v384
    %715 = vmatprep.subr.mxu0 %v387
    %716 = vmatpush1.msra.mxu0 %v386
    %717 = vmatprep.subr.mxu0 %v389
    %718 = vmatpush1.msra.mxu0 %v388
    %719 = vmatprep.subr.mxu0 %v391
    %720 = vmatpush1.msra.mxu0 %v390
    %721 = vmatprep.subr.mxu0 %v393
    %722 = vmatpush1.msra.mxu0 %v392
    %723 = vmatprep.subr.mxu0 %v395
    %724 = vmatpush1.msra.mxu0 %v394
    %725 = vmatprep.subr.mxu0 %v397
    %726 = vmatpush1.msra.mxu0 %v396
    %727 = vmatprep.subr.mxu0 %v399
    %728 = vmatpush1.msra.mxu0 %v398
    %729 = vmatprep.subr.mxu0 %v401
    %730 = vmatpush1.msra.mxu0 %v400
    %731 = vmatprep.subr.mxu0 %v403
    %732 = vmatpush1.msra.mxu0 %v402
    %733 = vmatprep.subr.mxu0 %v405
    %734 = vmatpush1.msra.mxu0 %v404
    %735 = vmatprep.subr.mxu0 %v407
    %736 = vmatpush1.msra.mxu0 %v406
    %737 = vmatprep.subr.mxu0 %v409
    %738 = vmatpush1.msra.mxu0 %v408
    %739 = vmatprep.subr.mxu0 %v411
    %740 = vmatpush1.msra.mxu0 %v410
    %741 = vmatprep.subr.mxu0 %v413
    %742 = vmatpush1.msra.mxu0 %v412
    %743 = vmatprep.subr.mxu0 %v415
    %744 = vmatpush1.msra.mxu0 %v414
    %745 = vmatprep.subr.mxu0 %v417
    %746 = vmatpush1.msra.mxu0 %v416
    %747 = vmatprep.subr.mxu0 %v419
    %748 = vmatpush1.msra.mxu0 %v418
    %749 = vmatprep.subr.mxu0 %v421
    %750 = vmatpush1.msra.mxu0 %v420
    %751 = vmatprep.subr.mxu0 %v423
    %752 = vmatpush1.msra.mxu0 %v422
    %753 = vmatprep.subr.mxu0 %v425
    %754 = vmatpush1.msra.mxu0 %v424
    %755 = vmatprep.subr.mxu0 %v427
    %756 = vmatpush1.msra.mxu0 %v426
    %757 = vmatprep.subr.mxu0 %v429
    %758 = vmatpush1.msra.mxu0 %v428
    %759 = vmatprep.subr.mxu0 %v431
    %760 = vmatpush1.msra.mxu0 %v430
    %761 = vmatprep.subr.mxu0 %v433
    %762 = vmatpush1.msra.mxu0 %v432
    %763 = vmatprep.subr.mxu0 %v435
    %764 = vmatpush1.msra.mxu0 %v434
    %765 = vmatprep.subr.mxu0 %v437
    %766 = vmatpush1.msra.mxu0 %v436
    %767 = vmatprep.subr.mxu0 %v439
    %768 = vmatpush1.msra.mxu0 %v438
    %769 = vmatprep.subr.mxu0 %v441
    %770 = vmatpush1.msra.mxu0 %v440
    %771 = vmatprep.subr.mxu0 %v443
    %772 = vmatpush1.msra.mxu0 %v442
    %773 = vmatprep.subr.mxu0 %v445
    %774 = vmatpush1.msra.mxu0 %v444
    %775 = vmatprep.mubr.f32.mxu0 %v710
    %776 = vmatmul.mubr.f32.gmra.mrb[0].mxu0 %v709
    %v777 = vpop.f32.mrb[0].mxu0
    %v778 = vadd.f32 0.0, %v777
    %v779 = vpop.f32.mrb[0].mxu0
    %v780 = vadd.f32 0.0, %v779
    %781 = vdwg.mxu0
    %v782 = vadd.f32 %v706, %v778
    %v783 = vadd.f32 %v708, %v780
    %v784 = vtanh.pop %v782
    %v785 = vtanh.pop %v783
    %786 = vst [vmem:[#allocation2] sm:$0xff] %v784
    %787 = vst [vmem:[#allocation2 + $0x8] sm:$0xff] %v785
    %s788 = scalar_lea.vmem %s5, 24
    %789 = vst [vmem:[%s788] sm:$0xff] %v784
    %s790 = scalar_lea.vmem %s83, 32
    %791 = vst [vmem:[%s790] sm:$0xff] %v785
    %s792 = scalar_lea.vmem [#allocation3], 32
    %v793 = vld [vmem:[%s792] sm:$0xff]
    %s794 = scalar_lea.vmem [#allocation4], 24
    %v795 = vld [vmem:[%s794] sm:$0xff]
    %v796 = vld [vmem:[#allocation2] sm:$0xff]
    %v797 = vld [vmem:[#allocation2 + $0x8] sm:$0xff]
    %798 = vmatprep.subr.mxu0 %v383
    %799 = vmatpush1.msra.mxu0 %v382
    %800 = vmatprep.subr.mxu0 %v385
    %801 = vmatpush1.msra.mxu0 %v384
    %802 = vmatprep.subr.mxu0 %v387
    %803 = vmatpush1.msra.mxu0 %v386
    %804 = vmatprep.subr.mxu0 %v389
    %805 = vmatpush1.msra.mxu0 %v388
    %806 = vmatprep.subr.mxu0 %v391
    %807 = vmatpush1.msra.mxu0 %v390
    %808 = vmatprep.subr.mxu0 %v393
    %809 = vmatpush1.msra.mxu0 %v392
    %810 = vmatprep.subr.mxu0 %v395
    %811 = vmatpush1.msra.mxu0 %v394
    %812 = vmatprep.subr.mxu0 %v397
    %813 = vmatpush1.msra.mxu0 %v396
    %814 = vmatprep.subr.mxu0 %v399
    %815 = vmatpush1.msra.mxu0 %v398
    %816 = vmatprep.subr.mxu0 %v401
    %817 = vmatpush1.msra.mxu0 %v400
    %818 = vmatprep.subr.mxu0 %v403
    %819 = vmatpush1.msra.mxu0 %v402
    %820 = vmatprep.subr.mxu0 %v405
    %821 = vmatpush1.msra.mxu0 %v404
    %822 = vmatprep.subr.mxu0 %v407
    %823 = vmatpush1.msra.mxu0 %v406
    %824 = vmatprep.subr.mxu0 %v409
    %825 = vmatpush1.msra.mxu0 %v408
    %826 = vmatprep.subr.mxu0 %v411
    %827 = vmatpush1.msra.mxu0 %v410
    %828 = vmatprep.subr.mxu0 %v413
    %829 = vmatpush1.msra.mxu0 %v412
    %830 = vmatprep.subr.mxu0 %v415
    %831 = vmatpush1.msra.mxu0 %v414
    %832 = vmatprep.subr.mxu0 %v417
    %833 = vmatpush1.msra.mxu0 %v416
    %834 = vmatprep.subr.mxu0 %v419
    %835 = vmatpush1.msra.mxu0 %v418
    %836 = vmatprep.subr.mxu0 %v421
    %837 = vmatpush1.msra.mxu0 %v420
    %838 = vmatprep.subr.mxu0 %v423
    %839 = vmatpush1.msra.mxu0 %v422
    %840 = vmatprep.subr.mxu0 %v425
    %841 = vmatpush1.msra.mxu0 %v424
    %842 = vmatprep.subr.mxu0 %v427
    %843 = vmatpush1.msra.mxu0 %v426
    %844 = vmatprep.subr.mxu0 %v429
    %845 = vmatpush1.msra.mxu0 %v428
    %846 = vmatprep.subr.mxu0 %v431
    %847 = vmatpush1.msra.mxu0 %v430
    %848 = vmatprep.subr.mxu0 %v433
    %849 = vmatpush1.msra.mxu0 %v432
    %850 = vmatprep.subr.mxu0 %v435
    %851 = vmatpush1.msra.mxu0 %v434
    %852 = vmatprep.subr.mxu0 %v437
    %853 = vmatpush1.msra.mxu0 %v436
    %854 = vmatprep.subr.mxu0 %v439
    %855 = vmatpush1.msra.mxu0 %v438
    %856 = vmatprep.subr.mxu0 %v441
    %857 = vmatpush1.msra.mxu0 %v440
    %858 = vmatprep.subr.mxu0 %v443
    %859 = vmatpush1.msra.mxu0 %v442
    %860 = vmatprep.subr.mxu0 %v445
    %861 = vmatpush1.msra.mxu0 %v444
    %862 = vmatprep.mubr.f32.mxu0 %v797
    %863 = vmatmul.mubr.f32.gmra.mrb[0].mxu0 %v796
    %v864 = vpop.f32.mrb[0].mxu0
    %v865 = vadd.f32 0.0, %v864
    %v866 = vpop.f32.mrb[0].mxu0
    %v867 = vadd.f32 0.0, %v866
    %868 = vdwg.mxu0
    %v869 = vadd.f32 %v793, %v865
    %v870 = vadd.f32 %v795, %v867
    %v871 = vtanh.pop %v869
    %v872 = vtanh.pop %v870
    %873 = vst [vmem:[#allocation2] sm:$0xff] %v871
    %874 = vst [vmem:[#allocation2 + $0x8] sm:$0xff] %v872
    %s875 = scalar_lea.vmem %s5, 32
    %876 = vst [vmem:[%s875] sm:$0xff] %v871
    %s877 = scalar_lea.vmem %s83, 24
    %878 = vst [vmem:[%s877] sm:$0xff] %v872
    %s879 = scalar_lea.vmem [#allocation3], 40
    %v880 = vld [vmem:[%s879] sm:$0xff]
    %s881 = scalar_lea.vmem [#allocation4], 16
    %v882 = vld [vmem:[%s881] sm:$0xff]
    %v883 = vld [vmem:[#allocation2] sm:$0xff]
    %v884 = vld [vmem:[#allocation2 + $0x8] sm:$0xff]
    %885 = vmatprep.subr.mxu0 %v383
    %886 = vmatpush1.msra.mxu0 %v382
    %887 = vmatprep.subr.mxu0 %v385
    %888 = vmatpush1.msra.mxu0 %v384
    %889 = vmatprep.subr.mxu0 %v387
    %890 = vmatpush1.msra.mxu0 %v386
    %891 = vmatprep.subr.mxu0 %v389
    %892 = vmatpush1.msra.mxu0 %v388
    %893 = vmatprep.subr.mxu0 %v391
    %894 = vmatpush1.msra.mxu0 %v390
    %895 = vmatprep.subr.mxu0 %v393
    %896 = vmatpush1.msra.mxu0 %v392
    %897 = vmatprep.subr.mxu0 %v395
    %898 = vmatpush1.msra.mxu0 %v394
    %899 = vmatprep.subr.mxu0 %v397
    %900 = vmatpush1.msra.mxu0 %v396
    %901 = vmatprep.subr.mxu0 %v399
    %902 = vmatpush1.msra.mxu0 %v398
    %903 = vmatprep.subr.mxu0 %v401
    %904 = vmatpush1.msra.mxu0 %v400
    %905 = vmatprep.subr.mxu0 %v403
    %906 = vmatpush1.msra.mxu0 %v402
    %907 = vmatprep.subr.mxu0 %v405
    %908 = vmatpush1.msra.mxu0 %v404
    %909 = vmatprep.subr.mxu0 %v407
    %910 = vmatpush1.msra.mxu0 %v406
    %911 = vmatprep.subr.mxu0 %v409
    %912 = vmatpush1.msra.mxu0 %v408
    %913 = vmatprep.subr.mxu0 %v411
    %914 = vmatpush1.msra.mxu0 %v410
    %915 = vmatprep.subr.mxu0 %v413
    %916 = vmatpush1.msra.mxu0 %v412
    %917 = vmatprep.subr.mxu0 %v415
    %918 = vmatpush1.msra.mxu0 %v414
    %919 = vmatprep.subr.mxu0 %v417
    %920 = vmatpush1.msra.mxu0 %v416
    %921 = vmatprep.subr.mxu0 %v419
    %922 = vmatpush1.msra.mxu0 %v418
    %923 = vmatprep.subr.mxu0 %v421
    %924 = vmatpush1.msra.mxu0 %v420
    %925 = vmatprep.subr.mxu0 %v423
    %926 = vmatpush1.msra.mxu0 %v422
    %927 = vmatprep.subr.mxu0 %v425
    %928 = vmatpush1.msra.mxu0 %v424
    %929 = vmatprep.subr.mxu0 %v427
    %930 = vmatpush1.msra.mxu0 %v426
    %931 = vmatprep.subr.mxu0 %v429
    %932 = vmatpush1.msra.mxu0 %v428
    %933 = vmatprep.subr.mxu0 %v431
    %934 = vmatpush1.msra.mxu0 %v430
    %935 = vmatprep.subr.mxu0 %v433
    %936 = vmatpush1.msra.mxu0 %v432
    %937 = vmatprep.subr.mxu0 %v435
    %938 = vmatpush1.msra.mxu0 %v434
    %939 = vmatprep.subr.mxu0 %v437
    %940 = vmatpush1.msra.mxu0 %v436
    %941 = vmatprep.subr.mxu0 %v439
    %942 = vmatpush1.msra.mxu0 %v438
    %943 = vmatprep.subr.mxu0 %v441
    %944 = vmatpush1.msra.mxu0 %v440
    %945 = vmatprep.subr.mxu0 %v443
    %946 = vmatpush1.msra.mxu0 %v442
    %947 = vmatprep.subr.mxu0 %v445
    %948 = vmatpush1.msra.mxu0 %v444
    %949 = vmatprep.mubr.f32.mxu0 %v884
    %950 = vmatmul.mubr.f32.gmra.mrb[0].mxu0 %v883
    %v951 = vpop.f32.mrb[0].mxu0
    %v952 = vadd.f32 0.0, %v951
    %v953 = vpop.f32.mrb[0].mxu0
    %v954 = vadd.f32 0.0, %v953
    %955 = vdwg.mxu0
    %v956 = vadd.f32 %v880, %v952
    %v957 = vadd.f32 %v882, %v954
    %v958 = vtanh.pop %v956
    %v959 = vtanh.pop %v957
    %960 = vst [vmem:[#allocation2] sm:$0xff] %v958
    %961 = vst [vmem:[#allocation2 + $0x8] sm:$0xff] %v959
    %s962 = scalar_lea.vmem %s5, 40
    %963 = vst [vmem:[%s962] sm:$0xff] %v958
    %s964 = scalar_lea.vmem %s83, 16
    %965 = vst [vmem:[%s964] sm:$0xff] %v959
    %s966 = scalar_lea.vmem [#allocation3], 48
    %v967 = vld [vmem:[%s966] sm:$0xff]
    %s968 = scalar_lea.vmem [#allocation4], 8
    %v969 = vld [vmem:[%s968] sm:$0xff]
    %v970 = vld [vmem:[#allocation2] sm:$0xff]
    %v971 = vld [vmem:[#allocation2 + $0x8] sm:$0xff]
    %972 = vmatprep.subr.mxu0 %v383
    %973 = vmatpush1.msra.mxu0 %v382
    %974 = vmatprep.subr.mxu0 %v385
    %975 = vmatpush1.msra.mxu0 %v384
    %976 = vmatprep.subr.mxu0 %v387
    %977 = vmatpush1.msra.mxu0 %v386
    %978 = vmatprep.subr.mxu0 %v389
    %979 = vmatpush1.msra.mxu0 %v388
    %980 = vmatprep.subr.mxu0 %v391
    %981 = vmatpush1.msra.mxu0 %v390
    %982 = vmatprep.subr.mxu0 %v393
    %983 = vmatpush1.msra.mxu0 %v392
    %984 = vmatprep.subr.mxu0 %v395
    %985 = vmatpush1.msra.mxu0 %v394
    %986 = vmatprep.subr.mxu0 %v397
    %987 = vmatpush1.msra.mxu0 %v396
    %988 = vmatprep.subr.mxu0 %v399
    %989 = vmatpush1.msra.mxu0 %v398
    %990 = vmatprep.subr.mxu0 %v401
    %991 = vmatpush1.msra.mxu0 %v400
    %992 = vmatprep.subr.mxu0 %v403
    %993 = vmatpush1.msra.mxu0 %v402
    %994 = vmatprep.subr.mxu0 %v405
    %995 = vmatpush1.msra.mxu0 %v404
    %996 = vmatprep.subr.mxu0 %v407
    %997 = vmatpush1.msra.mxu0 %v406
    %998 = vmatprep.subr.mxu0 %v409
    %999 = vmatpush1.msra.mxu0 %v408
    %1000 = vmatprep.subr.mxu0 %v411
    %1001 = vmatpush1.msra.mxu0 %v410
    %1002 = vmatprep.subr.mxu0 %v413
    %1003 = vmatpush1.msra.mxu0 %v412
    %1004 = vmatprep.subr.mxu0 %v415
    %1005 = vmatpush1.msra.mxu0 %v414
    %1006 = vmatprep.subr.mxu0 %v417
    %1007 = vmatpush1.msra.mxu0 %v416
    %1008 = vmatprep.subr.mxu0 %v419
    %1009 = vmatpush1.msra.mxu0 %v418
    %1010 = vmatprep.subr.mxu0 %v421
    %1011 = vmatpush1.msra.mxu0 %v420
    %1012 = vmatprep.subr.mxu0 %v423
    %1013 = vmatpush1.msra.mxu0 %v422
    %1014 = vmatprep.subr.mxu0 %v425
    %1015 = vmatpush1.msra.mxu0 %v424
    %1016 = vmatprep.subr.mxu0 %v427
    %1017 = vmatpush1.msra.mxu0 %v426
    %1018 = vmatprep.subr.mxu0 %v429
    %1019 = vmatpush1.msra.mxu0 %v428
    %1020 = vmatprep.subr.mxu0 %v431
    %1021 = vmatpush1.msra.mxu0 %v430
    %1022 = vmatprep.subr.mxu0 %v433
    %1023 = vmatpush1.msra.mxu0 %v432
    %1024 = vmatprep.subr.mxu0 %v435
    %1025 = vmatpush1.msra.mxu0 %v434
    %1026 = vmatprep.subr.mxu0 %v437
    %1027 = vmatpush1.msra.mxu0 %v436
    %1028 = vmatprep.subr.mxu0 %v439
    %1029 = vmatpush1.msra.mxu0 %v438
    %1030 = vmatprep.subr.mxu0 %v441
    %1031 = vmatpush1.msra.mxu0 %v440
    %1032 = vmatprep.subr.mxu0 %v443
    %1033 = vmatpush1.msra.mxu0 %v442
    %1034 = vmatprep.subr.mxu0 %v445
    %1035 = vmatpush1.msra.mxu0 %v444
    %1036 = vmatprep.mubr.f32.mxu0 %v971
    %1037 = vmatmul.mubr.f32.gmra.mrb[0].mxu0 %v970
    %v1038 = vpop.f32.mrb[0].mxu0
    %v1039 = vadd.f32 0.0, %v1038
    %v1040 = vpop.f32.mrb[0].mxu0
    %v1041 = vadd.f32 0.0, %v1040
    %1042 = vdwg.mxu0
    %v1043 = vadd.f32 %v967, %v1039
    %v1044 = vadd.f32 %v969, %v1041
    %v1045 = vtanh.pop %v1043
    %v1046 = vtanh.pop %v1044
    %1047 = vst [vmem:[#allocation2] sm:$0xff] %v1045
    %1048 = vst [vmem:[#allocation2 + $0x8] sm:$0xff] %v1046
    %s1049 = scalar_lea.vmem %s5, 48
    %1050 = vst [vmem:[%s1049] sm:$0xff] %v1045
    %s1051 = scalar_lea.vmem %s83, 8
    %1052 = vst [vmem:[%s1051] sm:$0xff] %v1046
    %s1053 = scalar_lea.vmem [#allocation3], 56
    %v1054 = vld [vmem:[%s1053] sm:$0xff]
    %v1055 = vld [vmem:[#allocation4] sm:$0xff]
    %v1056 = vld [vmem:[#allocation2] sm:$0xff]
    %v1057 = vld [vmem:[#allocation2 + $0x8] sm:$0xff]
    %1058 = vmatprep.subr.mxu0 %v383
    %1059 = vmatpush1.msra.mxu0 %v382
    %1060 = vmatprep.subr.mxu0 %v385
    %1061 = vmatpush1.msra.mxu0 %v384
    %1062 = vmatprep.subr.mxu0 %v387
    %1063 = vmatpush1.msra.mxu0 %v386
    %1064 = vmatprep.subr.mxu0 %v389
    %1065 = vmatpush1.msra.mxu0 %v388
    %1066 = vmatprep.subr.mxu0 %v391
    %1067 = vmatpush1.msra.mxu0 %v390
    %1068 = vmatprep.subr.mxu0 %v393
    %1069 = vmatpush1.msra.mxu0 %v392
    %1070 = vmatprep.subr.mxu0 %v395
    %1071 = vmatpush1.msra.mxu0 %v394
    %1072 = vmatprep.subr.mxu0 %v397
    %1073 = vmatpush1.msra.mxu0 %v396
    %1074 = vmatprep.subr.mxu0 %v399
    %1075 = vmatpush1.msra.mxu0 %v398
    %1076 = vmatprep.subr.mxu0 %v401
    %1077 = vmatpush1.msra.mxu0 %v400
    %1078 = vmatprep.subr.mxu0 %v403
    %1079 = vmatpush1.msra.mxu0 %v402
    %1080 = vmatprep.subr.mxu0 %v405
    %1081 = vmatpush1.msra.mxu0 %v404
    %1082 = vmatprep.subr.mxu0 %v407
    %1083 = vmatpush1.msra.mxu0 %v406
    %1084 = vmatprep.subr.mxu0 %v409
    %1085 = vmatpush1.msra.mxu0 %v408
    %1086 = vmatprep.subr.mxu0 %v411
    %1087 = vmatpush1.msra.mxu0 %v410
    %1088 = vmatprep.subr.mxu0 %v413
    %1089 = vmatpush1.msra.mxu0 %v412
    %1090 = vmatprep.subr.mxu0 %v415
    %1091 = vmatpush1.msra.mxu0 %v414
    %1092 = vmatprep.subr.mxu0 %v417
    %1093 = vmatpush1.msra.mxu0 %v416
    %1094 = vmatprep.subr.mxu0 %v419
    %1095 = vmatpush1.msra.mxu0 %v418
    %1096 = vmatprep.subr.mxu0 %v421
    %1097 = vmatpush1.msra.mxu0 %v420
    %1098 = vmatprep.subr.mxu0 %v423
    %1099 = vmatpush1.msra.mxu0 %v422
    %1100 = vmatprep.subr.mxu0 %v425
    %1101 = vmatpush1.msra.mxu0 %v424
    %1102 = vmatprep.subr.mxu0 %v427
    %1103 = vmatpush1.msra.mxu0 %v426
    %1104 = vmatprep.subr.mxu0 %v429
    %1105 = vmatpush1.msra.mxu0 %v428
    %1106 = vmatprep.subr.mxu0 %v431
    %1107 = vmatpush1.msra.mxu0 %v430
    %1108 = vmatprep.subr.mxu0 %v433
    %1109 = vmatpush1.msra.mxu0 %v432
    %1110 = vmatprep.subr.mxu0 %v435
    %1111 = vmatpush1.msra.mxu0 %v434
    %1112 = vmatprep.subr.mxu0 %v437
    %1113 = vmatpush1.msra.mxu0 %v436
    %1114 = vmatprep.subr.mxu0 %v439
    %1115 = vmatpush1.msra.mxu0 %v438
    %1116 = vmatprep.subr.mxu0 %v441
    %1117 = vmatpush1.msra.mxu0 %v440
    %1118 = vmatprep.subr.mxu0 %v443
    %1119 = vmatpush1.msra.mxu0 %v442
    %1120 = vmatprep.subr.mxu0 %v445
    %1121 = vmatpush1.msra.mxu0 %v444
    %1122 = vmatprep.mubr.f32.mxu0 %v1057
    %1123 = vmatmul.mubr.f32.gmra.mrb[0].mxu0 %v1056
    %v1124 = vpop.f32.mrb[0].mxu0
    %v1125 = vadd.f32 0.0, %v1124
    %v1126 = vpop.f32.mrb[0].mxu0
    %v1127 = vadd.f32 0.0, %v1126
    %1128 = vdwg.mxu0
    %v1129 = vadd.f32 %v1054, %v1125
    %v1130 = vadd.f32 %v1055, %v1127
    %v1131 = vtanh.pop %v1129
    %v1132 = vtanh.pop %v1130
    %1133 = vst [vmem:[#allocation2] sm:$0xff] %v1131
    %1134 = vst [vmem:[#allocation2 + $0x8] sm:$0xff] %v1132
    %s1135 = scalar_lea.vmem %s5, 56
    %1136 = vst [vmem:[%s1135] sm:$0xff] %v1131
    %1137 = vst [vmem:[%s83] sm:$0xff] %v1132
    %s1138 = ssub.s32 0, 0
    %s1139 = smul.u32 8, %s1138
    %p1140 = scmp.lt.s32.totalorder %s1139, 7
    %s1141 = scalar_select %p1140, %s1139, 7
    %s1142 = smul.addr %s1141, 8
    %s1143 = scalar_lea.vmem %s6, %s1142
    // Predicated region
    $region34: #{_lambda_.3} parent=1 // pred_check
      _
    $region35: #{_lambda_.3} parent=1 // pred_check_branch
      %1145 = sbr.rel (0) target = $region37
    $region36: #{_lambda_.3} parent=1 // pred_region
      _
    $region37: #{_lambda_.3} parent=1 // pred_fallthru
      _
    // Predicated region
    $region38: #{_lambda_.3} parent=1 // pred_check
      _
    $region39: #{_lambda_.3} parent=1 // pred_check_branch
      %1147 = sbr.rel (0) target = $region41
    $region40: #{_lambda_.3} parent=1 // pred_region
      %s1148 = ssub.s32 0, 0
      %s1149 = smul.u32 8, %s1148
    $region41: #{_lambda_.3} parent=1 // pred_fallthru
      _
    // Predicated region
    $region42: #{_lambda_.3} parent=1 // pred_check
      _
    $region43: #{_lambda_.3} parent=1 // pred_check_branch
      %1151 = sbr.rel (0) target = $region45
    $region44: #{_lambda_.3} parent=1 // pred_region
      _
    $region45: #{_lambda_.3} parent=1 // pred_fallthru
      _
    // Predicated region
    $region46: #{_lambda_.3} parent=1 // pred_check
      _
    $region47: #{_lambda_.3} parent=1 // pred_check_branch
      %1153 = sbr.rel (0) target = $region49
    $region48: #{_lambda_.3} parent=1 // pred_region
      %s1154 = ssub.s32 0, 0
      %s1155 = smul.u32 8, %s1154
      %p1156 = scmp.lt.s32.totalorder %s1155, 7
      %s1157 = scalar_select %p1156, %s1155, 7
      %s1158 = smul.addr %s1157, 8
      %s1159 = scalar_lea.vmem %s6, %s1158
    $region49: #{_lambda_.3} parent=1 // pred_fallthru
      _
    %1160 = vsyncpa [#allocation6], 1
    %1161 = vsyncpa [#allocation8], 1

</llo_original>
